<compile_context>
chip_gen: v5e
topology: v5e:2x2
jax: 0.10.0
libtpu: 0.0.40
codegen_flags: <defaults>
</compile_context>

<pallas_src>
import functools
import itertools

import numpy as np
import jax
import jax.numpy as jnp
from jax.experimental import pallas as pl
from jax.experimental.pallas import tpu as pltpu


_VMEM_LIMIT = 48 * 1024 * 1024     # < v7x's 64 MiB physical, headroom on v5e/v6e

# ----------------------------------------------------------------------------
# Projective geometric algebra G(3,0,1) tables (built once in Python/numpy)
# ----------------------------------------------------------------------------
_METRIC = {0: 0.0, 1: 1.0, 2: 1.0, 3: 1.0}          # e0^2 = 0, e1..e3^2 = +1

_BLADES = []
for _g in range(5):
    _BLADES.extend(itertools.combinations((0, 1, 2, 3), _g))
_BLADE_INDEX = {b: i for i, b in enumerate(_BLADES)}
# order: 1 | e0 e1 e2 e3 | e01 e02 e03 e12 e13 e23 | e012 e013 e023 e123 | e0123
_E01, _E02, _E03 = _BLADE_INDEX[(0, 1)], _BLADE_INDEX[(0, 2)], _BLADE_INDEX[(0, 3)]


def _blade_product(a, b):
    """Geometric product of two basis blades -> (result_blade, coefficient)."""
    coef = 1.0
    res = list(a)
    for g in b:
        i = len(res) - 1
        while i >= 0 and res[i] > g:
            coef = -coef
            i -= 1
        if i >= 0 and res[i] == g:
            coef *= _METRIC[g]
            del res[i]
        else:
            res.insert(i + 1, g)
        if coef == 0.0:
            return (), 0.0
    return tuple(res), coef


# nonzero entries of the product tensor: (x*y)_c = sum coef * x_a * y_b
_GP_TERMS = []
for _i, _a in enumerate(_BLADES):
    for _j, _b in enumerate(_BLADES):
        _blade, _coef = _blade_product(_a, _b)
        if _coef != 0.0:
            _GP_TERMS.append((_i, _j, _BLADE_INDEX[_blade], float(_coef)))

# invariant inner product uses only the blades that do not contain e0
_INNER_MASK16 = np.array([0.0 if 0 in b else 1.0 for b in _BLADES], np.float32)


def _equi_linear_basis():
    """The 9 Pin(3,0,1)-equivariant endomorphisms of a multivector:
    5 grade projections + 4 maps x -> e0 * grade_k(x), k = 0..3.
    TODO(synk): sign conventions may differ from the gatr library's basis;
    the spanned equivariant family is the same."""
    basis = []
    for g in range(5):
        m = np.zeros((16, 16), np.float32)
        for i, b in enumerate(_BLADES):
            if len(b) == g:
                m[i, i] = 1.0
        basis.append(m)
    for g in range(4):
        m = np.zeros((16, 16), np.float32)
        for i, b in enumerate(_BLADES):
            if len(b) == g:
                blade, coef = _blade_product((0,), b)
                if coef != 0.0:
                    m[_BLADE_INDEX[blade], i] = coef
        basis.append(m)
    return np.stack(basis)                       # [9, 16(out), 16(in)]


_EQUI_BASIS = _equi_linear_basis()


# ----------------------------------------------------------------------------
# Constant matrices that turn the geometric product into two MXU matmuls
#   gp[t, ch*16+cc] = sum_b ( u @ BigW )[t, b*128+ch*16+cc]
#                           * ( u @ BigS )[t, b*128+ch*16+cc]
# where u = [left mv chans | right mv chans | aux scalars | pad].
# ----------------------------------------------------------------------------
def _gp_big_matrices(c_mv, d_mid):
    n_lane = 16 * 128
    bw = np.zeros((d_mid, n_lane), np.float32)
    bs = np.zeros((d_mid, n_lane), np.float32)
    for a, b, cc, coef in _GP_TERMS:
        for ch in range(c_mv):
            bw[ch * 16 + a, b * 128 + ch * 16 + cc] = coef
    for ch in range(c_mv):
        for b in range(16):
            for cc in range(16):
                bs[c_mv * 16 + ch * 16 + b, b * 128 + ch * 16 + cc] = 1.0
    return bw, bs


def _gate_broadcast_matrix(c_mv, d_h):
    """[d_h, d_h] matrix that broadcasts each channel's scalar component
    across that channel's 16 lanes (for the scalar-gated GELU)."""
    m = np.zeros((d_h, d_h), np.float32)
    for ch in range(c_mv):
        for j in range(16):
            m[ch * 16, ch * 16 + j] = 1.0
    return m


# ----------------------------------------------------------------------------
# In-kernel equivariant layer norm (shared prologue)
# ----------------------------------------------------------------------------
def _equi_norm(x, m_ref, c_mv, c_s, eps):
    # x: [Tt, D] f32.  m_ref rows: 0 = inner-product mask at mv lanes,
    # 1 = mv-lane selector, 2 = aux-scalar-lane selector.  Padding lanes -> 0.
    nm = m_ref[0:1, :]
    mvsel = m_ref[1:2, :]
    scsel = m_ref[2:3, :]
    x2 = x * x
    sq_mv = jnp.sum(x2 * nm, axis=-1, keepdims=True) * (1.0 / c_mv)
    scale = mvsel * jax.lax.rsqrt(sq_mv + eps)
    if c_s > 0:
        sq_sc = jnp.sum(x2 * scsel, axis=-1, keepdims=True) * (1.0 / c_s)
        scale = scale + scsel * jax.lax.rsqrt(sq_sc + eps)
    return (x * scale).astype(jnp.bfloat16)


# ----------------------------------------------------------------------------
# Pallas kernels
# ----------------------------------------------------------------------------
def _linear_kernel(x_ref, w_ref, b_ref, o_ref):
    x = x_ref[...].astype(jnp.bfloat16)
    o_ref[...] = (jnp.dot(x, w_ref[...], preferred_element_type=jnp.float32)
                  + b_ref[...])


def _linear_res_kernel(x_ref, w_ref, b_ref, r_ref, o_ref):
    x = x_ref[...].astype(jnp.bfloat16)
    o_ref[...] = (jnp.dot(x, w_ref[...], preferred_element_type=jnp.float32)
                  + b_ref[...] + r_ref[...])


def _norm_linear_kernel(x_ref, m_ref, w_ref, b_ref, o_ref, *, c_mv, c_s, eps):
    xn = _equi_norm(x_ref[...], m_ref, c_mv, c_s, eps)
    o_ref[...] = (jnp.dot(xn, w_ref[...], preferred_element_type=jnp.float32)
                  + b_ref[...])


def _pick_tile_t(t):
    assert t % 8 == 0
    if t <= 256:
        return t
    for cand in (256, 128, 64, 32, 16, 8):
        if t % cand == 0:
            return cand
    return 8


def pallas_linear(x, w, b, *, residual=None, norm_masks=None,
                  c_mv=0, c_s=0, eps=1e-6):
    """Fused EquiLinear (collapsed to one dense bf16 matrix), optionally with
    an equi-layer-norm prologue or a residual-add epilogue, in one kernel."""
    t, d_in = x.shape
    d_in2, d_out = w.shape
    assert d_in == d_in2 and t % 8 == 0 and d_in % 128 == 0 and d_out % 128 == 0
    tile_t = _pick_tile_t(t)
    tile_n = d_out if d_out <= 1024 else next(
        c for c in (512, 256, 128) if d_out % c == 0)

    # grid = (out-tile, token-tile): each W column block is fetched once and
    # only the (small) x tile re-streams across token tiles.
    grid = (d_out // tile_n, t // tile_t)
    x_spec = pl.BlockSpec((tile_t, d_in), lambda j, i: (i, 0))
    w_spec = pl.BlockSpec((d_in, tile_n), lambda j, i: (0, j))
    b_spec = pl.BlockSpec((1, tile_n), lambda j, i: (0, j))
    o_spec = pl.BlockSpec((tile_t, tile_n), lambda j, i: (i, j))
    common = dict(
        out_shape=jax.ShapeDtypeStruct((t, d_out), jnp.float32),
        grid=grid,
        out_specs=o_spec,
        compiler_params=pltpu.CompilerParams(
            dimension_semantics=("parallel", "parallel"),
            vmem_limit_bytes=_VMEM_LIMIT),
    )

    if norm_masks is not None:
        m_spec = pl.BlockSpec((3, d_in), lambda j, i: (0, 0))
        kern = functools.partial(_norm_linear_kernel, c_mv=c_mv, c_s=c_s, eps=eps)
        return pl.pallas_call(
            kern, in_specs=[x_spec, m_spec, w_spec, b_spec], **common
        )(x, norm_masks, w, b)
    if residual is not None:
        r_spec = pl.BlockSpec((tile_t, tile_n), lambda j, i: (i, j))
        return pl.pallas_call(
            _linear_res_kernel, in_specs=[x_spec, w_spec, b_spec, r_spec], **common
        )(x, w, b, residual)
    return pl.pallas_call(
        _linear_kernel, in_specs=[x_spec, w_spec, b_spec], **common
    )(x, w, b)


def _attn_kernel(q_ref, k_ref, v_ref, o_ref):
    # q,k,v,o: [n, d_h].  The invariant-metric mask and the 1/sqrt(d) scale
    # are folded into W_q at parameter-build time, so this is plain attention.
    q = q_ref[...].astype(jnp.bfloat16)
    k = k_ref[...].astype(jnp.bfloat16)
    s = jax.lax.dot_general(q, k, (((1,), (1,)), ((), ())),
                            preferred_element_type=jnp.float32)   # [n, n]
    m = jnp.max(s, axis=-1, keepdims=True)
    p = jnp.exp(s - m)
    l = jnp.sum(p, axis=-1, keepdims=True)
    o = jnp.dot(p.astype(jnp.bfloat16), v_ref[...].astype(jnp.bfloat16),
                preferred_element_type=jnp.float32)               # [n, d_h]
    o_ref[...] = o * pl.reciprocal(l, approx=True)
    # TODO(synk): flash-style q/kv tiling + a token/padding mask are needed
    # for large or ragged n (v7x VMEM is 64 MiB); fine at the demo's n=8.


def pallas_attention(qkv, b, n, heads, d_h):
    """Fused geometric attention.  q/k/v head slices are read straight out of
    the [t, 3*H*d_h] qkv buffer via BlockSpec index maps; output is written
    head-concatenated as [t, H*d_h] (ready for the out projection)."""
    t, wdt = qkv.shape
    assert t == b * n and wdt == 3 * heads * d_h
    assert n % 8 == 0 and d_h % 128 == 0
    q_spec = pl.BlockSpec((n, d_h), lambda bi, hi: (bi, hi))
    k_spec = pl.BlockSpec((n, d_h), lambda bi, hi: (bi, heads + hi))
    v_spec = pl.BlockSpec((n, d_h), lambda bi, hi: (bi, 2 * heads + hi))
    o_spec = pl.BlockSpec((n, d_h), lambda bi, hi: (bi, hi))
    return pl.pallas_call(
        _attn_kernel,
        out_shape=jax.ShapeDtypeStruct((t, heads * d_h), jnp.float32),
        grid=(b, heads),
        in_specs=[q_spec, k_spec, v_spec],
        out_specs=o_spec,
        compiler_params=pltpu.CompilerParams(
            dimension_semantics=("parallel", "parallel"),
            vmem_limit_bytes=_VMEM_LIMIT),
    )(qkv, qkv, qkv)


def _mlp_block_kernel(h_ref, m_ref, w1_ref, b1_ref, bw_ref, bs_ref, bc_ref,
                      w2a_ref, w2b_ref, b2_ref, o_ref,
                      *, c_mv, c_s, eps, sc_lo):
    # Fused MLP sub-layer:
    #   norm -> EquiLinear(mlp1) -> geometric product -> scalar-gated GELU
    #   -> EquiLinear(mlp2) -> + residual, all on one [Tt, d_h] VMEM tile.
    h = h_ref[...]                                             # [Tt, d_h] f32
    xn = _equi_norm(h, m_ref, c_mv, c_s, eps)                  # bf16
    u = (jnp.dot(xn, w1_ref[...], preferred_element_type=jnp.float32)
         + b1_ref[...])                                        # [Tt, d_mid]
    ub = u.astype(jnp.bfloat16)

    # geometric product of the two mv halves of u as two MXU matmuls:
    #   gp[:, ch*16+cc] = sum_{a,b} C[a,b,cc] * left[:,ch,a] * right[:,ch,b]
    aa = jnp.dot(ub, bw_ref[...], preferred_element_type=jnp.float32)  # [Tt,2048]
    bb = jnp.dot(ub, bs_ref[...], preferred_element_type=jnp.float32)  # [Tt,2048]
    prod = aa * bb
    gp = prod[:, 0:128]
    for blk in range(1, 16):                       # 15 lane-tile-aligned adds
        gp = gp + prod[:, blk * 128:(blk + 1) * 128]           # [Tt, 128]
    # TODO(synk): gatr's GeometricBilinear also has an equivariant-join
    # (dual-wedge-dual) branch; only the geometric-product branch is here.

    # scalar-gated GELU on the mv branch (per-channel scalar broadcast done
    # with one tiny MXU matmul); plain GELU on the aux-scalar branch.
    gate = jnp.dot(gp.astype(jnp.bfloat16), bc_ref[...],
                   preferred_element_type=jnp.float32)
    gated = (gp * jax.nn.gelu(gate)).astype(jnp.bfloat16)      # [Tt, 128]
    s_br = jax.nn.gelu(u[:, sc_lo:sc_lo + 128]).astype(jnp.bfloat16)

    out = (jnp.dot(gated, w2a_ref[...], preferred_element_type=jnp.float32)
           + jnp.dot(s_br, w2b_ref[...], preferred_element_type=jnp.float32)
           + b2_ref[...])
    o_ref[...] = h + out


def pallas_mlp_block(h, masks, w1, b1, bw, bs, bc, w2a, w2b, b2,
                     *, c_mv, c_s, eps=1e-6):
    t, d_h = h.shape
    tile_t = _pick_tile_t(t)
    sc_lo = (2 * c_mv * 16 // 128) * 128           # lane tile holding aux scalars

    def full(a):
        return pl.BlockSpec(tuple(a.shape), lambda i: (0,) * a.ndim)

    kern = functools.partial(_mlp_block_kernel, c_mv=c_mv, c_s=c_s,
                             eps=eps, sc_lo=sc_lo)
    h_spec = pl.BlockSpec((tile_t, d_h), lambda i: (i, 0))
    return pl.pallas_call(
        kern,
        out_shape=jax.ShapeDtypeStruct((t, d_h), jnp.float32),
        grid=(t // tile_t,),
        in_specs=[h_spec, full(masks), full(w1), full(b1), full(bw), full(bs),
                  full(bc), full(w2a), full(w2b), full(b2)],
        out_specs=h_spec,
        compiler_params=pltpu.CompilerParams(
            dimension_semantics=("parallel",),
            vmem_limit_bytes=_VMEM_LIMIT),
    )(h, masks, w1, b1, bw, bs, bc, w2a, w2b, b2)


# ----------------------------------------------------------------------------
# EquiLinear -> one dense effective matrix (built once, outside the kernels)
# ----------------------------------------------------------------------------
def _round_up(v, m):
    return ((v + m - 1) // m) * m


def _feat_dim(c_mv, c_s):
    return c_mv * 16 + c_s


def make_equi_linear(key, c_in, s_in, c_out, s_out, d_in_pad=None, d_out_pad=None):
    """Collapse an equivariant linear layer (mv->mv over the 9-map basis,
    s->mv-scalar, mv-scalar->s, s->s) into one dense [d_in_pad, d_out_pad]
    matrix + bias; feature layout = [c*16 mv comps | aux scalars | zeros]."""
    if d_in_pad is None:
        d_in_pad = _round_up(_feat_dim(c_in, s_in), 128)
    if d_out_pad is None:
        d_out_pad = _round_up(_feat_dim(c_out, s_out), 128)
    k1, k2, k3, k4 = jax.random.split(key, 4)
    basis = jnp.asarray(_EQUI_BASIS)                              # [9, 16, 16]
    w_mv = jax.random.normal(k1, (c_out, c_in, 9), jnp.float32) / np.sqrt(9.0 * c_in)
    m_mv = jnp.einsum("oib,bqa->iaoq", w_mv, basis).reshape(c_in * 16, c_out * 16)
    w = jnp.zeros((d_in_pad, d_out_pad), jnp.float32)
    w = w.at[: c_in * 16, : c_out * 16].set(m_mv)
    if s_in > 0:                 # aux scalars -> scalar component of out mvs
        w_s2mv = jax.random.normal(k2, (s_in, c_out), jnp.float32) / np.sqrt(s_in)
        w = w.at[c_in * 16: c_in * 16 + s_in, 0: c_out * 16: 16].set(w_s2mv)
    if s_out > 0:                # scalar component of in mvs -> aux scalars
        w_mv2s = jax.random.normal(k3, (c_in, s_out), jnp.float32) / np.sqrt(c_in)
        w = w.at[0: c_in * 16: 16, c_out * 16: c_out * 16 + s_out].set(w_mv2s)
        if s_in > 0:
            w_s2s = jax.random.normal(k4, (s_in, s_out), jnp.float32) / np.sqrt(s_in)
            w = w.at[c_in * 16: c_in * 16 + s_in,
                     c_out * 16: c_out * 16 + s_out].set(w_s2s)
    b = jnp.zeros((1, d_out_pad), jnp.float32)
    return w, b


def _q_mask_and_scale(c_mv, c_s, d_pad):
    """Invariant-inner-product mask (drop e0 components) and 1/sqrt(d_eff),
    folded into the q projection weights."""
    mask = np.zeros((d_pad,), np.float32)
    for ch in range(c_mv):
        mask[ch * 16: (ch + 1) * 16] = _INNER_MASK16
    mask[c_mv * 16: c_mv * 16 + c_s] = 1.0
    scale = 1.0 / np.sqrt(8.0 * c_mv + c_s)
    return jnp.asarray(mask * scale)


def _norm_masks(c_mv, c_s, d_pad):
    nm = np.zeros((3, d_pad), np.float32)
    for ch in range(c_mv):
        nm[0, ch * 16: (ch + 1) * 16] = _INNER_MASK16
        nm[1, ch * 16: (ch + 1) * 16] = 1.0
    nm[2, c_mv * 16: c_mv * 16 + c_s] = 1.0
    return jnp.asarray(nm)


def init_gatr_params(key, cfg):
    in_c = max(cfg["input_inv_dimension"], cfg["input_vector_multiplicity"])
    out_c = max(cfg["output_inv_dimension"], cfg["output_vector_multiplicity"])
    c, s = cfg["hidden_mv_channels"], cfg["hidden_s_channels"]
    heads = cfg["num_heads"]
    d_h = _round_up(_feat_dim(c, s), 128)
    d_mid = _round_up(_feat_dim(2 * c, s), 128)
    assert d_h == 128 and d_mid == 256 and c * 16 <= 128, \
        "fused MLP kernel assumes the module's fixed hidden size (c=s=5)"

    n_keys = 2 + cfg["num_blocks"] * (4 * heads + 2)
    keys = iter(jax.random.split(key, n_keys))

    def bf16(w):
        return w.astype(jnp.bfloat16)

    params = {}
    w_in, b_in = make_equi_linear(next(keys), in_c, 0, c, s)
    params["w_in"], params["b_in"] = bf16(w_in), b_in
    params["norm_masks"] = _norm_masks(c, s, d_h)
    gp_w, gp_s = _gp_big_matrices(c, d_mid)
    params["gp_w"] = bf16(jnp.asarray(gp_w))
    params["gp_s"] = bf16(jnp.asarray(gp_s))
    params["gate_bcast"] = bf16(jnp.asarray(_gate_broadcast_matrix(c, d_h)))
    q_fold = _q_mask_and_scale(c, s, d_h)
    sc_lo = (2 * c * 16 // 128) * 128

    blocks = []
    for _ in range(cfg["num_blocks"]):
        blk = {}
        qkv_w, qkv_b = [], []
        for which in range(3):                    # q, k, v -- all heads fused
            for _h in range(heads):
                w, bb = make_equi_linear(next(keys), c, s, c, s)
                if which == 0:
                    w = w * q_fold[None, :]       # metric + scale folded into W_q
                qkv_w.append(w)
                qkv_b.append(bb)
        blk["w_qkv"] = bf16(jnp.concatenate(qkv_w, axis=1))     # [d_h, 3*H*d_h]
        blk["b_qkv"] = jnp.concatenate(qkv_b, axis=1)
        proj_w = [make_equi_linear(next(keys), c, s, c, s)[0] for _ in range(heads)]
        blk["w_proj"] = bf16(jnp.concatenate(proj_w, axis=0))   # [H*d_h, d_h]
        blk["b_proj"] = jnp.zeros((1, d_h), jnp.float32)

        w1, b1 = make_equi_linear(next(keys), c, s, 2 * c, s)
        blk["w_mlp1"], blk["b_mlp1"] = bf16(w1), b1
        w2, b2 = make_equi_linear(next(keys), c, s, c, s)
        # split mlp2 for the fused kernel: mv rows act on the (padded) gp
        # output, scalar rows act on the lane tile of u holding the scalars.
        w2a = jnp.zeros_like(w2).at[: c * 16, :].set(w2[: c * 16, :])
        w2b = jnp.zeros((128, d_h), jnp.float32)
        w2b = w2b.at[2 * c * 16 - sc_lo: 2 * c * 16 - sc_lo + s, :].set(
            w2[c * 16: c * 16 + s, :])
        blk["w_mlp2a"], blk["w_mlp2b"], blk["b_mlp2"] = bf16(w2a), bf16(w2b), b2
        blocks.append(blk)
    params["blocks"] = blocks
    w_out, b_out = make_equi_linear(next(keys), c, s, out_c, 0)
    params["w_out"], params["b_out"] = bf16(w_out), b_out
    return params


# ----------------------------------------------------------------------------
# Plain-JAX glue: embedding, extraction, forward pass
# ----------------------------------------------------------------------------
def embed_inputs(x, cfg):
    b, n, _ = x.shape
    inv_d = cfg["input_inv_dimension"]
    vec_m = cfg["input_vector_multiplicity"]
    in_c = max(inv_d, vec_m)
    x_inv = x[:, :, :inv_d]
    x_vec = x[:, :, inv_d:].reshape(b, n, vec_m, 3)
    mv = jnp.zeros((b, n, in_c, 16), jnp.float32)
    mv = mv.at[:, :, :inv_d, 0].set(x_inv)                 # embed_scalar
    trans = jnp.zeros((b, n, vec_m, 16), jnp.float32)      # embed_translation
    trans = trans.at[..., 0].set(1.0)
    trans = trans.at[..., _E01].set(0.5 * x_vec[..., 0])
    trans = trans.at[..., _E02].set(0.5 * x_vec[..., 1])
    trans = trans.at[..., _E03].set(0.5 * x_vec[..., 2])
    mv = mv.at[:, :, :vec_m, :].set(trans)                 # reference overwrite
    return mv


def extract_outputs(mv, cfg):
    b, n = mv.shape[:2]
    vm = cfg["output_vector_multiplicity"]
    s_out = mv[:, :, : cfg["output_inv_dimension"], 0].reshape(b, n, -1)
    v_out = jnp.stack(
        [2.0 * mv[..., :vm, _E01],
         2.0 * mv[..., :vm, _E02],
         2.0 * mv[..., :vm, _E03]], axis=-1).reshape(b, n, -1)
    return jnp.concatenate([s_out, v_out], axis=-1)


def gatr_forward(params, x, *, cfg):
    b, n, _ = x.shape
    c, s = cfg["hidden_mv_channels"], cfg["hidden_s_channels"]
    heads = cfg["num_heads"]
    in_c = max(cfg["input_inv_dimension"], cfg["input_vector_multiplicity"])
    out_c = max(cfg["output_inv_dimension"], cfg["output_vector_multiplicity"])
    d_h = _round_up(_feat_dim(c, s), 128)
    t = b * n
    assert n % 8 == 0, "demo assumes items-per-batch is a multiple of 8"
    # TODO(synk): no token/padding mask -- ragged n would need a masked softmax.

    mv = embed_inputs(x, cfg)
    tokens = mv.reshape(t, in_c * 16)
    d_in_pad = params["w_in"].shape[0]
    if tokens.shape[1] < d_in_pad:
        tokens = jnp.pad(tokens, ((0, 0), (0, d_in_pad - tokens.shape[1])))

    h = pallas_linear(tokens, params["w_in"], params["b_in"])         # [t, d_h]

    for blk in params["blocks"]:
        # ---- geometric attention sub-layer (pre-norm fused into qkv,
        #      residual fused into the out projection) ----------------------
        qkv = pallas_linear(h, blk["w_qkv"], blk["b_qkv"],
                            norm_masks=params["norm_masks"], c_mv=c, c_s=s)
        attn = pallas_attention(qkv, b, n, heads, d_h)                # [t, H*d_h]
        h = pallas_linear(attn, blk["w_proj"], blk["b_proj"], residual=h)

        # ---- geometric MLP sub-layer (fully fused, incl. norm + residual) --
        h = pallas_mlp_block(h, params["norm_masks"],
                             blk["w_mlp1"], blk["b_mlp1"],
                             params["gp_w"], params["gp_s"], params["gate_bcast"],
                             blk["w_mlp2a"], blk["w_mlp2b"], blk["b_mlp2"],
                             c_mv=c, c_s=s)

    out = pallas_linear(h, params["w_out"], params["b_out"])
    out_mv = out[:, : out_c * 16].reshape(b, n, out_c, 16)
    return extract_outputs(out_mv, cfg)


# ----------------------------------------------------------------------------
if __name__ == "__main__":
    cfg = dict(
        input_inv_dimension=8,
        input_vector_multiplicity=1,
        output_inv_dimension=8,
        output_vector_multiplicity=1,
        hidden_mv_channels=5,        # fixed inside the reference module
        hidden_s_channels=5,         # fixed inside the reference module
        num_blocks=2,
        num_heads=2,                 # TODO(synk): gatr default head config not reproduced
    )
    batch, n_items = 2, 8
    feat_in = cfg["input_inv_dimension"] + 3 * cfg["input_vector_multiplicity"]

    key = jax.random.PRNGKey(0)
    k_x, k_p = jax.random.split(key)
    x = jax.random.normal(k_x, (batch, n_items, feat_in), jnp.float32)
    params = init_gatr_params(k_p, cfg)

    fwd = jax.jit(lambda p, a: gatr_forward(p, a, cfg=cfg))
    out = jax.block_until_ready(fwd(params, x))

    feat_out = cfg["output_inv_dimension"] + 3 * cfg["output_vector_multiplicity"]
    assert out.shape == (batch, n_items, feat_out), out.shape
    assert bool(jnp.all(jnp.isfinite(out)))
    print("KERNEL_OK")
</pallas_src>

<mosaic_0001>
module attributes {stable_mosaic.version = 11 : i64} {
  func.func @_linear_kernel(%arg0: i32, %arg1: i32, %arg2: memref<16x128xf32, #tpu.memory_space<vmem>>, %arg3: memref<128x128xbf16, #tpu.memory_space<vmem>>, %arg4: memref<1x128xf32, #tpu.memory_space<vmem>>, %arg5: memref<16x128xf32, #tpu.memory_space<vmem>>) attributes {dimension_semantics = [#tpu.dimension_semantics<parallel>, #tpu.dimension_semantics<parallel>], iteration_bounds = array<i64: 1, 1>, scalar_prefetch = 0 : i64, scratch_operands = 0 : i64, tpu.core_type = #tpu.core_type<tc>, window_params = [{transform_indices = @transform_0, window_bounds = array<i64: 16, 128>}, {transform_indices = @transform_1, window_bounds = array<i64: 128, 128>}, {transform_indices = @transform_2, window_bounds = array<i64: 1, 128>}, {transform_indices = @transform_3, window_bounds = array<i64: 16, 128>}]} {
    %c0 = arith.constant 0 : index
    %c0_0 = arith.constant 0 : index
    %0 = vector.load %arg2[%c0, %c0_0] : memref<16x128xf32, #tpu.memory_space<vmem>>, vector<16x128xf32>
    %1 = arith.truncf %0 : vector<16x128xf32> to vector<16x128xbf16>
    %c0_1 = arith.constant 0 : index
    %c0_2 = arith.constant 0 : index
    %2 = vector.load %arg3[%c0_1, %c0_2] : memref<128x128xbf16, #tpu.memory_space<vmem>>, vector<128x128xbf16>
    %cst = arith.constant dense<0.000000e+00> : vector<16x128xf32>
    %3 = tpu.matmul %1, %2, %cst {dimension_numbers = #tpu.dot_dimension_numbers<[1], [0], [0], [1], [0, 0, 1, 1], [], []>} : vector<16x128xbf16>, vector<128x128xbf16>, vector<16x128xf32> -> vector<16x128xf32>
    %c0_3 = arith.constant 0 : index
    %c0_4 = arith.constant 0 : index
    %4 = vector.load %arg4[%c0_3, %c0_4] : memref<1x128xf32, #tpu.memory_space<vmem>>, vector<1x128xf32>
    %5 = vector.broadcast %4 : vector<1x128xf32> to vector<16x128xf32>
    %6 = arith.addf %3, %5 : vector<16x128xf32>
    %c0_5 = arith.constant 0 : index
    %c0_6 = arith.constant 0 : index
    %7 = vector.load %arg5[%c0_5, %c0_6] : memref<16x128xf32, #tpu.memory_space<vmem>>, vector<16x128xf32>
    tpu.vector_store %arg5[%c0_5, %c0_6], %6 {strides = array<i32>} : memref<16x128xf32, #tpu.memory_space<vmem>>, vector<16x128xf32>,
    return
  }
  func.func @transform_0(%arg0: i32, %arg1: i32) -> (i32, i32) {
    %c0_i32 = arith.constant 0 : i32
    %c0_i32_0 = arith.constant 0 : i32
    return %arg1, %c0_i32 : i32, i32
  }
  func.func @transform_1(%arg0: i32, %arg1: i32) -> (i32, i32) {
    %c0_i32 = arith.constant 0 : i32
    %c0_i32_0 = arith.constant 0 : i32
    return %c0_i32, %arg0 : i32, i32
  }
  func.func @transform_2(%arg0: i32, %arg1: i32) -> (i32, i32) {
    %c0_i32 = arith.constant 0 : i32
    %c0_i32_0 = arith.constant 0 : i32
    return %c0_i32, %arg0 : i32, i32
  }
  func.func @transform_3(%arg0: i32, %arg1: i32) -> (i32, i32) {
    %c0_i32 = arith.constant 0 : i32
    return %arg1, %arg0 : i32, i32
  }
}

module attributes {stable_mosaic.version = 11 : i64} {
  func.func @_norm_linear_kernel(%arg0: i32, %arg1: i32, %arg2: memref<16x128xf32, #tpu.memory_space<vmem>>, %arg3: memref<3x128xf32, #tpu.memory_space<vmem>>, %arg4: memref<128x768xbf16, #tpu.memory_space<vmem>>, %arg5: memref<1x768xf32, #tpu.memory_space<vmem>>, %arg6: memref<16x768xf32, #tpu.memory_space<vmem>>) attributes {dimension_semantics = [#tpu.dimension_semantics<parallel>, #tpu.dimension_semantics<parallel>], iteration_bounds = array<i64: 1, 1>, scalar_prefetch = 0 : i64, scratch_operands = 0 : i64, tpu.core_type = #tpu.core_type<tc>, window_params = [{transform_indices = @transform_0, window_bounds = array<i64: 16, 128>}, {pipeline_mode = #tpu.pipeline_mode<synchronous>, transform_indices = @transform_1, window_bounds = array<i64: 3, 128>}, {transform_indices = @transform_2, window_bounds = array<i64: 128, 768>}, {transform_indices = @transform_3, window_bounds = array<i64: 1, 768>}, {transform_indices = @transform_4, window_bounds = array<i64: 16, 768>}]} {
    %c0 = arith.constant 0 : index
    %c0_0 = arith.constant 0 : index
    %0 = vector.load %arg2[%c0, %c0_0] : memref<16x128xf32, #tpu.memory_space<vmem>>, vector<16x128xf32>
    %c0_1 = arith.constant 0 : index
    %c0_2 = arith.constant 0 : index
    %1 = vector.load %arg3[%c0_1, %c0_2] : memref<3x128xf32, #tpu.memory_space<vmem>>, vector<1x128xf32>
    %c1 = arith.constant 1 : index
    %c0_3 = arith.constant 0 : index
    %2 = vector.load %arg3[%c1, %c0_3] : memref<3x128xf32, #tpu.memory_space<vmem>>, vector<1x128xf32>
    %c2 = arith.constant 2 : index
    %c0_4 = arith.constant 0 : index
    %3 = vector.load %arg3[%c2, %c0_4] : memref<3x128xf32, #tpu.memory_space<vmem>>, vector<1x128xf32>
    %4 = arith.mulf %0, %0 : vector<16x128xf32>
    %5 = vector.broadcast %1 : vector<1x128xf32> to vector<16x128xf32>
    %6 = arith.mulf %4, %5 : vector<16x128xf32>
    %cst = arith.constant dense<0.000000e+00> : vector<16xf32>
    %7 = vector.multi_reduction <add>, %6, %cst [1] : vector<16x128xf32> to vector<16xf32>
    %8 = vector.shape_cast %7 : vector<16xf32> to vector<16x1xf32>
    %cst_5 = arith.constant 2.000000e-01 : f32
    %9 = vector.broadcast %cst_5 : f32 to vector<16x1xf32>
    %10 = arith.mulf %8, %9 : vector<16x1xf32>
    %cst_6 = arith.constant 9.99999997E-7 : f32
    %11 = vector.broadcast %cst_6 : f32 to vector<16x1xf32>
    %12 = arith.addf %10, %11 : vector<16x1xf32>
    %13 = math.rsqrt %12 : vector<16x1xf32>
    %14 = vector.broadcast %2 : vector<1x128xf32> to vector<16x128xf32>
    %15 = vector.broadcast %13 : vector<16x1xf32> to vector<16x128xf32>
    %16 = arith.mulf %14, %15 : vector<16x128xf32>
    %17 = vector.broadcast %3 : vector<1x128xf32> to vector<16x128xf32>
    %18 = arith.mulf %4, %17 : vector<16x128xf32>
    %cst_7 = arith.constant dense<0.000000e+00> : vector<16xf32>
    %19 = vector.multi_reduction <add>, %18, %cst_7 [1] : vector<16x128xf32> to vector<16xf32>
    %20 = vector.shape_cast %19 : vector<16xf32> to vector<16x1xf32>
    %cst_8 = arith.constant 2.000000e-01 : f32
    %21 = vector.broadcast %cst_8 : f32 to vector<16x1xf32>
    %22 = arith.mulf %20, %21 : vector<16x1xf32>
    %cst_9 = arith.constant 9.99999997E-7 : f32
    %23 = vector.broadcast %cst_9 : f32 to vector<16x1xf32>
    %24 = arith.addf %22, %23 : vector<16x1xf32>
    %25 = math.rsqrt %24 : vector<16x1xf32>
    %26 = vector.broadcast %3 : vector<1x128xf32> to vector<16x128xf32>
    %27 = vector.broadcast %25 : vector<16x1xf32> to vector<16x128xf32>
    %28 = arith.mulf %26, %27 : vector<16x128xf32>
    %29 = arith.addf %16, %28 : vector<16x128xf32>
    %30 = arith.mulf %0, %29 : vector<16x128xf32>
    %31 = arith.truncf %30 : vector<16x128xf32> to vector<16x128xbf16>
    %c0_10 = arith.constant 0 : index
    %c0_11 = arith.constant 0 : index
    %32 = vector.load %arg4[%c0_10, %c0_11] : memref<128x768xbf16, #tpu.memory_space<vmem>>, vector<128x768xbf16>
    %cst_12 = arith.constant dense<0.000000e+00> : vector<16x768xf32>
    %33 = tpu.matmul %31, %32, %cst_12 {dimension_numbers = #tpu.dot_dimension_numbers<[1], [0], [0], [1], [0, 0, 1, 1], [], []>} : vector<16x128xbf16>, vector<128x768xbf16>, vector<16x768xf32> -> vector<16x768xf32>
    %c0_13 = arith.constant 0 : index
    %c0_14 = arith.constant 0 : index
    %34 = vector.load %arg5[%c0_13, %c0_14] : memref<1x768xf32, #tpu.memory_space<vmem>>, vector<1x768xf32>
    %35 = vector.broadcast %34 : vector<1x768xf32> to vector<16x768xf32>
    %36 = arith.addf %33, %35 : vector<16x768xf32>
    %c0_15 = arith.constant 0 : index
    %c0_16 = arith.constant 0 : index
    %37 = vector.load %arg6[%c0_15, %c0_16] : memref<16x768xf32, #tpu.memory_space<vmem>>, vector<16x768xf32>
    tpu.vector_store %arg6[%c0_15, %c0_16], %36 {strides = array<i32>} : memref<16x768xf32, #tpu.memory_space<vmem>>, vector<16x768xf32>,
    return
  }
  func.func @transform_0(%arg0: i32, %arg1: i32) -> (i32, i32) {
    %c0_i32 = arith.constant 0 : i32
    %c0_i32_0 = arith.constant 0 : i32
    return %arg1, %c0_i32 : i32, i32
  }
  func.func @transform_1(%arg0: i32, %arg1: i32) -> (i32, i32) {
    %c0_i32 = arith.constant 0 : i32
    %c0_i32_0 = arith.constant 0 : i32
    %c0_i32_1 = arith.constant 0 : i32
    return %c0_i32, %c0_i32_0 : i32, i32
  }
  func.func @transform_2(%arg0: i32, %arg1: i32) -> (i32, i32) {
    %c0_i32 = arith.constant 0 : i32
    %c0_i32_0 = arith.constant 0 : i32
    return %c0_i32, %arg0 : i32, i32
  }
  func.func @transform_3(%arg0: i32, %arg1: i32) -> (i32, i32) {
    %c0_i32 = arith.constant 0 : i32
    %c0_i32_0 = arith.constant 0 : i32
    return %c0_i32, %arg0 : i32, i32
  }
  func.func @transform_4(%arg0: i32, %arg1: i32) -> (i32, i32) {
    %c0_i32 = arith.constant 0 : i32
    return %arg1, %arg0 : i32, i32
  }
}

module attributes {stable_mosaic.version = 11 : i64} {
  func.func @_attn_kernel(%arg0: i32, %arg1: i32, %arg2: memref<8x128xf32, #tpu.memory_space<vmem>>, %arg3: memref<8x128xf32, #tpu.memory_space<vmem>>, %arg4: memref<8x128xf32, #tpu.memory_space<vmem>>, %arg5: memref<8x128xf32, #tpu.memory_space<vmem>>) attributes {dimension_semantics = [#tpu.dimension_semantics<parallel>, #tpu.dimension_semantics<parallel>], iteration_bounds = array<i64: 2, 2>, scalar_prefetch = 0 : i64, scratch_operands = 0 : i64, tpu.core_type = #tpu.core_type<tc>, window_params = [{transform_indices = @transform_0, window_bounds = array<i64: 8, 128>}, {transform_indices = @transform_1, window_bounds = array<i64: 8, 128>}, {transform_indices = @transform_2, window_bounds = array<i64: 8, 128>}, {transform_indices = @transform_3, window_bounds = array<i64: 8, 128>}]} {
    %c0 = arith.constant 0 : index
    %c0_0 = arith.constant 0 : index
    %0 = vector.load %arg2[%c0, %c0_0] : memref<8x128xf32, #tpu.memory_space<vmem>>, vector<8x128xf32>
    %1 = arith.truncf %0 : vector<8x128xf32> to vector<8x128xbf16>
    %c0_1 = arith.constant 0 : index
    %c0_2 = arith.constant 0 : index
    %2 = vector.load %arg3[%c0_1, %c0_2] : memref<8x128xf32, #tpu.memory_space<vmem>>, vector<8x128xf32>
    %3 = arith.truncf %2 : vector<8x128xf32> to vector<8x128xbf16>
    %cst = arith.constant dense<0.000000e+00> : vector<8x8xf32>
    %4 = tpu.matmul %1, %3, %cst {dimension_numbers = #tpu.dot_dimension_numbers<[1], [1], [0], [0], [0, 0, 1, 0], [], []>} : vector<8x128xbf16>, vector<8x128xbf16>, vector<8x8xf32> -> vector<8x8xf32>
    %cst_3 = arith.constant dense<0xFF800000> : vector<8xf32>
    %5 = vector.multi_reduction <maximumf>, %4, %cst_3 [1] : vector<8x8xf32> to vector<8xf32>
    %6 = vector.shape_cast %5 : vector<8xf32> to vector<8x1xf32>
    %7 = vector.broadcast %6 : vector<8x1xf32> to vector<8x8xf32>
    %8 = arith.subf %4, %7 : vector<8x8xf32>
    %9 = math.exp %8 : vector<8x8xf32>
    %cst_4 = arith.constant dense<0.000000e+00> : vector<8xf32>
    %10 = vector.multi_reduction <add>, %9, %cst_4 [1] : vector<8x8xf32> to vector<8xf32>
    %11 = vector.shape_cast %10 : vector<8xf32> to vector<8x1xf32>
    %12 = arith.truncf %9 : vector<8x8xf32> to vector<8x8xbf16>
    %c0_5 = arith.constant 0 : index
    %c0_6 = arith.constant 0 : index
    %13 = vector.load %arg4[%c0_5, %c0_6] : memref<8x128xf32, #tpu.memory_space<vmem>>, vector<8x128xf32>
    %14 = arith.truncf %13 : vector<8x128xf32> to vector<8x128xbf16>
    %cst_7 = arith.constant dense<0.000000e+00> : vector<8x128xf32>
    %15 = tpu.matmul %12, %14, %cst_7 {dimension_numbers = #tpu.dot_dimension_numbers<[1], [0], [0], [1], [0, 0, 1, 1], [], []>} : vector<8x8xbf16>, vector<8x128xbf16>, vector<8x128xf32> -> vector<8x128xf32>
    %16 = tpu.reciprocal %11 {approx = true} : vector<8x1xf32> -> vector<8x1xf32>
    %17 = vector.broadcast %16 : vector<8x1xf32> to vector<8x128xf32>
    %18 = arith.mulf %15, %17 : vector<8x128xf32>
    %c0_8 = arith.constant 0 : index
    %c0_9 = arith.constant 0 : index
    %19 = vector.load %arg5[%c0_8, %c0_9] : memref<8x128xf32, #tpu.memory_space<vmem>>, vector<8x128xf32>
    tpu.vector_store %arg5[%c0_8, %c0_9], %18 {strides = array<i32>} : memref<8x128xf32, #tpu.memory_space<vmem>>, vector<8x128xf32>,
    return
  }
  func.func @transform_0(%arg0: i32, %arg1: i32) -> (i32, i32) {
    %c0_i32 = arith.constant 0 : i32
    return %arg0, %arg1 : i32, i32
  }
  func.func @transform_1(%arg0: i32, %arg1: i32) -> (i32, i32) {
    %c2_i32 = arith.constant 2 : i32
    %0 = arith.addi %c2_i32, %arg1 : i32
    %c0_i32 = arith.constant 0 : i32
    return %arg0, %0 : i32, i32
  }
  func.func @transform_2(%arg0: i32, %arg1: i32) -> (i32, i32) {
    %c4_i32 = arith.constant 4 : i32
    %0 = arith.addi %c4_i32, %arg1 : i32
    %c0_i32 = arith.constant 0 : i32
    return %arg0, %0 : i32, i32
  }
  func.func @transform_3(%arg0: i32, %arg1: i32) -> (i32, i32) {
    %c0_i32 = arith.constant 0 : i32
    return %arg0, %arg1 : i32, i32
  }
}

module attributes {stable_mosaic.version = 11 : i64} {
  func.func @_linear_res_kernel(%arg0: i32, %arg1: i32, %arg2: memref<16x256xf32, #tpu.memory_space<vmem>>, %arg3: memref<256x128xbf16, #tpu.memory_space<vmem>>, %arg4: memref<1x128xf32, #tpu.memory_space<vmem>>, %arg5: memref<16x128xf32, #tpu.memory_space<vmem>>, %arg6: memref<16x128xf32, #tpu.memory_space<vmem>>) attributes {dimension_semantics = [#tpu.dimension_semantics<parallel>, #tpu.dimension_semantics<parallel>], iteration_bounds = array<i64: 1, 1>, scalar_prefetch = 0 : i64, scratch_operands = 0 : i64, tpu.core_type = #tpu.core_type<tc>, window_params = [{transform_indices = @transform_0, window_bounds = array<i64: 16, 256>}, {transform_indices = @transform_1, window_bounds = array<i64: 256, 128>}, {transform_indices = @transform_2, window_bounds = array<i64: 1, 128>}, {transform_indices = @transform_3, window_bounds = array<i64: 16, 128>}, {transform_indices = @transform_4, window_bounds = array<i64: 16, 128>}]} {
    %c0 = arith.constant 0 : index
    %c0_0 = arith.constant 0 : index
    %0 = vector.load %arg2[%c0, %c0_0] : memref<16x256xf32, #tpu.memory_space<vmem>>, vector<16x256xf32>
    %1 = arith.truncf %0 : vector<16x256xf32> to vector<16x256xbf16>
    %c0_1 = arith.constant 0 : index
    %c0_2 = arith.constant 0 : index
    %2 = vector.load %arg3[%c0_1, %c0_2] : memref<256x128xbf16, #tpu.memory_space<vmem>>, vector<256x128xbf16>
    %cst = arith.constant dense<0.000000e+00> : vector<16x128xf32>
    %3 = tpu.matmul %1, %2, %cst {dimension_numbers = #tpu.dot_dimension_numbers<[1], [0], [0], [1], [0, 0, 1, 1], [], []>} : vector<16x256xbf16>, vector<256x128xbf16>, vector<16x128xf32> -> vector<16x128xf32>
    %c0_3 = arith.constant 0 : index
    %c0_4 = arith.constant 0 : index
    %4 = vector.load %arg4[%c0_3, %c0_4] : memref<1x128xf32, #tpu.memory_space<vmem>>, vector<1x128xf32>
    %5 = vector.broadcast %4 : vector<1x128xf32> to vector<16x128xf32>
    %6 = arith.addf %3, %5 : vector<16x128xf32>
    %c0_5 = arith.constant 0 : index
    %c0_6 = arith.constant 0 : index
    %7 = vector.load %arg5[%c0_5, %c0_6] : memref<16x128xf32, #tpu.memory_space<vmem>>, vector<16x128xf32>
    %8 = arith.addf %6, %7 : vector<16x128xf32>
    %c0_7 = arith.constant 0 : index
    %c0_8 = arith.constant 0 : index
    %9 = vector.load %arg6[%c0_7, %c0_8] : memref<16x128xf32, #tpu.memory_space<vmem>>, vector<16x128xf32>
    tpu.vector_store %arg6[%c0_7, %c0_8], %8 {strides = array<i32>} : memref<16x128xf32, #tpu.memory_space<vmem>>, vector<16x128xf32>,
    return
  }
  func.func @transform_0(%arg0: i32, %arg1: i32) -> (i32, i32) {
    %c0_i32 = arith.constant 0 : i32
    %c0_i32_0 = arith.constant 0 : i32
    return %arg1, %c0_i32 : i32, i32
  }
  func.func @transform_1(%arg0: i32, %arg1: i32) -> (i32, i32) {
    %c0_i32 = arith.constant 0 : i32
    %c0_i32_0 = arith.constant 0 : i32
    return %c0_i32, %arg0 : i32, i32
  }
  func.func @transform_2(%arg0: i32, %arg1: i32) -> (i32, i32) {
    %c0_i32 = arith.constant 0 : i32
    %c0_i32_0 = arith.constant 0 : i32
    return %c0_i32, %arg0 : i32, i32
  }
  func.func @transform_3(%arg0: i32, %arg1: i32) -> (i32, i32) {
    %c0_i32 = arith.constant 0 : i32
    return %arg1, %arg0 : i32, i32
  }
  func.func @transform_4(%arg0: i32, %arg1: i32) -> (i32, i32) {
    %c0_i32 = arith.constant 0 : i32
    return %arg1, %arg0 : i32, i32
  }
}

module attributes {stable_mosaic.version = 11 : i64} {
  func.func @_mlp_block_kernel(%arg0: i32, %arg1: memref<16x128xf32, #tpu.memory_space<vmem>>, %arg2: memref<3x128xf32, #tpu.memory_space<vmem>>, %arg3: memref<128x256xbf16, #tpu.memory_space<vmem>>, %arg4: memref<1x256xf32, #tpu.memory_space<vmem>>, %arg5: memref<256x2048xbf16, #tpu.memory_space<vmem>>, %arg6: memref<256x2048xbf16, #tpu.memory_space<vmem>>, %arg7: memref<128x128xbf16, #tpu.memory_space<vmem>>, %arg8: memref<128x128xbf16, #tpu.memory_space<vmem>>, %arg9: memref<128x128xbf16, #tpu.memory_space<vmem>>, %arg10: memref<1x128xf32, #tpu.memory_space<vmem>>, %arg11: memref<16x128xf32, #tpu.memory_space<vmem>>) attributes {dimension_semantics = [#tpu.dimension_semantics<parallel>], iteration_bounds = array<i64: 1>, scalar_prefetch = 0 : i64, scratch_operands = 0 : i64, tpu.core_type = #tpu.core_type<tc>, window_params = [{transform_indices = @transform_0, window_bounds = array<i64: 16, 128>}, {pipeline_mode = #tpu.pipeline_mode<synchronous>, transform_indices = @transform_1, window_bounds = array<i64: 3, 128>}, {pipeline_mode = #tpu.pipeline_mode<synchronous>, transform_indices = @transform_2, window_bounds = array<i64: 128, 256>}, {pipeline_mode = #tpu.pipeline_mode<synchronous>, transform_indices = @transform_3, window_bounds = array<i64: 1, 256>}, {pipeline_mode = #tpu.pipeline_mode<synchronous>, transform_indices = @transform_4, window_bounds = array<i64: 256, 2048>}, {pipeline_mode = #tpu.pipeline_mode<synchronous>, transform_indices = @transform_5, window_bounds = array<i64: 256, 2048>}, {pipeline_mode = #tpu.pipeline_mode<synchronous>, transform_indices = @transform_6, window_bounds = array<i64: 128, 128>}, {pipeline_mode = #tpu.pipeline_mode<synchronous>, transform_indices = @transform_7, window_bounds = array<i64: 128, 128>}, {pipeline_mode = #tpu.pipeline_mode<synchronous>, transform_indices = @transform_8, window_bounds = array<i64: 128, 128>}, {pipeline_mode = #tpu.pipeline_mode<synchronous>, transform_indices = @transform_9, window_bounds = array<i64: 1, 128>}, {transform_indices = @transform_10, window_bounds = array<i64: 16, 128>}]} {
    %c0 = arith.constant 0 : index
    %c0_0 = arith.constant 0 : index
    %0 = vector.load %arg1[%c0, %c0_0] : memref<16x128xf32, #tpu.memory_space<vmem>>, vector<16x128xf32>
    %c0_1 = arith.constant 0 : index
    %c0_2 = arith.constant 0 : index
    %1 = vector.load %arg2[%c0_1, %c0_2] : memref<3x128xf32, #tpu.memory_space<vmem>>, vector<1x128xf32>
    %c1 = arith.constant 1 : index
    %c0_3 = arith.constant 0 : index
    %2 = vector.load %arg2[%c1, %c0_3] : memref<3x128xf32, #tpu.memory_space<vmem>>, vector<1x128xf32>
    %c2 = arith.constant 2 : index
    %c0_4 = arith.constant 0 : index
    %3 = vector.load %arg2[%c2, %c0_4] : memref<3x128xf32, #tpu.memory_space<vmem>>, vector<1x128xf32>
    %4 = arith.mulf %0, %0 : vector<16x128xf32>
    %5 = vector.broadcast %1 : vector<1x128xf32> to vector<16x128xf32>
    %6 = arith.mulf %4, %5 : vector<16x128xf32>
    %cst = arith.constant dense<0.000000e+00> : vector<16xf32>
    %7 = vector.multi_reduction <add>, %6, %cst [1] : vector<16x128xf32> to vector<16xf32>
    %8 = vector.shape_cast %7 : vector<16xf32> to vector<16x1xf32>
    %cst_5 = arith.constant 2.000000e-01 : f32
    %9 = vector.broadcast %cst_5 : f32 to vector<16x1xf32>
    %10 = arith.mulf %8, %9 : vector<16x1xf32>
    %cst_6 = arith.constant 9.99999997E-7 : f32
    %11 = vector.broadcast %cst_6 : f32 to vector<16x1xf32>
    %12 = arith.addf %10, %11 : vector<16x1xf32>
    %13 = math.rsqrt %12 : vector<16x1xf32>
    %14 = vector.broadcast %2 : vector<1x128xf32> to vector<16x128xf32>
    %15 = vector.broadcast %13 : vector<16x1xf32> to vector<16x128xf32>
    %16 = arith.mulf %14, %15 : vector<16x128xf32>
    %17 = vector.broadcast %3 : vector<1x128xf32> to vector<16x128xf32>
    %18 = arith.mulf %4, %17 : vector<16x128xf32>
    %cst_7 = arith.constant dense<0.000000e+00> : vector<16xf32>
    %19 = vector.multi_reduction <add>, %18, %cst_7 [1] : vector<16x128xf32> to vector<16xf32>
    %20 = vector.shape_cast %19 : vector<16xf32> to vector<16x1xf32>
    %cst_8 = arith.constant 2.000000e-01 : f32
    %21 = vector.broadcast %cst_8 : f32 to vector<16x1xf32>
    %22 = arith.mulf %20, %21 : vector<16x1xf32>
    %cst_9 = arith.constant 9.99999997E-7 : f32
    %23 = vector.broadcast %cst_9 : f32 to vector<16x1xf32>
    %24 = arith.addf %22, %23 : vector<16x1xf32>
    %25 = math.rsqrt %24 : vector<16x1xf32>
    %26 = vector.broadcast %3 : vector<1x128xf32> to vector<16x128xf32>
    %27 = vector.broadcast %25 : vector<16x1xf32> to vector<16x128xf32>
    %28 = arith.mulf %26, %27 : vector<16x128xf32>
    %29 = arith.addf %16, %28 : vector<16x128xf32>
    %30 = arith.mulf %0, %29 : vector<16x128xf32>
    %31 = arith.truncf %30 : vector<16x128xf32> to vector<16x128xbf16>
    %c0_10 = arith.constant 0 : index
    %c0_11 = arith.constant 0 : index
    %32 = vector.load %arg3[%c0_10, %c0_11] : memref<128x256xbf16, #tpu.memory_space<vmem>>, vector<128x256xbf16>
    %cst_12 = arith.constant dense<0.000000e+00> : vector<16x256xf32>
    %33 = tpu.matmul %31, %32, %cst_12 {dimension_numbers = #tpu.dot_dimension_numbers<[1], [0], [0], [1], [0, 0, 1, 1], [], []>} : vector<16x128xbf16>, vector<128x256xbf16>, vector<16x256xf32> -> vector<16x256xf32>
    %c0_13 = arith.constant 0 : index
    %c0_14 = arith.constant 0 : index
    %34 = vector.load %arg4[%c0_13, %c0_14] : memref<1x256xf32, #tpu.memory_space<vmem>>, vector<1x256xf32>
    %35 = vector.broadcast %34 : vector<1x256xf32> to vector<16x256xf32>
    %36 = arith.addf %33, %35 : vector<16x256xf32>
    %37 = arith.truncf %36 : vector<16x256xf32> to vector<16x256xbf16>
    %c0_15 = arith.constant 0 : index
    %c0_16 = arith.constant 0 : index
    %38 = vector.load %arg5[%c0_15, %c0_16] : memref<256x2048xbf16, #tpu.memory_space<vmem>>, vector<256x2048xbf16>
    %cst_17 = arith.constant dense<0.000000e+00> : vector<16x2048xf32>
    %39 = tpu.matmul %37, %38, %cst_17 {dimension_numbers = #tpu.dot_dimension_numbers<[1], [0], [0], [1], [0, 0, 1, 1], [], []>} : vector<16x256xbf16>, vector<256x2048xbf16>, vector<16x2048xf32> -> vector<16x2048xf32>
    %c0_18 = arith.constant 0 : index
    %c0_19 = arith.constant 0 : index
    %40 = vector.load %arg6[%c0_18, %c0_19] : memref<256x2048xbf16, #tpu.memory_space<vmem>>, vector<256x2048xbf16>
    %cst_20 = arith.constant dense<0.000000e+00> : vector<16x2048xf32>
    %41 = tpu.matmul %37, %40, %cst_20 {dimension_numbers = #tpu.dot_dimension_numbers<[1], [0], [0], [1], [0, 0, 1, 1], [], []>} : vector<16x256xbf16>, vector<256x2048xbf16>, vector<16x2048xf32> -> vector<16x2048xf32>
    %42 = arith.mulf %39, %41 : vector<16x2048xf32>
    %43 = vector.extract_strided_slice %42 {offsets = [0, 0], sizes = [16, 128], strides = [1, 1]} : vector<16x2048xf32> to vector<16x128xf32>
    %44 = vector.extract_strided_slice %42 {offsets = [0, 128], sizes = [16, 128], strides = [1, 1]} : vector<16x2048xf32> to vector<16x128xf32>
    %45 = arith.addf %43, %44 : vector<16x128xf32>
    %46 = vector.extract_strided_slice %42 {offsets = [0, 256], sizes = [16, 128], strides = [1, 1]} : vector<16x2048xf32> to vector<16x128xf32>
    %47 = arith.addf %45, %46 : vector<16x128xf32>
    %48 = vector.extract_strided_slice %42 {offsets = [0, 384], sizes = [16, 128], strides = [1, 1]} : vector<16x2048xf32> to vector<16x128xf32>
    %49 = arith.addf %47, %48 : vector<16x128xf32>
    %50 = vector.extract_strided_slice %42 {offsets = [0, 512], sizes = [16, 128], strides = [1, 1]} : vector<16x2048xf32> to vector<16x128xf32>
    %51 = arith.addf %49, %50 : vector<16x128xf32>
    %52 = vector.extract_strided_slice %42 {offsets = [0, 640], sizes = [16, 128], strides = [1, 1]} : vector<16x2048xf32> to vector<16x128xf32>
    %53 = arith.addf %51, %52 : vector<16x128xf32>
    %54 = vector.extract_strided_slice %42 {offsets = [0, 768], sizes = [16, 128], strides = [1, 1]} : vector<16x2048xf32> to vector<16x128xf32>
    %55 = arith.addf %53, %54 : vector<16x128xf32>
    %56 = vector.extract_strided_slice %42 {offsets = [0, 896], sizes = [16, 128], strides = [1, 1]} : vector<16x2048xf32> to vector<16x128xf32>
    %57 = arith.addf %55, %56 : vector<16x128xf32>
    %58 = vector.extract_strided_slice %42 {offsets = [0, 1024], sizes = [16, 128], strides = [1, 1]} : vector<16x2048xf32> to vector<16x128xf32>
    %59 = arith.addf %57, %58 : vector<16x128xf32>
    %60 = vector.extract_strided_slice %42 {offsets = [0, 1152], sizes = [16, 128], strides = [1, 1]} : vector<16x2048xf32> to vector<16x128xf32>
    %61 = arith.addf %59, %60 : vector<16x128xf32>
    %62 = vector.extract_strided_slice %42 {offsets = [0, 1280], sizes = [16, 128], strides = [1, 1]} : vector<16x2048xf32> to vector<16x128xf32>
    %63 = arith.addf %61, %62 : vector<16x128xf32>
    %64 = vector.extract_strided_slice %42 {offsets = [0, 1408], sizes = [16, 128], strides = [1, 1]} : vector<16x2048xf32> to vector<16x128xf32>
    %65 = arith.addf %63, %64 : vector<16x128xf32>
    %66 = vector.extract_strided_slice %42 {offsets = [0, 1536], sizes = [16, 128], strides = [1, 1]} : vector<16x2048xf32> to vector<16x128xf32>
    %67 = arith.addf %65, %66 : vector<16x128xf32>
    %68 = vector.extract_strided_slice %42 {offsets = [0, 1664], sizes = [16, 128], strides = [1, 1]} : vector<16x2048xf32> to vector<16x128xf32>
    %69 = arith.addf %67, %68 : vector<16x128xf32>
    %70 = vector.extract_strided_slice %42 {offsets = [0, 1792], sizes = [16, 128], strides = [1, 1]} : vector<16x2048xf32> to vector<16x128xf32>
    %71 = arith.addf %69, %70 : vector<16x128xf32>
    %72 = vector.extract_strided_slice %42 {offsets = [0, 1920], sizes = [16, 128], strides = [1, 1]} : vector<16x2048xf32> to vector<16x128xf32>
    %73 = arith.addf %71, %72 : vector<16x128xf32>
    %74 = arith.truncf %73 : vector<16x128xf32> to vector<16x128xbf16>
    %c0_21 = arith.constant 0 : index
    %c0_22 = arith.constant 0 : index
    %75 = vector.load %arg7[%c0_21, %c0_22] : memref<128x128xbf16, #tpu.memory_space<vmem>>, vector<128x128xbf16>
    %cst_23 = arith.constant dense<0.000000e+00> : vector<16x128xf32>
    %76 = tpu.matmul %74, %75, %cst_23 {dimension_numbers = #tpu.dot_dimension_numbers<[1], [0], [0], [1], [0, 0, 1, 1], [], []>} : vector<16x128xbf16>, vector<128x128xbf16>, vector<16x128xf32> -> vector<16x128xf32>
    %77 = arith.mulf %76, %76 : vector<16x128xf32>
    %78 = arith.mulf %76, %77 : vector<16x128xf32>
    %cst_24 = arith.constant 4.471500e-02 : f32
    %79 = vector.broadcast %cst_24 : f32 to vector<16x128xf32>
    %80 = arith.mulf %79, %78 : vector<16x128xf32>
    %81 = arith.addf %76, %80 : vector<16x128xf32>
    %cst_25 = arith.constant 0.797884583 : f32
    %82 = vector.broadcast %cst_25 : f32 to vector<16x128xf32>
    %83 = arith.mulf %82, %81 : vector<16x128xf32>
    %84 = math.tanh %83 : vector<16x128xf32>
    %cst_26 = arith.constant 1.000000e+00 : f32
    %85 = vector.broadcast %cst_26 : f32 to vector<16x128xf32>
    %86 = arith.addf %85, %84 : vector<16x128xf32>
    %cst_27 = arith.constant 5.000000e-01 : f32
    %87 = vector.broadcast %cst_27 : f32 to vector<16x128xf32>
    %88 = arith.mulf %87, %86 : vector<16x128xf32>
    %89 = arith.mulf %76, %88 : vector<16x128xf32>
    %90 = arith.mulf %73, %89 : vector<16x128xf32>
    %91 = arith.truncf %90 : vector<16x128xf32> to vector<16x128xbf16>
    %92 = vector.extract_strided_slice %36 {offsets = [0, 128], sizes = [16, 128], strides = [1, 1]} : vector<16x256xf32> to vector<16x128xf32>
    %93 = arith.mulf %92, %92 : vector<16x128xf32>
    %94 = arith.mulf %92, %93 : vector<16x128xf32>
    %cst_28 = arith.constant 4.471500e-02 : f32
    %95 = vector.broadcast %cst_28 : f32 to vector<16x128xf32>
    %96 = arith.mulf %95, %94 : vector<16x128xf32>
    %97 = arith.addf %92, %96 : vector<16x128xf32>
    %cst_29 = arith.constant 0.797884583 : f32
    %98 = vector.broadcast %cst_29 : f32 to vector<16x128xf32>
    %99 = arith.mulf %98, %97 : vector<16x128xf32>
    %100 = math.tanh %99 : vector<16x128xf32>
    %cst_30 = arith.constant 1.000000e+00 : f32
    %101 = vector.broadcast %cst_30 : f32 to vector<16x128xf32>
    %102 = arith.addf %101, %100 : vector<16x128xf32>
    %cst_31 = arith.constant 5.000000e-01 : f32
    %103 = vector.broadcast %cst_31 : f32 to vector<16x128xf32>
    %104 = arith.mulf %103, %102 : vector<16x128xf32>
    %105 = arith.mulf %92, %104 : vector<16x128xf32>
    %106 = arith.truncf %105 : vector<16x128xf32> to vector<16x128xbf16>
    %c0_32 = arith.constant 0 : index
    %c0_33 = arith.constant 0 : index
    %107 = vector.load %arg8[%c0_32, %c0_33] : memref<128x128xbf16, #tpu.memory_space<vmem>>, vector<128x128xbf16>
    %cst_34 = arith.constant dense<0.000000e+00> : vector<16x128xf32>
    %108 = tpu.matmul %91, %107, %cst_34 {dimension_numbers = #tpu.dot_dimension_numbers<[1], [0], [0], [1], [0, 0, 1, 1], [], []>} : vector<16x128xbf16>, vector<128x128xbf16>, vector<16x128xf32> -> vector<16x128xf32>
    %c0_35 = arith.constant 0 : index
    %c0_36 = arith.constant 0 : index
    %109 = vector.load %arg9[%c0_35, %c0_36] : memref<128x128xbf16, #tpu.memory_space<vmem>>, vector<128x128xbf16>
    %cst_37 = arith.constant dense<0.000000e+00> : vector<16x128xf32>
    %110 = tpu.matmul %106, %109, %cst_37 {dimension_numbers = #tpu.dot_dimension_numbers<[1], [0], [0], [1], [0, 0, 1, 1], [], []>} : vector<16x128xbf16>, vector<128x128xbf16>, vector<16x128xf32> -> vector<16x128xf32>
    %111 = arith.addf %108, %110 : vector<16x128xf32>
    %c0_38 = arith.constant 0 : index
    %c0_39 = arith.constant 0 : index
    %112 = vector.load %arg10[%c0_38, %c0_39] : memref<1x128xf32, #tpu.memory_space<vmem>>, vector<1x128xf32>
    %113 = vector.broadcast %112 : vector<1x128xf32> to vector<16x128xf32>
    %114 = arith.addf %111, %113 : vector<16x128xf32>
    %115 = arith.addf %0, %114 : vector<16x128xf32>
    %c0_40 = arith.constant 0 : index
    %c0_41 = arith.constant 0 : index
    %116 = vector.load %arg11[%c0_40, %c0_41] : memref<16x128xf32, #tpu.memory_space<vmem>>, vector<16x128xf32>
    tpu.vector_store %arg11[%c0_40, %c0_41], %115 {strides = array<i32>} : memref<16x128xf32, #tpu.memory_space<vmem>>, vector<16x128xf32>,
    return
  }
  func.func @transform_0(%arg0: i32) -> (i32, i32) {
    %c0_i32 = arith.constant 0 : i32
    %c0_i32_0 = arith.constant 0 : i32
    return %arg0, %c0_i32 : i32, i32
  }
  func.func @transform_1(%arg0: i32) -> (i32, i32) {
    %c0_i32 = arith.constant 0 : i32
    %c0_i32_0 = arith.constant 0 : i32
    %c0_i32_1 = arith.constant 0 : i32
    return %c0_i32, %c0_i32_0 : i32, i32
  }
  func.func @transform_2(%arg0: i32) -> (i32, i32) {
    %c0_i32 = arith.constant 0 : i32
    %c0_i32_0 = arith.constant 0 : i32
    %c0_i32_1 = arith.constant 0 : i32
    return %c0_i32, %c0_i32_0 : i32, i32
  }
  func.func @transform_3(%arg0: i32) -> (i32, i32) {
    %c0_i32 = arith.constant 0 : i32
    %c0_i32_0 = arith.constant 0 : i32
    %c0_i32_1 = arith.constant 0 : i32
    return %c0_i32, %c0_i32_0 : i32, i32
  }
  func.func @transform_4(%arg0: i32) -> (i32, i32) {
    %c0_i32 = arith.constant 0 : i32
    %c0_i32_0 = arith.constant 0 : i32
    %c0_i32_1 = arith.constant 0 : i32
    return %c0_i32, %c0_i32_0 : i32, i32
  }
  func.func @transform_5(%arg0: i32) -> (i32, i32) {
    %c0_i32 = arith.constant 0 : i32
    %c0_i32_0 = arith.constant 0 : i32
    %c0_i32_1 = arith.constant 0 : i32
    return %c0_i32, %c0_i32_0 : i32, i32
  }
  func.func @transform_6(%arg0: i32) -> (i32, i32) {
    %c0_i32 = arith.constant 0 : i32
    %c0_i32_0 = arith.constant 0 : i32
    %c0_i32_1 = arith.constant 0 : i32
    return %c0_i32, %c0_i32_0 : i32, i32
  }
  func.func @transform_7(%arg0: i32) -> (i32, i32) {
    %c0_i32 = arith.constant 0 : i32
    %c0_i32_0 = arith.constant 0 : i32
    %c0_i32_1 = arith.constant 0 : i32
    return %c0_i32, %c0_i32_0 : i32, i32
  }
  func.func @transform_8(%arg0: i32) -> (i32, i32) {
    %c0_i32 = arith.constant 0 : i32
    %c0_i32_0 = arith.constant 0 : i32
    %c0_i32_1 = arith.constant 0 : i32
    return %c0_i32, %c0_i32_0 : i32, i32
  }
  func.func @transform_9(%arg0: i32) -> (i32, i32) {
    %c0_i32 = arith.constant 0 : i32
    %c0_i32_0 = arith.constant 0 : i32
    %c0_i32_1 = arith.constant 0 : i32
    return %c0_i32, %c0_i32_0 : i32, i32
  }
  func.func @transform_10(%arg0: i32) -> (i32, i32) {
    %c0_i32 = arith.constant 0 : i32
    %c0_i32_0 = arith.constant 0 : i32
    return %arg0, %c0_i32 : i32, i32
  }
}

</mosaic_0001>

<llo_original>
// kernel: _lambda_.10
$region0: #{_lambda_.10}
  #allocation0 [shape = 'u32[]', space=smem, size = 0x4, offset = 0x4, fixed_abs, tag = 'smem constant byte address 0x4 - core index']
  #allocation1 [shape = 'u32[72,128]{1,0:T(1,128)}', space=vmem, size = 0x9000, scoped, tag = 'internal scratch']
  %s0 = inlined_call_operand.vmem [shape: f32[16,128], index: 0, kind: input, shape index: {}]
  %s1 = inlined_call_operand.vmem [shape: bf16[128,128], index: 1, kind: input, shape index: {}]
  %s2 = inlined_call_operand.vmem [shape: f32[1,128], index: 2, kind: input, shape index: {}]
  %s3 = inlined_call_operand.vmem [shape: f32[16,128], index: 3, kind: output, shape index: {}]
  %s4 = sld [smem:[#allocation0]]
  $region22: #{_lambda_.10} parent=0
    _
  %s6 = ssub.s32 1, %s4
  %s7 = scalar_select 0, %s6, %s4
  // Predicated region
  $region2: #{_lambda_.10} parent=0 // pred_check
    _
  $region3: #{_lambda_.10} parent=0 // pred_check_branch
    %9 = sbr.rel (0) target = $region5
  $region4: #{_lambda_.10} parent=0 // pred_region
    _
  $region5: #{_lambda_.10} parent=0 // pred_fallthru
    _
  // Predicated region
  $region6: #{_lambda_.10} parent=0 // pred_check
    _
  $region7: #{_lambda_.10} parent=0 // pred_check_branch
    %11 = sbr.rel (0) target = $region9
  $region8: #{_lambda_.10} parent=0 // pred_region
    _
  $region9: #{_lambda_.10} parent=0 // pred_fallthru
    _
  // Predicated region
  $region10: #{_lambda_.10} parent=0 // pred_check
    _
  $region11: #{_lambda_.10} parent=0 // pred_check_branch
    %13 = sbr.rel (0) target = $region13
  $region12: #{_lambda_.10} parent=0 // pred_region
    _
  $region13: #{_lambda_.10} parent=0 // pred_fallthru
    _
  %v14 = vld [vmem:[%s0] sm:$0xff]
  %v15 = vld [vmem:[%s0 + $0x8] sm:$0xff]
  %v16 = vpack.c.bf16 %v15, %v14
  %v17 = vld [vmem:[%s1] sm:$0xf]
  %v18 = vld [vmem:[%s1 + $0x4] sm:$0xf]
  %v19 = vld [vmem:[%s1 + $0x8] sm:$0xf]
  %v20 = vld [vmem:[%s1 + $0xc] sm:$0xf]
  %v21 = vld [vmem:[%s1 + $0x10] sm:$0xf]
  %v22 = vld [vmem:[%s1 + $0x14] sm:$0xf]
  %v23 = vld [vmem:[%s1 + $0x18] sm:$0xf]
  %v24 = vld [vmem:[%s1 + $0x1c] sm:$0xf]
  %v25 = vld [vmem:[%s1 + $0x20] sm:$0xf]
  %v26 = vld [vmem:[%s1 + $0x24] sm:$0xf]
  %v27 = vld [vmem:[%s1 + $0x28] sm:$0xf]
  %v28 = vld [vmem:[%s1 + $0x2c] sm:$0xf]
  %v29 = vld [vmem:[%s1 + $0x30] sm:$0xf]
  %v30 = vld [vmem:[%s1 + $0x34] sm:$0xf]
  %v31 = vld [vmem:[%s1 + $0x38] sm:$0xf]
  %v32 = vld [vmem:[%s1 + $0x3c] sm:$0xf]
  %v33 = vld [vmem:[%s2] sm:$0x1]
  %v35 = vperm.slane %v33, 0
  %v53 = vunpack.c.l.b16 %v17
  %v54 = vunpack.c.l.b16 %v18
  %v55 = vunpack.c.l.b16 %v19
  %v56 = vunpack.c.l.b16 %v20
  %v57 = vunpack.c.l.b16 %v21
  %v58 = vunpack.c.l.b16 %v22
  %v59 = vunpack.c.l.b16 %v23
  %v60 = vunpack.c.l.b16 %v24
  %v61 = vunpack.c.l.b16 %v25
  %v62 = vunpack.c.l.b16 %v26
  %v63 = vunpack.c.l.b16 %v27
  %v64 = vunpack.c.l.b16 %v28
  %v65 = vunpack.c.l.b16 %v29
  %v66 = vunpack.c.l.b16 %v30
  %v67 = vunpack.c.l.b16 %v31
  %v68 = vunpack.c.l.b16 %v32
  %v69 = vpack.c.b16 %v54, %v53
  %v70 = vpack.c.b16 %v56, %v55
  %v71 = vpack.c.b16 %v58, %v57
  %v72 = vpack.c.b16 %v60, %v59
  %v73 = vpack.c.b16 %v62, %v61
  %v74 = vpack.c.b16 %v64, %v63
  %v75 = vpack.c.b16 %v66, %v65
  %v76 = vpack.c.b16 %v68, %v67
  %85 = vmatpush.bf16.msra.mxu0 %v76
  %86 = vmatpush.bf16.msra.mxu0 %v75
  %87 = vmatpush.bf16.msra.mxu0 %v74
  %88 = vmatpush.bf16.msra.mxu0 %v73
  %89 = vmatpush.bf16.msra.mxu0 %v72
  %90 = vmatpush.bf16.msra.mxu0 %v71
  %91 = vmatpush.bf16.msra.mxu0 %v70
  %92 = vmatpush.bf16.msra.mxu0 %v69
  %93 = vmatmul.bf16.gmra.mxu0 %v16
  %v94 = vpop.f32.mrf.mxu0
  %v95 = vadd.f32 %v35, %v94
  %v96 = vpop.f32.mrf.mxu0
  %v97 = vadd.f32 %v35, %v96
  %98 = vdwg.mxu0
  %99 = vst [vmem:[%s3] sm:$0xff] %v95
  %100 = vst [vmem:[%s3 + $0x8] sm:$0xff] %v97
  // Predicated region
  $region14: #{_lambda_.10} parent=0 // pred_check
    _
  $region15: #{_lambda_.10} parent=0 // pred_check_branch
    %102 = sbr.rel (0) target = $region17
  $region16: #{_lambda_.10} parent=0 // pred_region
    _
  $region17: #{_lambda_.10} parent=0 // pred_fallthru
    _
  // Predicated region
  $region18: #{_lambda_.10} parent=0 // pred_check
    _
  $region19: #{_lambda_.10} parent=0 // pred_check_branch
    %104 = sbr.rel (0) target = $region21
  $region20: #{_lambda_.10} parent=0 // pred_region
    _
  $region21: #{_lambda_.10} parent=0 // pred_fallthru
    _

// kernel: _lambda_.12
$region0: #{_lambda_.12}
  #allocation0 [shape = 'u32[]', space=smem, size = 0x4, offset = 0x4, fixed_abs, tag = 'smem constant byte address 0x4 - core index']
  #allocation1 [shape = 'u32[72,128]{1,0:T(1,128)}', space=vmem, size = 0x9000, scoped, tag = 'internal scratch']
  %s0 = inlined_call_operand.vmem [shape: f32[16,768], index: 0, kind: input, shape index: {}, may-alias: {0,1,2}]
  %s1 = inlined_call_operand.vmem [shape: f32[16,768], index: 1, kind: input, shape index: {}, may-alias: {0,1,2}]
  %s2 = inlined_call_operand.vmem [shape: f32[16,768], index: 2, kind: input, shape index: {}, may-alias: {0,1,2}]
  %s3 = inlined_call_operand.vmem [shape: f32[16,256], index: 3, kind: output, shape index: {}]
  %s4 = sld [smem:[#allocation0]]
  $region45: #{_lambda_.12} parent=0
    _
  %s6 = ssub.s32 1, %s4
  %s7 = scalar_select 0, %s6, %s4
  loop: start=0, step=1, limit=6
  $region2: #{_lambda_.12} parent=0 // loop_pre_header
    _
  $region3: #{_lambda_.12} parent=0 // loop_header
    %s9 = sphi 0, %s13
    %p10 = scmp.ge.s32.totalorder %s9, 6
    %s16 = sphi 0, %s28
    %s17 = sphi 0, %s24
    %s18 = sphi 0, %s16
    %s19 = sphi 0, %s17
    %s20 = sphi 0, %s18
    %s21 = sphi 0, %s19
    %s33 = sphi 0, %s35
    %s36 = sphi 0, %s33
    %s37 = sphi 0, %s36
    %s53 = sphi 0, %s37
    %s63 = sphi 0, %s65
    %s66 = sphi 0, %s63
    %s67 = sphi 0, %s66
    %s83 = sphi 0, %s67
    %s93 = sphi 0, %s95
    %s96 = sphi 0, %s93
    %s97 = sphi 0, %s96
    %s113 = sphi 0, %s97
    %s121 = sphi 0, %s123
    %s124 = sphi 0, %s121
    %s125 = sphi 0, %s124
    %s141 = sphi 0, %s125
  $region4: #{_lambda_.12} parent=0 // loop_header_branch
    %12 = sbr.rel (%p10) target = $region8
  $region5: #{_lambda_.12} parent=0 // loop_body
    %s14 = ssub.s32 %s9, 1
    %s15 = ssub.s32 %s9, 2
    %s22 = sadd.s32 1, %s17
    %p23 = scmp.ge.s32.totalorder %s22, 2
    %s24 = scalar_select %p23, 0, %s22
    %s25 = sadd.s32 1, %s16
    %s26 = scalar_select %p23, %s25, %s16
    %p27 = scmp.ge.s32.totalorder %s26, 2
    %s28 = scalar_select %p27, 0, %s26
    %s29 = ssub.s32 %s16, %s28
    %s30 = ssub.s32 %s17, %s24
    %s31 = sor.u32 %s29, %s30
    %p32 = scmp.eq.s32.totalorder %s31, 0
    %s34 = sadd.s32 %s33, 1
    %s35 = scalar_select %p32, %s33, %s34
    %p38 = pneg %p32
    %p39 = scmp.eq.s32.totalorder %s9, 3
    %p40 = por %p38, %p39
    %p41 = scmp.ne.s32.totalorder %s33, %s36
    %p42 = scmp.eq.s32.totalorder %s9, 0
    %p43 = por %p41, %p42
    %p44 = scmp.ne.s32.totalorder %s33, %s36
    %p45 = scmp.eq.s32.totalorder %s14, 3
    %p46 = por %p44, %p45
    %p47 = scmp.ne.s32.totalorder %s36, %s37
    %p48 = scmp.eq.s32.totalorder %s14, 0
    %p49 = por %p47, %p48
    %p50 = scmp.ne.s32.totalorder %s36, %s37
    %p51 = scmp.eq.s32.totalorder %s15, 3
    %p52 = por %p50, %p51
    %p54 = scmp.ne.s32.totalorder %s37, %s53
    %p55 = scmp.eq.s32.totalorder %s15, 0
    %p56 = por %p54, %p55
    %s57 = sadd.s32 %s17, 2
    %s58 = sadd.s32 %s24, 2
    %s59 = ssub.s32 %s16, %s28
    %s60 = ssub.s32 %s57, %s58
    %s61 = sor.u32 %s59, %s60
    %p62 = scmp.eq.s32.totalorder %s61, 0
    %s64 = sadd.s32 %s63, 1
    %s65 = scalar_select %p62, %s63, %s64
    %p68 = pneg %p62
    %p69 = scmp.eq.s32.totalorder %s9, 3
    %p70 = por %p68, %p69
    %p71 = scmp.ne.s32.totalorder %s63, %s66
    %p72 = scmp.eq.s32.totalorder %s9, 0
    %p73 = por %p71, %p72
    %p74 = scmp.ne.s32.totalorder %s63, %s66
    %p75 = scmp.eq.s32.totalorder %s14, 3
    %p76 = por %p74, %p75
    %p77 = scmp.ne.s32.totalorder %s66, %s67
    %p78 = scmp.eq.s32.totalorder %s14, 0
    %p79 = por %p77, %p78
    %p80 = scmp.ne.s32.totalorder %s66, %s67
    %p81 = scmp.eq.s32.totalorder %s15, 3
    %p82 = por %p80, %p81
    %p84 = scmp.ne.s32.totalorder %s67, %s83
    %p85 = scmp.eq.s32.totalorder %s15, 0
    %p86 = por %p84, %p85
    %s87 = sadd.s32 %s17, 4
    %s88 = sadd.s32 %s24, 4
    %s89 = ssub.s32 %s16, %s28
    %s90 = ssub.s32 %s87, %s88
    %s91 = sor.u32 %s89, %s90
    %p92 = scmp.eq.s32.totalorder %s91, 0
    %s94 = sadd.s32 %s93, 1
    %s95 = scalar_select %p92, %s93, %s94
    %p98 = pneg %p92
    %p99 = scmp.eq.s32.totalorder %s9, 3
    %p100 = por %p98, %p99
    %p101 = scmp.ne.s32.totalorder %s93, %s96
    %p102 = scmp.eq.s32.totalorder %s9, 0
    %p103 = por %p101, %p102
    %p104 = scmp.ne.s32.totalorder %s93, %s96
    %p105 = scmp.eq.s32.totalorder %s14, 3
    %p106 = por %p104, %p105
    %p107 = scmp.ne.s32.totalorder %s96, %s97
    %p108 = scmp.eq.s32.totalorder %s14, 0
    %p109 = por %p107, %p108
    %p110 = scmp.ne.s32.totalorder %s96, %s97
    %p111 = scmp.eq.s32.totalorder %s15, 3
    %p112 = por %p110, %p111
    %p114 = scmp.ne.s32.totalorder %s97, %s113
    %p115 = scmp.eq.s32.totalorder %s15, 0
    %p116 = por %p114, %p115
    %s117 = ssub.s32 %s16, %s28
    %s118 = ssub.s32 %s17, %s24
    %s119 = sor.u32 %s117, %s118
    %p120 = scmp.eq.s32.totalorder %s119, 0
    %s122 = sadd.s32 %s121, 1
    %s123 = scalar_select %p120, %s121, %s122
    %p126 = pneg %p120
    %p127 = scmp.eq.s32.totalorder %s9, 3
    %p128 = por %p126, %p127
    %p129 = scmp.ne.s32.totalorder %s121, %s124
    %p130 = scmp.eq.s32.totalorder %s9, 0
    %p131 = por %p129, %p130
    %p132 = scmp.ne.s32.totalorder %s121, %s124
    %p133 = scmp.eq.s32.totalorder %s14, 3
    %p134 = por %p132, %p133
    %p135 = scmp.ne.s32.totalorder %s124, %s125
    %p136 = scmp.eq.s32.totalorder %s14, 0
    %p137 = por %p135, %p136
    %p138 = scmp.ne.s32.totalorder %s124, %s125
    %p139 = scmp.eq.s32.totalorder %s15, 3
    %p140 = por %p138, %p139
    %p142 = scmp.ne.s32.totalorder %s125, %s141
    %p143 = scmp.eq.s32.totalorder %s15, 0
    %p144 = por %p142, %p143
    %p145 = scmp.le.s32.totalorder 1, %s9
    %p146 = scmp.lt.s32.totalorder %s9, 5
    %p147 = pnand %p145, %p146
    %p148 = pneg %p147
    // Predicated region
    $region9: #{_lambda_.12} parent=5 // pred_check
      _
    $region10: #{_lambda_.12} parent=5 // pred_check_branch
      %150 = sbr.rel (%p147) target = $region12
    $region11: #{_lambda_.12} parent=5 // pred_region
      %s151 = ssub.s32 %s9, 1
    $region12: #{_lambda_.12} parent=5 // pred_fallthru
      _
    %p152 = scmp.lt.s32.totalorder %s9, 4
    // Predicated region
    $region13: #{_lambda_.12} parent=5 // pred_check
      %p153 = pneg %p152
    $region14: #{_lambda_.12} parent=5 // pred_check_branch
      %155 = sbr.rel (%p153) target = $region16
    $region15: #{_lambda_.12} parent=5 // pred_region
      // Predicated region
      $region17: #{_lambda_.12} parent=15 // pred_check
        %p156 = pneg %p43
      $region18: #{_lambda_.12} parent=15 // pred_check_branch
        %158 = sbr.rel (%p156) target = $region20
      $region19: #{_lambda_.12} parent=15 // pred_region
        %p159 = scmp.lt.s32.totalorder %s16, 1
        %s160 = scalar_select %p159, %s16, 1
        %p161 = scmp.lt.s32.totalorder %s17, 5
        %s162 = scalar_select %p161, %s17, 5
        %s163 = smul.addr %s160, 6
        %s164 = sadd.s32 %s162, %s163
        %s165 = smul.addr %s164, 8
        %s166 = scalar_lea.vmem %s0, %s165
      $region20: #{_lambda_.12} parent=15 // pred_fallthru
        _
      // Predicated region
      $region21: #{_lambda_.12} parent=15 // pred_check
        %p167 = pneg %p73
      $region22: #{_lambda_.12} parent=15 // pred_check_branch
        %169 = sbr.rel (%p167) target = $region24
      $region23: #{_lambda_.12} parent=15 // pred_region
        %s170 = sadd.s32 %s17, 2
        %p171 = scmp.lt.s32.totalorder %s16, 1
        %s172 = scalar_select %p171, %s16, 1
        %p173 = scmp.lt.s32.totalorder %s170, 5
        %s174 = scalar_select %p173, %s170, 5
        %s175 = smul.addr %s172, 6
        %s176 = sadd.s32 %s174, %s175
        %s177 = smul.addr %s176, 8
        %s178 = scalar_lea.vmem %s1, %s177
        %s179 = sadd.s32 %s17, 2
      $region24: #{_lambda_.12} parent=15 // pred_fallthru
        _
      // Predicated region
      $region25: #{_lambda_.12} parent=15 // pred_check
        %p180 = pneg %p103
      $region26: #{_lambda_.12} parent=15 // pred_check_branch
        %182 = sbr.rel (%p180) target = $region28
      $region27: #{_lambda_.12} parent=15 // pred_region
        %s183 = sadd.s32 %s17, 4
        %p184 = scmp.lt.s32.totalorder %s16, 1
        %s185 = scalar_select %p184, %s16, 1
        %p186 = scmp.lt.s32.totalorder %s183, 5
        %s187 = scalar_select %p186, %s183, 5
        %s188 = smul.addr %s185, 6
        %s189 = sadd.s32 %s187, %s188
        %s190 = smul.addr %s189, 8
        %s191 = scalar_lea.vmem %s2, %s190
        %s192 = sadd.s32 %s17, 4
      $region28: #{_lambda_.12} parent=15 // pred_fallthru
        _
    $region16: #{_lambda_.12} parent=5 // pred_fallthru
      _
    %p193 = scmp.le.s32.totalorder 1, %s9
    %p194 = scmp.lt.s32.totalorder %s9, 5
    %p195 = pnand %p193, %p194
    %p196 = pneg %p195
    // Predicated region
    $region29: #{_lambda_.12} parent=5 // pred_check
      _
    $region30: #{_lambda_.12} parent=5 // pred_check_branch
      %198 = sbr.rel (%p195) target = $region32
    $region31: #{_lambda_.12} parent=5 // pred_region
      %s199 = ssub.s32 %s9, 1
      %p200 = scmp.lt.s32.totalorder %s18, 1
      %s201 = scalar_select %p200, %s18, 1
      %p202 = scmp.lt.s32.totalorder %s19, 5
      %s203 = scalar_select %p202, %s19, 5
      %s204 = smul.addr %s201, 6
      %s205 = sadd.s32 %s203, %s204
      %s206 = smul.addr %s205, 8
      %s207 = scalar_lea.vmem %s0, %s206
      %p208 = pneg %p49
      %p209 = pneg %p46
      %s210 = sadd.s32 %s19, 2
      %p211 = scmp.lt.s32.totalorder %s18, 1
      %s212 = scalar_select %p211, %s18, 1
      %p213 = scmp.lt.s32.totalorder %s210, 5
      %s214 = scalar_select %p213, %s210, 5
      %s215 = smul.addr %s212, 6
      %s216 = sadd.s32 %s214, %s215
      %s217 = smul.addr %s216, 8
      %s218 = scalar_lea.vmem %s1, %s217
      %p219 = pneg %p79
      %p220 = pneg %p76
      %s221 = sadd.s32 %s19, 4
      %p222 = scmp.lt.s32.totalorder %s18, 1
      %s223 = scalar_select %p222, %s18, 1
      %p224 = scmp.lt.s32.totalorder %s221, 5
      %s225 = scalar_select %p224, %s221, 5
      %s226 = smul.addr %s223, 6
      %s227 = sadd.s32 %s225, %s226
      %s228 = smul.addr %s227, 8
      %s229 = scalar_lea.vmem %s2, %s228
      %p230 = pneg %p109
      %p231 = pneg %p106
      %p232 = pneg %p137
      %p233 = pneg %p134
      %p234 = scmp.lt.s32.totalorder %s18, 1
      %s235 = scalar_select %p234, %s18, 1
      %p236 = scmp.lt.s32.totalorder %s19, 1
      %s237 = scalar_select %p236, %s19, 1
      %s238 = smul.addr %s235, 2
      %s239 = sadd.s32 %s237, %s238
      %s240 = smul.addr %s239, 8
      %s241 = scalar_lea.vmem %s3, %s240
      %p242 = scmp.lt.s32.totalorder %s18, 1
      %s243 = scalar_select %p242, %s18, 1
      %p244 = scmp.lt.s32.totalorder %s19, 5
      %s245 = scalar_select %p244, %s19, 5
      %s246 = smul.addr %s243, 6
      %s247 = sadd.s32 %s245, %s246
      %s248 = smul.addr %s247, 8
      %s249 = scalar_lea.vmem %s0, %s248
      %s250 = sadd.s32 %s19, 2
      %p251 = scmp.lt.s32.totalorder %s18, 1
      %s252 = scalar_select %p251, %s18, 1
      %p253 = scmp.lt.s32.totalorder %s250, 5
      %s254 = scalar_select %p253, %s250, 5
      %s255 = smul.addr %s252, 6
      %s256 = sadd.s32 %s254, %s255
      %s257 = smul.addr %s256, 8
      %s258 = scalar_lea.vmem %s1, %s257
      %s259 = sadd.s32 %s19, 2
      %s260 = sadd.s32 %s19, 4
      %p261 = scmp.lt.s32.totalorder %s18, 1
      %s262 = scalar_select %p261, %s18, 1
      %p263 = scmp.lt.s32.totalorder %s260, 5
      %s264 = scalar_select %p263, %s260, 5
      %s265 = smul.addr %s262, 6
      %s266 = sadd.s32 %s264, %s265
      %s267 = smul.addr %s266, 8
      %s268 = scalar_lea.vmem %s2, %s267
      %s269 = sadd.s32 %s19, 4
      %p270 = scmp.lt.s32.totalorder %s18, 1
      %s271 = scalar_select %p270, %s18, 1
      %p272 = scmp.lt.s32.totalorder %s19, 1
      %s273 = scalar_select %p272, %s19, 1
      %s274 = smul.addr %s271, 2
      %s275 = sadd.s32 %s273, %s274
      %s276 = smul.addr %s275, 8
      %s277 = scalar_lea.vmem %s3, %s276
      %v279 = vld [vmem:[%s249] sm:$0xff]
      %v280 = vpack.c.bf16 %v279, %v279
      %v281 = vld [vmem:[%s258] sm:$0xff]
      %v282 = vpack.c.bf16 %v281, %v281
      %283 = vmatpush.bf16.xpose.msra.mxu0 0
      %284 = vmatpush.bf16.xpose.msra.mxu0 0
      %285 = vmatpush.bf16.xpose.msra.mxu0 0
      %286 = vmatpush.bf16.xpose.msra.mxu0 0
      %287 = vmatpush.bf16.xpose.msra.mxu0 0
      %288 = vmatpush.bf16.xpose.msra.mxu0 0
      %289 = vmatpush.bf16.xpose.msra.mxu0 0
      %290 = vmatpush.bf16.xpose.msra.mxu0 %v282
      %291 = vmatmul.bf16.gmra.mxu0 %v280
      %v292 = vpop.f32.mrf.mxu0
      %v293 = vadd.f32 0.0, %v292
      %v294 = vpop.f32.mrf.mxu0
      %295 = vdwg.mxu0
      %vm296 = vcmask 64512
      %v297 = vsel %vm296, %v293, -inf
      %298 = vmax.xlane.f32.xlu0 %v297
      %v299 = vpop.xlane.xlu0 %298
      %v300 = vsub.f32 %v293, %v299
      %v301 = vmul.f32 %v300, 1.442695
      %v302 = vpow.pop %v301
      %v303 = vsel %vm296, %v302, 0.0
      %304 = vadd.xlane.f32.xlu0 %v303
      %v305 = vpop.xlane.xlu0 %304
      %v306 = vpack.c.bf16 %v302, %v302
      %v307 = vld [vmem:[%s268] sm:$0xff]
      %v308 = vpack.c.bf16 %v307, %v307
      %v310 = vsel %vm296, %v306, 0
      %vm312 = vcmask 1043456
      %v314 = vsel %vm312, %v308, 0
      %316 = vmatpush.bf16.msra.mxu0 0
      %317 = vmatpush.bf16.msra.mxu0 0
      %318 = vmatpush.bf16.msra.mxu0 0
      %319 = vmatpush.bf16.msra.mxu0 0
      %320 = vmatpush.bf16.msra.mxu0 0
      %321 = vmatpush.bf16.msra.mxu0 0
      %322 = vmatpush.bf16.msra.mxu0 0
      %323 = vmatpush.bf16.msra.mxu0 %v314
      %324 = vmatmul.bf16.gmra.mxu0 %v310
      %v325 = vpop.f32.mrf.mxu0
      %v326 = vadd.f32 0.0, %v325
      %v327 = vpop.f32.mrf.mxu0
      %328 = vdwg.mxu0
      %v329 = vrcp.pop %v305
      %v330 = vmul.f32 %v326, %v329
      %331 = vst [vmem:[%s277] sm:$0xff] %v330
      %p332 = scmp.lt.s32.totalorder %s18, 1
      %s333 = scalar_select %p332, %s18, 1
      %p334 = scmp.lt.s32.totalorder %s19, 1
      %s335 = scalar_select %p334, %s19, 1
      %s336 = smul.addr %s333, 2
      %s337 = sadd.s32 %s335, %s336
      %s338 = smul.addr %s337, 8
      %s339 = scalar_lea.vmem %s3, %s338
      // Predicated region
      $region33: #{_lambda_.12} parent=31 // pred_check
        %p340 = pneg %p134
      $region34: #{_lambda_.12} parent=31 // pred_check_branch
        %342 = sbr.rel (%p340) target = $region36
      $region35: #{_lambda_.12} parent=31 // pred_region
        _
      $region36: #{_lambda_.12} parent=31 // pred_fallthru
        _
    $region32: #{_lambda_.12} parent=5 // pred_fallthru
      _
    %p343 = scmp.le.s32.totalorder 2, %s9
    // Predicated region
    $region37: #{_lambda_.12} parent=5 // pred_check
      %p344 = pneg %p343
    $region38: #{_lambda_.12} parent=5 // pred_check_branch
      %346 = sbr.rel (%p344) target = $region40
    $region39: #{_lambda_.12} parent=5 // pred_region
      %s347 = ssub.s32 %s9, 2
      // Predicated region
      $region41: #{_lambda_.12} parent=39 // pred_check
        %p348 = pneg %p140
      $region42: #{_lambda_.12} parent=39 // pred_check_branch
        %350 = sbr.rel (%p348) target = $region44
      $region43: #{_lambda_.12} parent=39 // pred_region
        %p351 = scmp.lt.s32.totalorder %s20, 1
        %s352 = scalar_select %p351, %s20, 1
        %p353 = scmp.lt.s32.totalorder %s21, 1
        %s354 = scalar_select %p353, %s21, 1
        %s355 = smul.addr %s352, 2
        %s356 = sadd.s32 %s354, %s355
        %s357 = smul.addr %s356, 8
        %s358 = scalar_lea.vmem %s3, %s357
      $region44: #{_lambda_.12} parent=39 // pred_fallthru
        _
    $region40: #{_lambda_.12} parent=5 // pred_fallthru
      _
  $region6: #{_lambda_.12} parent=0 // loop_footer
    %s13 = sadd.s32 1, %s9
  $region7: #{_lambda_.12} parent=0 // loop_footer_branch
    %8 = sbr.rel target = $region3
  $region8: #{_lambda_.12} parent=0 // loop_exit
    _

// kernel: _lambda_.11
$region0: #{_lambda_.11}
  #allocation0 [shape = 'u32[]', space=smem, size = 0x4, offset = 0x4, fixed_abs, tag = 'smem constant byte address 0x4 - core index']
  #allocation1 [shape = 'u32[72,128]{1,0:T(1,128)}', space=vmem, size = 0x9000, scoped, tag = 'internal scratch']
  %s0 = inlined_call_operand.vmem [shape: f32[16,128], index: 0, kind: input, shape index: {}]
  %s1 = inlined_call_operand.vmem [shape: f32[3,128], index: 1, kind: input, shape index: {}]
  %s2 = inlined_call_operand.vmem [shape: bf16[128,768], index: 2, kind: input, shape index: {}]
  %s3 = inlined_call_operand.vmem [shape: f32[1,768], index: 3, kind: input, shape index: {}]
  %s4 = inlined_call_operand.vmem [shape: f32[16,768], index: 4, kind: output, shape index: {}]
  %s5 = sld [smem:[#allocation0]]
  $region26: #{_lambda_.11} parent=0
    _
  %s7 = ssub.s32 1, %s5
  %s8 = scalar_select 0, %s7, %s5
  // Predicated region
  $region2: #{_lambda_.11} parent=0 // pred_check
    _
  $region3: #{_lambda_.11} parent=0 // pred_check_branch
    %10 = sbr.rel (0) target = $region5
  $region4: #{_lambda_.11} parent=0 // pred_region
    _
  $region5: #{_lambda_.11} parent=0 // pred_fallthru
    _
  // Predicated region
  $region6: #{_lambda_.11} parent=0 // pred_check
    _
  $region7: #{_lambda_.11} parent=0 // pred_check_branch
    %12 = sbr.rel (0) target = $region9
  $region8: #{_lambda_.11} parent=0 // pred_region
    _
  $region9: #{_lambda_.11} parent=0 // pred_fallthru
    _
  // Predicated region
  $region10: #{_lambda_.11} parent=0 // pred_check
    _
  $region11: #{_lambda_.11} parent=0 // pred_check_branch
    %14 = sbr.rel (0) target = $region13
  $region12: #{_lambda_.11} parent=0 // pred_region
    _
  $region13: #{_lambda_.11} parent=0 // pred_fallthru
    _
  // Predicated region
  $region14: #{_lambda_.11} parent=0 // pred_check
    _
  $region15: #{_lambda_.11} parent=0 // pred_check_branch
    %16 = sbr.rel (0) target = $region17
  $region16: #{_lambda_.11} parent=0 // pred_region
    _
  $region17: #{_lambda_.11} parent=0 // pred_fallthru
    _
  %v17 = vld [vmem:[%s0] sm:$0xff]
  %v18 = vld [vmem:[%s0 + $0x8] sm:$0xff]
  %v19 = vld [vmem:[%s1] sm:$0x1]
  %v20 = vld [vmem:[%s1 + $0x1] sm:$0x1]
  %v21 = vld [vmem:[%s1 + $0x2] sm:$0x1]
  %v22 = vmul.f32 %v17, %v17
  %v23 = vmul.f32 %v18, %v18
  %v24 = vperm.slane %v19, 0
  %v25 = vmul.f32 %v22, %v24
  %v26 = vmul.f32 %v23, %v24
  %27 = vadd.xlane.f32.xlu0 %v25
  %v28 = vpop.xlane.xlu0 %27
  %29 = vadd.xlane.f32.xlu0 %v26
  %v30 = vpop.xlane.xlu0 %29
  %v31 = vmul.f32 %v28, 0.2
  %v32 = vmul.f32 %v30, 0.2
  %v33 = vadd.f32 %v31, 1e-06
  %v34 = vadd.f32 %v32, 1e-06
  %v35 = vrsqrt.pop %v33
  %v36 = vmul.f32 %v35, %v33
  %v37 = vmul.f32 %v36, %v35
  %v38 = vmul.f32 0.5, %v37
  %v39 = vsub.f32 1.5, %v38
  %v40 = vmul.f32 %v35, %v39
  %vm41 = vweird.f32 %v33
  %vm42 = vweird.f32 %v35
  %vm43 = vmor %vm41, %vm42
  %v44 = vsel %vm43, %v35, %v40
  %v45 = vrsqrt.pop %v34
  %v46 = vmul.f32 %v45, %v34
  %v47 = vmul.f32 %v46, %v45
  %v48 = vmul.f32 0.5, %v47
  %v49 = vsub.f32 1.5, %v48
  %v50 = vmul.f32 %v45, %v49
  %vm51 = vweird.f32 %v34
  %vm52 = vweird.f32 %v45
  %vm53 = vmor %vm51, %vm52
  %v54 = vsel %vm53, %v45, %v50
  %v55 = vperm.slane %v20, 0
  %v56 = vmul.f32 %v55, %v44
  %v57 = vmul.f32 %v55, %v54
  %v58 = vperm.slane %v21, 0
  %v59 = vmul.f32 %v22, %v58
  %v60 = vmul.f32 %v23, %v58
  %61 = vadd.xlane.f32.xlu0 %v59
  %v62 = vpop.xlane.xlu0 %61
  %63 = vadd.xlane.f32.xlu0 %v60
  %v64 = vpop.xlane.xlu0 %63
  %v65 = vmul.f32 %v62, 0.2
  %v66 = vmul.f32 %v64, 0.2
  %v67 = vadd.f32 %v65, 1e-06
  %v68 = vadd.f32 %v66, 1e-06
  %v69 = vrsqrt.pop %v67
  %v70 = vmul.f32 %v69, %v67
  %v71 = vmul.f32 %v70, %v69
  %v72 = vmul.f32 0.5, %v71
  %v73 = vsub.f32 1.5, %v72
  %v74 = vmul.f32 %v69, %v73
  %vm75 = vweird.f32 %v67
  %vm76 = vweird.f32 %v69
  %vm77 = vmor %vm75, %vm76
  %v78 = vsel %vm77, %v69, %v74
  %v79 = vrsqrt.pop %v68
  %v80 = vmul.f32 %v79, %v68
  %v81 = vmul.f32 %v80, %v79
  %v82 = vmul.f32 0.5, %v81
  %v83 = vsub.f32 1.5, %v82
  %v84 = vmul.f32 %v79, %v83
  %vm85 = vweird.f32 %v68
  %vm86 = vweird.f32 %v79
  %vm87 = vmor %vm85, %vm86
  %v88 = vsel %vm87, %v79, %v84
  %v89 = vmul.f32 %v58, %v78
  %v90 = vmul.f32 %v58, %v88
  %v91 = vadd.f32 %v56, %v89
  %v92 = vadd.f32 %v57, %v90
  %v93 = vmul.f32 %v17, %v91
  %v94 = vmul.f32 %v18, %v92
  %v95 = vpack.c.bf16 %v94, %v93
  %v96 = vld [vmem:[%s2] sm:$0xff]
  %v97 = vld [vmem:[%s2 + $0x8] sm:$0xff]
  %v98 = vld [vmem:[%s2 + $0x10] sm:$0xff]
  %v99 = vld [vmem:[%s2 + $0x18] sm:$0xff]
  %v100 = vld [vmem:[%s2 + $0x20] sm:$0xff]
  %v101 = vld [vmem:[%s2 + $0x28] sm:$0xff]
  %v102 = vld [vmem:[%s2 + $0x30] sm:$0xff]
  %v103 = vld [vmem:[%s2 + $0x38] sm:$0xff]
  %v104 = vld [vmem:[%s2 + $0x40] sm:$0xff]
  %v105 = vld [vmem:[%s2 + $0x48] sm:$0xff]
  %v106 = vld [vmem:[%s2 + $0x50] sm:$0xff]
  %v107 = vld [vmem:[%s2 + $0x58] sm:$0xff]
  %v108 = vld [vmem:[%s2 + $0x60] sm:$0xff]
  %v109 = vld [vmem:[%s2 + $0x68] sm:$0xff]
  %v110 = vld [vmem:[%s2 + $0x70] sm:$0xff]
  %v111 = vld [vmem:[%s2 + $0x78] sm:$0xff]
  %v112 = vld [vmem:[%s2 + $0x80] sm:$0xff]
  %v113 = vld [vmem:[%s2 + $0x88] sm:$0xff]
  %v114 = vld [vmem:[%s2 + $0x90] sm:$0xff]
  %v115 = vld [vmem:[%s2 + $0x98] sm:$0xff]
  %v116 = vld [vmem:[%s2 + $0xa0] sm:$0xff]
  %v117 = vld [vmem:[%s2 + $0xa8] sm:$0xff]
  %v118 = vld [vmem:[%s2 + $0xb0] sm:$0xff]
  %v119 = vld [vmem:[%s2 + $0xb8] sm:$0xff]
  %v120 = vld [vmem:[%s2 + $0xc0] sm:$0xff]
  %v121 = vld [vmem:[%s2 + $0xc8] sm:$0xff]
  %v122 = vld [vmem:[%s2 + $0xd0] sm:$0xff]
  %v123 = vld [vmem:[%s2 + $0xd8] sm:$0xff]
  %v124 = vld [vmem:[%s2 + $0xe0] sm:$0xff]
  %v125 = vld [vmem:[%s2 + $0xe8] sm:$0xff]
  %v126 = vld [vmem:[%s2 + $0xf0] sm:$0xff]
  %v127 = vld [vmem:[%s2 + $0xf8] sm:$0xff]
  %v128 = vld [vmem:[%s2 + $0x100] sm:$0xff]
  %v129 = vld [vmem:[%s2 + $0x108] sm:$0xff]
  %v130 = vld [vmem:[%s2 + $0x110] sm:$0xff]
  %v131 = vld [vmem:[%s2 + $0x118] sm:$0xff]
  %v132 = vld [vmem:[%s2 + $0x120] sm:$0xff]
  %v133 = vld [vmem:[%s2 + $0x128] sm:$0xff]
  %v134 = vld [vmem:[%s2 + $0x130] sm:$0xff]
  %v135 = vld [vmem:[%s2 + $0x138] sm:$0xff]
  %v136 = vld [vmem:[%s2 + $0x140] sm:$0xff]
  %v137 = vld [vmem:[%s2 + $0x148] sm:$0xff]
  %v138 = vld [vmem:[%s2 + $0x150] sm:$0xff]
  %v139 = vld [vmem:[%s2 + $0x158] sm:$0xff]
  %v140 = vld [vmem:[%s2 + $0x160] sm:$0xff]
  %v141 = vld [vmem:[%s2 + $0x168] sm:$0xff]
  %v142 = vld [vmem:[%s2 + $0x170] sm:$0xff]
  %v143 = vld [vmem:[%s2 + $0x178] sm:$0xff]
  %v144 = vld [vmem:[%s3] sm:$0x3f]
  %v146 = vperm.slane %v144, 0
  %v147 = vperm.slane %v144, 1
  %v148 = vperm.slane %v144, 2
  %v149 = vperm.slane %v144, 3
  %v150 = vperm.slane %v144, 4
  %v151 = vperm.slane %v144, 5
  %v206 = vunpack.c.l.b16 %v96
  %v207 = vunpack.c.h.b16 %v96
  %v208 = vunpack.c.l.b16 %v97
  %v209 = vunpack.c.h.b16 %v97
  %v210 = vunpack.c.l.b16 %v98
  %v211 = vunpack.c.h.b16 %v98
  %v212 = vunpack.c.l.b16 %v99
  %v213 = vunpack.c.h.b16 %v99
  %v214 = vunpack.c.l.b16 %v100
  %v215 = vunpack.c.h.b16 %v100
  %v216 = vunpack.c.l.b16 %v101
  %v217 = vunpack.c.h.b16 %v101
  %v218 = vunpack.c.l.b16 %v102
  %v219 = vunpack.c.h.b16 %v102
  %v220 = vunpack.c.l.b16 %v103
  %v221 = vunpack.c.h.b16 %v103
  %v222 = vunpack.c.l.b16 %v104
  %v223 = vunpack.c.h.b16 %v104
  %v224 = vunpack.c.l.b16 %v105
  %v225 = vunpack.c.h.b16 %v105
  %v226 = vunpack.c.l.b16 %v106
  %v227 = vunpack.c.h.b16 %v106
  %v228 = vunpack.c.l.b16 %v107
  %v229 = vunpack.c.h.b16 %v107
  %v230 = vunpack.c.l.b16 %v108
  %v231 = vunpack.c.h.b16 %v108
  %v232 = vunpack.c.l.b16 %v109
  %v233 = vunpack.c.h.b16 %v109
  %v234 = vunpack.c.l.b16 %v110
  %v235 = vunpack.c.h.b16 %v110
  %v236 = vunpack.c.l.b16 %v111
  %v237 = vunpack.c.h.b16 %v111
  %v238 = vunpack.c.l.b16 %v112
  %v239 = vunpack.c.h.b16 %v112
  %v240 = vunpack.c.l.b16 %v113
  %v241 = vunpack.c.h.b16 %v113
  %v242 = vunpack.c.l.b16 %v114
  %v243 = vunpack.c.h.b16 %v114
  %v244 = vunpack.c.l.b16 %v115
  %v245 = vunpack.c.h.b16 %v115
  %v246 = vunpack.c.l.b16 %v116
  %v247 = vunpack.c.h.b16 %v116
  %v248 = vunpack.c.l.b16 %v117
  %v249 = vunpack.c.h.b16 %v117
  %v250 = vunpack.c.l.b16 %v118
  %v251 = vunpack.c.h.b16 %v118
  %v252 = vunpack.c.l.b16 %v119
  %v253 = vunpack.c.h.b16 %v119
  %v254 = vunpack.c.l.b16 %v120
  %v255 = vunpack.c.h.b16 %v120
  %v256 = vunpack.c.l.b16 %v121
  %v257 = vunpack.c.h.b16 %v121
  %v258 = vunpack.c.l.b16 %v122
  %v259 = vunpack.c.h.b16 %v122
  %v260 = vunpack.c.l.b16 %v123
  %v261 = vunpack.c.h.b16 %v123
  %v262 = vunpack.c.l.b16 %v124
  %v263 = vunpack.c.h.b16 %v124
  %v264 = vunpack.c.l.b16 %v125
  %v265 = vunpack.c.h.b16 %v125
  %v266 = vunpack.c.l.b16 %v126
  %v267 = vunpack.c.h.b16 %v126
  %v268 = vunpack.c.l.b16 %v127
  %v269 = vunpack.c.h.b16 %v127
  %v270 = vunpack.c.l.b16 %v128
  %v271 = vunpack.c.h.b16 %v128
  %v272 = vunpack.c.l.b16 %v129
  %v273 = vunpack.c.h.b16 %v129
  %v274 = vunpack.c.l.b16 %v130
  %v275 = vunpack.c.h.b16 %v130
  %v276 = vunpack.c.l.b16 %v131
  %v277 = vunpack.c.h.b16 %v131
  %v278 = vunpack.c.l.b16 %v132
  %v279 = vunpack.c.h.b16 %v132
  %v280 = vunpack.c.l.b16 %v133
  %v281 = vunpack.c.h.b16 %v133
  %v282 = vunpack.c.l.b16 %v134
  %v283 = vunpack.c.h.b16 %v134
  %v284 = vunpack.c.l.b16 %v135
  %v285 = vunpack.c.h.b16 %v135
  %v286 = vunpack.c.l.b16 %v136
  %v287 = vunpack.c.h.b16 %v136
  %v288 = vunpack.c.l.b16 %v137
  %v289 = vunpack.c.h.b16 %v137
  %v290 = vunpack.c.l.b16 %v138
  %v291 = vunpack.c.h.b16 %v138
  %v292 = vunpack.c.l.b16 %v139
  %v293 = vunpack.c.h.b16 %v139
  %v294 = vunpack.c.l.b16 %v140
  %v295 = vunpack.c.h.b16 %v140
  %v296 = vunpack.c.l.b16 %v141
  %v297 = vunpack.c.h.b16 %v141
  %v298 = vunpack.c.l.b16 %v142
  %v299 = vunpack.c.h.b16 %v142
  %v300 = vunpack.c.l.b16 %v143
  %v301 = vunpack.c.h.b16 %v143
  %v302 = vpack.c.b16 %v212, %v206
  %v303 = vpack.c.b16 %v213, %v207
  %v304 = vpack.c.b16 %v214, %v208
  %v305 = vpack.c.b16 %v215, %v209
  %v306 = vpack.c.b16 %v216, %v210
  %v307 = vpack.c.b16 %v217, %v211
  %v308 = vpack.c.b16 %v224, %v218
  %v309 = vpack.c.b16 %v225, %v219
  %v310 = vpack.c.b16 %v226, %v220
  %v311 = vpack.c.b16 %v227, %v221
  %v312 = vpack.c.b16 %v228, %v222
  %v313 = vpack.c.b16 %v229, %v223
  %v314 = vpack.c.b16 %v236, %v230
  %v315 = vpack.c.b16 %v237, %v231
  %v316 = vpack.c.b16 %v238, %v232
  %v317 = vpack.c.b16 %v239, %v233
  %v318 = vpack.c.b16 %v240, %v234
  %v319 = vpack.c.b16 %v241, %v235
  %v320 = vpack.c.b16 %v248, %v242
  %v321 = vpack.c.b16 %v249, %v243
  %v322 = vpack.c.b16 %v250, %v244
  %v323 = vpack.c.b16 %v251, %v245
  %v324 = vpack.c.b16 %v252, %v246
  %v325 = vpack.c.b16 %v253, %v247
  %v326 = vpack.c.b16 %v260, %v254
  %v327 = vpack.c.b16 %v261, %v255
  %v328 = vpack.c.b16 %v262, %v256
  %v329 = vpack.c.b16 %v263, %v257
  %v330 = vpack.c.b16 %v264, %v258
  %v331 = vpack.c.b16 %v265, %v259
  %v332 = vpack.c.b16 %v272, %v266
  %v333 = vpack.c.b16 %v273, %v267
  %v334 = vpack.c.b16 %v274, %v268
  %v335 = vpack.c.b16 %v275, %v269
  %v336 = vpack.c.b16 %v276, %v270
  %v337 = vpack.c.b16 %v277, %v271
  %v338 = vpack.c.b16 %v284, %v278
  %v339 = vpack.c.b16 %v285, %v279
  %v340 = vpack.c.b16 %v286, %v280
  %v341 = vpack.c.b16 %v287, %v281
  %v342 = vpack.c.b16 %v288, %v282
  %v343 = vpack.c.b16 %v289, %v283
  %v344 = vpack.c.b16 %v296, %v290
  %v345 = vpack.c.b16 %v297, %v291
  %v346 = vpack.c.b16 %v298, %v292
  %v347 = vpack.c.b16 %v299, %v293
  %v348 = vpack.c.b16 %v300, %v294
  %v349 = vpack.c.b16 %v301, %v295
  %398 = vmatpush.bf16.msra.mxu0 %v344
  %399 = vmatpush.bf16.msra.mxu0 %v338
  %400 = vmatpush.bf16.msra.mxu0 %v332
  %401 = vmatpush.bf16.msra.mxu0 %v326
  %402 = vmatpush.bf16.msra.mxu0 %v320
  %403 = vmatpush.bf16.msra.mxu0 %v314
  %404 = vmatpush.bf16.msra.mxu0 %v308
  %405 = vmatpush.bf16.msra.mxu0 %v302
  %406 = vmatmul.bf16.gmra.mxu0 %v95
  %v407 = vpop.f32.mrf.mxu0
  %v408 = vadd.f32 %v146, %v407
  %v409 = vpop.f32.mrf.mxu0
  %v410 = vadd.f32 %v146, %v409
  %411 = vdwg.mxu0
  %412 = vmatpush.bf16.msra.mxu0 %v345
  %413 = vmatpush.bf16.msra.mxu0 %v339
  %414 = vmatpush.bf16.msra.mxu0 %v333
  %415 = vmatpush.bf16.msra.mxu0 %v327
  %416 = vmatpush.bf16.msra.mxu0 %v321
  %417 = vmatpush.bf16.msra.mxu0 %v315
  %418 = vmatpush.bf16.msra.mxu0 %v309
  %419 = vmatpush.bf16.msra.mxu0 %v303
  %420 = vmatmul.bf16.gmra.mxu0 %v95
  %v421 = vpop.f32.mrf.mxu0
  %v422 = vadd.f32 %v147, %v421
  %v423 = vpop.f32.mrf.mxu0
  %v424 = vadd.f32 %v147, %v423
  %425 = vdwg.mxu0
  %426 = vmatpush.bf16.msra.mxu0 %v346
  %427 = vmatpush.bf16.msra.mxu0 %v340
  %428 = vmatpush.bf16.msra.mxu0 %v334
  %429 = vmatpush.bf16.msra.mxu0 %v328
  %430 = vmatpush.bf16.msra.mxu0 %v322
  %431 = vmatpush.bf16.msra.mxu0 %v316
  %432 = vmatpush.bf16.msra.mxu0 %v310
  %433 = vmatpush.bf16.msra.mxu0 %v304
  %434 = vmatmul.bf16.gmra.mxu0 %v95
  %v435 = vpop.f32.mrf.mxu0
  %v436 = vadd.f32 %v148, %v435
  %v437 = vpop.f32.mrf.mxu0
  %v438 = vadd.f32 %v148, %v437
  %439 = vdwg.mxu0
  %440 = vmatpush.bf16.msra.mxu0 %v347
  %441 = vmatpush.bf16.msra.mxu0 %v341
  %442 = vmatpush.bf16.msra.mxu0 %v335
  %443 = vmatpush.bf16.msra.mxu0 %v329
  %444 = vmatpush.bf16.msra.mxu0 %v323
  %445 = vmatpush.bf16.msra.mxu0 %v317
  %446 = vmatpush.bf16.msra.mxu0 %v311
  %447 = vmatpush.bf16.msra.mxu0 %v305
  %448 = vmatmul.bf16.gmra.mxu0 %v95
  %v449 = vpop.f32.mrf.mxu0
  %v450 = vadd.f32 %v149, %v449
  %v451 = vpop.f32.mrf.mxu0
  %v452 = vadd.f32 %v149, %v451
  %453 = vdwg.mxu0
  %454 = vmatpush.bf16.msra.mxu0 %v348
  %455 = vmatpush.bf16.msra.mxu0 %v342
  %456 = vmatpush.bf16.msra.mxu0 %v336
  %457 = vmatpush.bf16.msra.mxu0 %v330
  %458 = vmatpush.bf16.msra.mxu0 %v324
  %459 = vmatpush.bf16.msra.mxu0 %v318
  %460 = vmatpush.bf16.msra.mxu0 %v312
  %461 = vmatpush.bf16.msra.mxu0 %v306
  %462 = vmatmul.bf16.gmra.mxu0 %v95
  %v463 = vpop.f32.mrf.mxu0
  %v464 = vadd.f32 %v150, %v463
  %v465 = vpop.f32.mrf.mxu0
  %v466 = vadd.f32 %v150, %v465
  %467 = vdwg.mxu0
  %468 = vmatpush.bf16.msra.mxu0 %v349
  %469 = vmatpush.bf16.msra.mxu0 %v343
  %470 = vmatpush.bf16.msra.mxu0 %v337
  %471 = vmatpush.bf16.msra.mxu0 %v331
  %472 = vmatpush.bf16.msra.mxu0 %v325
  %473 = vmatpush.bf16.msra.mxu0 %v319
  %474 = vmatpush.bf16.msra.mxu0 %v313
  %475 = vmatpush.bf16.msra.mxu0 %v307
  %476 = vmatmul.bf16.gmra.mxu0 %v95
  %v477 = vpop.f32.mrf.mxu0
  %v478 = vadd.f32 %v151, %v477
  %v479 = vpop.f32.mrf.mxu0
  %v480 = vadd.f32 %v151, %v479
  %481 = vdwg.mxu0
  %482 = vst [vmem:[%s4] sm:$0xff] %v408
  %483 = vst [vmem:[%s4 + $0x8] sm:$0xff] %v422
  %484 = vst [vmem:[%s4 + $0x10] sm:$0xff] %v436
  %485 = vst [vmem:[%s4 + $0x18] sm:$0xff] %v450
  %486 = vst [vmem:[%s4 + $0x20] sm:$0xff] %v464
  %487 = vst [vmem:[%s4 + $0x28] sm:$0xff] %v478
  %488 = vst [vmem:[%s4 + $0x30] sm:$0xff] %v410
  %489 = vst [vmem:[%s4 + $0x38] sm:$0xff] %v424
  %490 = vst [vmem:[%s4 + $0x40] sm:$0xff] %v438
  %491 = vst [vmem:[%s4 + $0x48] sm:$0xff] %v452
  %492 = vst [vmem:[%s4 + $0x50] sm:$0xff] %v466
  %493 = vst [vmem:[%s4 + $0x58] sm:$0xff] %v480
  // Predicated region
  $region18: #{_lambda_.11} parent=0 // pred_check
    _
  $region19: #{_lambda_.11} parent=0 // pred_check_branch
    %495 = sbr.rel (0) target = $region21
  $region20: #{_lambda_.11} parent=0 // pred_region
    _
  $region21: #{_lambda_.11} parent=0 // pred_fallthru
    _
  // Predicated region
  $region22: #{_lambda_.11} parent=0 // pred_check
    _
  $region23: #{_lambda_.11} parent=0 // pred_check_branch
    %497 = sbr.rel (0) target = $region25
  $region24: #{_lambda_.11} parent=0 // pred_region
    _
  $region25: #{_lambda_.11} parent=0 // pred_fallthru
    _

// kernel: _lambda_.13
$region0: #{_lambda_.13}
  #allocation0 [shape = 'u32[]', space=smem, size = 0x4, offset = 0x4, fixed_abs, tag = 'smem constant byte address 0x4 - core index']
  #allocation1 [shape = 'u32[72,128]{1,0:T(1,128)}', space=vmem, size = 0x9000, scoped, tag = 'internal scratch']
  %s0 = inlined_call_operand.vmem [shape: f32[16,256], index: 0, kind: input, shape index: {}]
  %s1 = inlined_call_operand.vmem [shape: bf16[256,128], index: 1, kind: input, shape index: {}]
  %s2 = inlined_call_operand.vmem [shape: f32[1,128], index: 2, kind: input, shape index: {}]
  %s3 = inlined_call_operand.vmem [shape: f32[16,128], index: 3, kind: input, shape index: {}]
  %s4 = inlined_call_operand.vmem [shape: f32[16,128], index: 4, kind: output, shape index: {}]
  %s5 = sld [smem:[#allocation0]]
  $region26: #{_lambda_.13} parent=0
    _
  %s7 = ssub.s32 1, %s5
  %s8 = scalar_select 0, %s7, %s5
  // Predicated region
  $region2: #{_lambda_.13} parent=0 // pred_check
    _
  $region3: #{_lambda_.13} parent=0 // pred_check_branch
    %10 = sbr.rel (0) target = $region5
  $region4: #{_lambda_.13} parent=0 // pred_region
    _
  $region5: #{_lambda_.13} parent=0 // pred_fallthru
    _
  // Predicated region
  $region6: #{_lambda_.13} parent=0 // pred_check
    _
  $region7: #{_lambda_.13} parent=0 // pred_check_branch
    %12 = sbr.rel (0) target = $region9
  $region8: #{_lambda_.13} parent=0 // pred_region
    _
  $region9: #{_lambda_.13} parent=0 // pred_fallthru
    _
  // Predicated region
  $region10: #{_lambda_.13} parent=0 // pred_check
    _
  $region11: #{_lambda_.13} parent=0 // pred_check_branch
    %14 = sbr.rel (0) target = $region13
  $region12: #{_lambda_.13} parent=0 // pred_region
    _
  $region13: #{_lambda_.13} parent=0 // pred_fallthru
    _
  // Predicated region
  $region14: #{_lambda_.13} parent=0 // pred_check
    _
  $region15: #{_lambda_.13} parent=0 // pred_check_branch
    %16 = sbr.rel (0) target = $region17
  $region16: #{_lambda_.13} parent=0 // pred_region
    _
  $region17: #{_lambda_.13} parent=0 // pred_fallthru
    _
  %v17 = vld [vmem:[%s0] sm:$0xff]
  %v18 = vld [vmem:[%s0 + $0x8] sm:$0xff]
  %v19 = vld [vmem:[%s0 + $0x10] sm:$0xff]
  %v20 = vld [vmem:[%s0 + $0x18] sm:$0xff]
  %v21 = vpack.c.bf16 %v19, %v17
  %v22 = vpack.c.bf16 %v20, %v18
  %v23 = vld [vmem:[%s1] sm:$0xf]
  %v24 = vld [vmem:[%s1 + $0x4] sm:$0xf]
  %v25 = vld [vmem:[%s1 + $0x8] sm:$0xf]
  %v26 = vld [vmem:[%s1 + $0xc] sm:$0xf]
  %v27 = vld [vmem:[%s1 + $0x10] sm:$0xf]
  %v28 = vld [vmem:[%s1 + $0x14] sm:$0xf]
  %v29 = vld [vmem:[%s1 + $0x18] sm:$0xf]
  %v30 = vld [vmem:[%s1 + $0x1c] sm:$0xf]
  %v31 = vld [vmem:[%s1 + $0x20] sm:$0xf]
  %v32 = vld [vmem:[%s1 + $0x24] sm:$0xf]
  %v33 = vld [vmem:[%s1 + $0x28] sm:$0xf]
  %v34 = vld [vmem:[%s1 + $0x2c] sm:$0xf]
  %v35 = vld [vmem:[%s1 + $0x30] sm:$0xf]
  %v36 = vld [vmem:[%s1 + $0x34] sm:$0xf]
  %v37 = vld [vmem:[%s1 + $0x38] sm:$0xf]
  %v38 = vld [vmem:[%s1 + $0x3c] sm:$0xf]
  %v39 = vld [vmem:[%s1 + $0x40] sm:$0xf]
  %v40 = vld [vmem:[%s1 + $0x44] sm:$0xf]
  %v41 = vld [vmem:[%s1 + $0x48] sm:$0xf]
  %v42 = vld [vmem:[%s1 + $0x4c] sm:$0xf]
  %v43 = vld [vmem:[%s1 + $0x50] sm:$0xf]
  %v44 = vld [vmem:[%s1 + $0x54] sm:$0xf]
  %v45 = vld [vmem:[%s1 + $0x58] sm:$0xf]
  %v46 = vld [vmem:[%s1 + $0x5c] sm:$0xf]
  %v47 = vld [vmem:[%s1 + $0x60] sm:$0xf]
  %v48 = vld [vmem:[%s1 + $0x64] sm:$0xf]
  %v49 = vld [vmem:[%s1 + $0x68] sm:$0xf]
  %v50 = vld [vmem:[%s1 + $0x6c] sm:$0xf]
  %v51 = vld [vmem:[%s1 + $0x70] sm:$0xf]
  %v52 = vld [vmem:[%s1 + $0x74] sm:$0xf]
  %v53 = vld [vmem:[%s1 + $0x78] sm:$0xf]
  %v54 = vld [vmem:[%s1 + $0x7c] sm:$0xf]
  %v55 = vld [vmem:[%s2] sm:$0x1]
  %v57 = vperm.slane %v55, 0
  %v91 = vunpack.c.l.b16 %v23
  %v92 = vunpack.c.l.b16 %v24
  %v93 = vunpack.c.l.b16 %v25
  %v94 = vunpack.c.l.b16 %v26
  %v95 = vunpack.c.l.b16 %v27
  %v96 = vunpack.c.l.b16 %v28
  %v97 = vunpack.c.l.b16 %v29
  %v98 = vunpack.c.l.b16 %v30
  %v99 = vunpack.c.l.b16 %v31
  %v100 = vunpack.c.l.b16 %v32
  %v101 = vunpack.c.l.b16 %v33
  %v102 = vunpack.c.l.b16 %v34
  %v103 = vunpack.c.l.b16 %v35
  %v104 = vunpack.c.l.b16 %v36
  %v105 = vunpack.c.l.b16 %v37
  %v106 = vunpack.c.l.b16 %v38
  %v107 = vunpack.c.l.b16 %v39
  %v108 = vunpack.c.l.b16 %v40
  %v109 = vunpack.c.l.b16 %v41
  %v110 = vunpack.c.l.b16 %v42
  %v111 = vunpack.c.l.b16 %v43
  %v112 = vunpack.c.l.b16 %v44
  %v113 = vunpack.c.l.b16 %v45
  %v114 = vunpack.c.l.b16 %v46
  %v115 = vunpack.c.l.b16 %v47
  %v116 = vunpack.c.l.b16 %v48
  %v117 = vunpack.c.l.b16 %v49
  %v118 = vunpack.c.l.b16 %v50
  %v119 = vunpack.c.l.b16 %v51
  %v120 = vunpack.c.l.b16 %v52
  %v121 = vunpack.c.l.b16 %v53
  %v122 = vunpack.c.l.b16 %v54
  %v123 = vpack.c.b16 %v92, %v91
  %v124 = vpack.c.b16 %v94, %v93
  %v125 = vpack.c.b16 %v96, %v95
  %v126 = vpack.c.b16 %v98, %v97
  %v127 = vpack.c.b16 %v100, %v99
  %v128 = vpack.c.b16 %v102, %v101
  %v129 = vpack.c.b16 %v104, %v103
  %v130 = vpack.c.b16 %v106, %v105
  %v131 = vpack.c.b16 %v108, %v107
  %v132 = vpack.c.b16 %v110, %v109
  %v133 = vpack.c.b16 %v112, %v111
  %v134 = vpack.c.b16 %v114, %v113
  %v135 = vpack.c.b16 %v116, %v115
  %v136 = vpack.c.b16 %v118, %v117
  %v137 = vpack.c.b16 %v120, %v119
  %v138 = vpack.c.b16 %v122, %v121
  %155 = vmatpush.bf16.msra.mxu0 %v130
  %156 = vmatpush.bf16.msra.mxu0 %v129
  %157 = vmatpush.bf16.msra.mxu0 %v128
  %158 = vmatpush.bf16.msra.mxu0 %v127
  %159 = vmatpush.bf16.msra.mxu0 %v126
  %160 = vmatpush.bf16.msra.mxu0 %v125
  %161 = vmatpush.bf16.msra.mxu0 %v124
  %162 = vmatpush.bf16.msra.mxu0 %v123
  %163 = vmatmul.bf16.gmra.mxu0 %v21
  %v164 = vpop.f32.mrf.mxu0
  %v165 = vadd.f32 %v57, %v164
  %v166 = vpop.f32.mrf.mxu0
  %v167 = vadd.f32 %v57, %v166
  %168 = vdwg.mxu0
  %169 = vmatpush.bf16.msra.mxu0 %v138
  %170 = vmatpush.bf16.msra.mxu0 %v137
  %171 = vmatpush.bf16.msra.mxu0 %v136
  %172 = vmatpush.bf16.msra.mxu0 %v135
  %173 = vmatpush.bf16.msra.mxu0 %v134
  %174 = vmatpush.bf16.msra.mxu0 %v133
  %175 = vmatpush.bf16.msra.mxu0 %v132
  %176 = vmatpush.bf16.msra.mxu0 %v131
  %177 = vmatmul.bf16.gmra.mxu0 %v22
  %v178 = vpop.f32.mrf.mxu0
  %v179 = vadd.f32 %v165, %v178
  %v180 = vpop.f32.mrf.mxu0
  %v181 = vadd.f32 %v167, %v180
  %182 = vdwg.mxu0
  %v183 = vld [vmem:[%s3] sm:$0xff]
  %v184 = vld [vmem:[%s3 + $0x8] sm:$0xff]
  %v185 = vadd.f32 %v179, %v183
  %v186 = vadd.f32 %v181, %v184
  %187 = vst [vmem:[%s4] sm:$0xff] %v185
  %188 = vst [vmem:[%s4 + $0x8] sm:$0xff] %v186
  // Predicated region
  $region18: #{_lambda_.13} parent=0 // pred_check
    _
  $region19: #{_lambda_.13} parent=0 // pred_check_branch
    %190 = sbr.rel (0) target = $region21
  $region20: #{_lambda_.13} parent=0 // pred_region
    _
  $region21: #{_lambda_.13} parent=0 // pred_fallthru
    _
  // Predicated region
  $region22: #{_lambda_.13} parent=0 // pred_check
    _
  $region23: #{_lambda_.13} parent=0 // pred_check_branch
    %192 = sbr.rel (0) target = $region25
  $region24: #{_lambda_.13} parent=0 // pred_region
    _
  $region25: #{_lambda_.13} parent=0 // pred_fallthru
    _

// kernel: _lambda_.14
$region0: #{_lambda_.14}
  #allocation0 [shape = 'u32[]', space=smem, size = 0x4, offset = 0x4, fixed_abs, tag = 'smem constant byte address 0x4 - core index']
  #allocation1 [shape = 'u32[72,128]{1,0:T(1,128)}', space=vmem, size = 0x9000, scoped, tag = 'internal scratch']
  %s0 = inlined_call_operand.vmem [shape: f32[16,128], index: 0, kind: input, shape index: {}]
  %s1 = inlined_call_operand.vmem [shape: f32[3,128], index: 1, kind: input, shape index: {}]
  %s2 = inlined_call_operand.vmem [shape: bf16[128,256], index: 2, kind: input, shape index: {}]
  %s3 = inlined_call_operand.vmem [shape: f32[1,256], index: 3, kind: input, shape index: {}]
  %s4 = inlined_call_operand.hbm [shape: bf16[256,2048], index: 4, kind: input, shape index: {}]
  %s5 = inlined_call_operand.hbm [shape: bf16[256,2048], index: 5, kind: input, shape index: {}]
  %s6 = inlined_call_operand.vmem [shape: bf16[128,128], index: 6, kind: input, shape index: {}]
  %s7 = inlined_call_operand.vmem [shape: bf16[128,128], index: 7, kind: input, shape index: {}]
  %s8 = inlined_call_operand.vmem [shape: bf16[128,128], index: 8, kind: input, shape index: {}]
  %s9 = inlined_call_operand.vmem [shape: f32[1,128], index: 9, kind: input, shape index: {}]
  %s10 = inlined_call_operand.vmem [shape: f32[16,128], index: 10, kind: output, shape index: {}]
  %s11 = sld [smem:[#allocation0]]
  $region58: #{_lambda_.14} parent=0
    _
  %s13 = ssub.s32 1, %s11
  %s14 = scalar_select 0, %s13, %s11
  $region1: #{_lambda_.14} parent=0
    #allocation2 [shape = 'u8[1048576]{0}', space=vmem, size = 0x100000, scoped, tag = 'input window, operand 4, single buffered']
    #allocation3 [shape = 's32[1]{0}', space=sflag, size = 0x4, scoped, tag = 'scoped memory for _lambda_.14']
    #allocation4 [shape = 'u8[1048576]{0}', space=vmem, size = 0x100000, scoped, tag = 'input window, operand 5, single buffered']
    #allocation5 [shape = 's32[1]{0}', space=sflag, size = 0x4, scoped, tag = 'scoped memory for _lambda_.14']
    %15 = vsyncpa [#allocation3], 0
    %16 = vsyncpa [#allocation5], 0
    // Predicated region
    $region2: #{_lambda_.14} parent=1 // pred_check
      _
    $region3: #{_lambda_.14} parent=1 // pred_check_branch
      %18 = sbr.rel (0) target = $region5
    $region4: #{_lambda_.14} parent=1 // pred_region
      _
    $region5: #{_lambda_.14} parent=1 // pred_fallthru
      _
    // Predicated region
    $region6: #{_lambda_.14} parent=1 // pred_check
      _
    $region7: #{_lambda_.14} parent=1 // pred_check_branch
      %20 = sbr.rel (0) target = $region9
    $region8: #{_lambda_.14} parent=1 // pred_region
      _
    $region9: #{_lambda_.14} parent=1 // pred_fallthru
      _
    // Predicated region
    $region10: #{_lambda_.14} parent=1 // pred_check
      _
    $region11: #{_lambda_.14} parent=1 // pred_check_branch
      %22 = sbr.rel (0) target = $region13
    $region12: #{_lambda_.14} parent=1 // pred_region
      _
    $region13: #{_lambda_.14} parent=1 // pred_fallthru
      _
    // Predicated region
    $region14: #{_lambda_.14} parent=1 // pred_check
      _
    $region15: #{_lambda_.14} parent=1 // pred_check_branch
      %24 = sbr.rel (0) target = $region17
    $region16: #{_lambda_.14} parent=1 // pred_region
      _
    $region17: #{_lambda_.14} parent=1 // pred_fallthru
      _
    // Predicated region
    $region18: #{_lambda_.14} parent=1 // pred_check
      _
    $region19: #{_lambda_.14} parent=1 // pred_check_branch
      %26 = sbr.rel (0) target = $region21
    $region20: #{_lambda_.14} parent=1 // pred_region
      %28 = vsyncadd [#allocation3], 0
      %s29 = sshll.u32 %s4, 4
      %s30 = int_to_ptr.hbm [resolvable:$true] %s29
      %s31 = sshll.u32 [#allocation2], 4
      %s32 = int_to_ptr.vmem [resolvable:$true] %s31
      %37 = dma.hbm_to_vmem [thread:$0]  %s30, 32768, %s32, [#allocation3], 1024, 1024, 64
    $region21: #{_lambda_.14} parent=1 // pred_fallthru
      _
    // Predicated region
    $region22: #{_lambda_.14} parent=1 // pred_check
      _
    $region23: #{_lambda_.14} parent=1 // pred_check_branch
      %39 = sbr.rel (0) target = $region25
    $region24: #{_lambda_.14} parent=1 // pred_region
      %41 = vsyncadd [#allocation5], 0
      %s42 = sshll.u32 %s5, 4
      %s43 = int_to_ptr.hbm [resolvable:$true] %s42
      %s44 = sshll.u32 [#allocation4], 4
      %s45 = int_to_ptr.vmem [resolvable:$true] %s44
      %50 = dma.hbm_to_vmem [thread:$0]  %s43, 32768, %s45, [#allocation5], 1024, 1024, 64
    $region25: #{_lambda_.14} parent=1 // pred_fallthru
      _
    // Predicated region
    $region26: #{_lambda_.14} parent=1 // pred_check
      _
    $region27: #{_lambda_.14} parent=1 // pred_check_branch
      %52 = sbr.rel (0) target = $region29
    $region28: #{_lambda_.14} parent=1 // pred_region
      _
    $region29: #{_lambda_.14} parent=1 // pred_fallthru
      _
    // Predicated region
    $region30: #{_lambda_.14} parent=1 // pred_check
      _
    $region31: #{_lambda_.14} parent=1 // pred_check_branch
      %54 = sbr.rel (0) target = $region33
    $region32: #{_lambda_.14} parent=1 // pred_region
      _
    $region33: #{_lambda_.14} parent=1 // pred_fallthru
      _
    // Predicated region
    $region34: #{_lambda_.14} parent=1 // pred_check
      _
    $region35: #{_lambda_.14} parent=1 // pred_check_branch
      %56 = sbr.rel (0) target = $region37
    $region36: #{_lambda_.14} parent=1 // pred_region
      _
    $region37: #{_lambda_.14} parent=1 // pred_fallthru
      _
    // Predicated region
    $region38: #{_lambda_.14} parent=1 // pred_check
      _
    $region39: #{_lambda_.14} parent=1 // pred_check_branch
      %58 = sbr.rel (0) target = $region41
    $region40: #{_lambda_.14} parent=1 // pred_region
      _
    $region41: #{_lambda_.14} parent=1 // pred_fallthru
      _
    // Predicated region
    $region42: #{_lambda_.14} parent=1 // pred_check
      _
    $region43: #{_lambda_.14} parent=1 // pred_check_branch
      %60 = sbr.rel (0) target = $region45
    $region44: #{_lambda_.14} parent=1 // pred_region
      %62 = dma.done [#allocation3], 32768
    $region45: #{_lambda_.14} parent=1 // pred_fallthru
      _
    // Predicated region
    $region46: #{_lambda_.14} parent=1 // pred_check
      _
    $region47: #{_lambda_.14} parent=1 // pred_check_branch
      %64 = sbr.rel (0) target = $region49
    $region48: #{_lambda_.14} parent=1 // pred_region
      %66 = dma.done [#allocation5], 32768
    $region49: #{_lambda_.14} parent=1 // pred_fallthru
      _
    %v67 = vld [vmem:[%s0] sm:$0xff]
    %v68 = vld [vmem:[%s0 + $0x8] sm:$0xff]
    %v69 = vld [vmem:[%s1] sm:$0x1]
    %v70 = vld [vmem:[%s1 + $0x1] sm:$0x1]
    %v71 = vld [vmem:[%s1 + $0x2] sm:$0x1]
    %v72 = vmul.f32 %v67, %v67
    %v73 = vmul.f32 %v68, %v68
    %v74 = vperm.slane %v69, 0
    %v75 = vmul.f32 %v72, %v74
    %v76 = vmul.f32 %v73, %v74
    %77 = vadd.xlane.f32.xlu0 %v75
    %v78 = vpop.xlane.xlu0 %77
    %79 = vadd.xlane.f32.xlu0 %v76
    %v80 = vpop.xlane.xlu0 %79
    %v81 = vmul.f32 %v78, 0.2
    %v82 = vmul.f32 %v80, 0.2
    %v83 = vadd.f32 %v81, 1e-06
    %v84 = vadd.f32 %v82, 1e-06
    %v85 = vrsqrt.pop %v83
    %v86 = vmul.f32 %v85, %v83
    %v87 = vmul.f32 %v86, %v85
    %v88 = vmul.f32 0.5, %v87
    %v89 = vsub.f32 1.5, %v88
    %v90 = vmul.f32 %v85, %v89
    %vm91 = vweird.f32 %v83
    %vm92 = vweird.f32 %v85
    %vm93 = vmor %vm91, %vm92
    %v94 = vsel %vm93, %v85, %v90
    %v95 = vrsqrt.pop %v84
    %v96 = vmul.f32 %v95, %v84
    %v97 = vmul.f32 %v96, %v95
    %v98 = vmul.f32 0.5, %v97
    %v99 = vsub.f32 1.5, %v98
    %v100 = vmul.f32 %v95, %v99
    %vm101 = vweird.f32 %v84
    %vm102 = vweird.f32 %v95
    %vm103 = vmor %vm101, %vm102
    %v104 = vsel %vm103, %v95, %v100
    %v105 = vperm.slane %v70, 0
    %v106 = vmul.f32 %v105, %v94
    %v107 = vmul.f32 %v105, %v104
    %v108 = vperm.slane %v71, 0
    %v109 = vmul.f32 %v72, %v108
    %v110 = vmul.f32 %v73, %v108
    %111 = vadd.xlane.f32.xlu0 %v109
    %v112 = vpop.xlane.xlu0 %111
    %113 = vadd.xlane.f32.xlu0 %v110
    %v114 = vpop.xlane.xlu0 %113
    %v115 = vmul.f32 %v112, 0.2
    %v116 = vmul.f32 %v114, 0.2
    %v117 = vadd.f32 %v115, 1e-06
    %v118 = vadd.f32 %v116, 1e-06
    %v119 = vrsqrt.pop %v117
    %v120 = vmul.f32 %v119, %v117
    %v121 = vmul.f32 %v120, %v119
    %v122 = vmul.f32 0.5, %v121
    %v123 = vsub.f32 1.5, %v122
    %v124 = vmul.f32 %v119, %v123
    %vm125 = vweird.f32 %v117
    %vm126 = vweird.f32 %v119
    %vm127 = vmor %vm125, %vm126
    %v128 = vsel %vm127, %v119, %v124
    %v129 = vrsqrt.pop %v118
    %v130 = vmul.f32 %v129, %v118
    %v131 = vmul.f32 %v130, %v129
    %v132 = vmul.f32 0.5, %v131
    %v133 = vsub.f32 1.5, %v132
    %v134 = vmul.f32 %v129, %v133
    %vm135 = vweird.f32 %v118
    %vm136 = vweird.f32 %v129
    %vm137 = vmor %vm135, %vm136
    %v138 = vsel %vm137, %v129, %v134
    %v139 = vmul.f32 %v108, %v128
    %v140 = vmul.f32 %v108, %v138
    %v141 = vadd.f32 %v106, %v139
    %v142 = vadd.f32 %v107, %v140
    %v143 = vmul.f32 %v67, %v141
    %v144 = vmul.f32 %v68, %v142
    %v145 = vpack.c.bf16 %v144, %v143
    %v146 = vld [vmem:[%s2] sm:$0xff]
    %v147 = vld [vmem:[%s2 + $0x8] sm:$0xff]
    %v148 = vld [vmem:[%s2 + $0x10] sm:$0xff]
    %v149 = vld [vmem:[%s2 + $0x18] sm:$0xff]
    %v150 = vld [vmem:[%s2 + $0x20] sm:$0xff]
    %v151 = vld [vmem:[%s2 + $0x28] sm:$0xff]
    %v152 = vld [vmem:[%s2 + $0x30] sm:$0xff]
    %v153 = vld [vmem:[%s2 + $0x38] sm:$0xff]
    %v154 = vld [vmem:[%s2 + $0x40] sm:$0xff]
    %v155 = vld [vmem:[%s2 + $0x48] sm:$0xff]
    %v156 = vld [vmem:[%s2 + $0x50] sm:$0xff]
    %v157 = vld [vmem:[%s2 + $0x58] sm:$0xff]
    %v158 = vld [vmem:[%s2 + $0x60] sm:$0xff]
    %v159 = vld [vmem:[%s2 + $0x68] sm:$0xff]
    %v160 = vld [vmem:[%s2 + $0x70] sm:$0xff]
    %v161 = vld [vmem:[%s2 + $0x78] sm:$0xff]
    %v162 = vld [vmem:[%s3] sm:$0x3]
    %v164 = vperm.slane %v162, 0
    %v165 = vperm.slane %v162, 1
    %v184 = vunpack.c.l.b16 %v146
    %v185 = vunpack.c.h.b16 %v146
    %v186 = vunpack.c.l.b16 %v147
    %v187 = vunpack.c.h.b16 %v147
    %v188 = vunpack.c.l.b16 %v148
    %v189 = vunpack.c.h.b16 %v148
    %v190 = vunpack.c.l.b16 %v149
    %v191 = vunpack.c.h.b16 %v149
    %v192 = vunpack.c.l.b16 %v150
    %v193 = vunpack.c.h.b16 %v150
    %v194 = vunpack.c.l.b16 %v151
    %v195 = vunpack.c.h.b16 %v151
    %v196 = vunpack.c.l.b16 %v152
    %v197 = vunpack.c.h.b16 %v152
    %v198 = vunpack.c.l.b16 %v153
    %v199 = vunpack.c.h.b16 %v153
    %v200 = vunpack.c.l.b16 %v154
    %v201 = vunpack.c.h.b16 %v154
    %v202 = vunpack.c.l.b16 %v155
    %v203 = vunpack.c.h.b16 %v155
    %v204 = vunpack.c.l.b16 %v156
    %v205 = vunpack.c.h.b16 %v156
    %v206 = vunpack.c.l.b16 %v157
    %v207 = vunpack.c.h.b16 %v157
    %v208 = vunpack.c.l.b16 %v158
    %v209 = vunpack.c.h.b16 %v158
    %v210 = vunpack.c.l.b16 %v159
    %v211 = vunpack.c.h.b16 %v159
    %v212 = vunpack.c.l.b16 %v160
    %v213 = vunpack.c.h.b16 %v160
    %v214 = vunpack.c.l.b16 %v161
    %v215 = vunpack.c.h.b16 %v161
    %v216 = vpack.c.b16 %v186, %v184
    %v217 = vpack.c.b16 %v187, %v185
    %v218 = vpack.c.b16 %v190, %v188
    %v219 = vpack.c.b16 %v191, %v189
    %v220 = vpack.c.b16 %v194, %v192
    %v221 = vpack.c.b16 %v195, %v193
    %v222 = vpack.c.b16 %v198, %v196
    %v223 = vpack.c.b16 %v199, %v197
    %v224 = vpack.c.b16 %v202, %v200
    %v225 = vpack.c.b16 %v203, %v201
    %v226 = vpack.c.b16 %v206, %v204
    %v227 = vpack.c.b16 %v207, %v205
    %v228 = vpack.c.b16 %v210, %v208
    %v229 = vpack.c.b16 %v211, %v209
    %v230 = vpack.c.b16 %v214, %v212
    %v231 = vpack.c.b16 %v215, %v213
    %248 = vmatpush.bf16.msra.mxu0 %v230
    %249 = vmatpush.bf16.msra.mxu0 %v228
    %250 = vmatpush.bf16.msra.mxu0 %v226
    %251 = vmatpush.bf16.msra.mxu0 %v224
    %252 = vmatpush.bf16.msra.mxu0 %v222
    %253 = vmatpush.bf16.msra.mxu0 %v220
    %254 = vmatpush.bf16.msra.mxu0 %v218
    %255 = vmatpush.bf16.msra.mxu0 %v216
    %256 = vmatmul.bf16.gmra.mxu0 %v145
    %v257 = vpop.f32.mrf.mxu0
    %v258 = vadd.f32 %v164, %v257
    %v259 = vpop.f32.mrf.mxu0
    %v260 = vadd.f32 %v164, %v259
    %261 = vdwg.mxu0
    %262 = vmatpush.bf16.msra.mxu0 %v231
    %263 = vmatpush.bf16.msra.mxu0 %v229
    %264 = vmatpush.bf16.msra.mxu0 %v227
    %265 = vmatpush.bf16.msra.mxu0 %v225
    %266 = vmatpush.bf16.msra.mxu0 %v223
    %267 = vmatpush.bf16.msra.mxu0 %v221
    %268 = vmatpush.bf16.msra.mxu0 %v219
    %269 = vmatpush.bf16.msra.mxu0 %v217
    %270 = vmatmul.bf16.gmra.mxu0 %v145
    %v271 = vpop.f32.mrf.mxu0
    %v272 = vadd.f32 %v165, %v271
    %v273 = vpop.f32.mrf.mxu0
    %v274 = vadd.f32 %v165, %v273
    %275 = vdwg.mxu0
    %v276 = vpack.c.bf16 %v260, %v258
    %v277 = vpack.c.bf16 %v274, %v272
    %v278 = vld [vmem:[#allocation2] sm:$0xff]
    %v279 = vld [vmem:[#allocation2 + $0x8] sm:$0xff]
    %v280 = vld [vmem:[#allocation2 + $0x10] sm:$0xff]
    %v281 = vld [vmem:[#allocation2 + $0x18] sm:$0xff]
    %v282 = vld [vmem:[#allocation2 + $0x20] sm:$0xff]
    %v283 = vld [vmem:[#allocation2 + $0x28] sm:$0xff]
    %v284 = vld [vmem:[#allocation2 + $0x30] sm:$0xff]
    %v285 = vld [vmem:[#allocation2 + $0x38] sm:$0xff]
    %v286 = vld [vmem:[#allocation2 + $0x40] sm:$0xff]
    %v287 = vld [vmem:[#allocation2 + $0x48] sm:$0xff]
    %v288 = vld [vmem:[#allocation2 + $0x50] sm:$0xff]
    %v289 = vld [vmem:[#allocation2 + $0x58] sm:$0xff]
    %v290 = vld [vmem:[#allocation2 + $0x60] sm:$0xff]
    %v291 = vld [vmem:[#allocation2 + $0x68] sm:$0xff]
    %v292 = vld [vmem:[#allocation2 + $0x70] sm:$0xff]
    %v293 = vld [vmem:[#allocation2 + $0x78] sm:$0xff]
    %v294 = vld [vmem:[#allocation2 + $0x80] sm:$0xff]
    %v295 = vld [vmem:[#allocation2 + $0x88] sm:$0xff]
    %v296 = vld [vmem:[#allocation2 + $0x90] sm:$0xff]
    %v297 = vld [vmem:[#allocation2 + $0x98] sm:$0xff]
    %v298 = vld [vmem:[#allocation2 + $0xa0] sm:$0xff]
    %v299 = vld [vmem:[#allocation2 + $0xa8] sm:$0xff]
    %v300 = vld [vmem:[#allocation2 + $0xb0] sm:$0xff]
    %v301 = vld [vmem:[#allocation2 + $0xb8] sm:$0xff]
    %v302 = vld [vmem:[#allocation2 + $0xc0] sm:$0xff]
    %v303 = vld [vmem:[#allocation2 + $0xc8] sm:$0xff]
    %v304 = vld [vmem:[#allocation2 + $0xd0] sm:$0xff]
    %v305 = vld [vmem:[#allocation2 + $0xd8] sm:$0xff]
    %v306 = vld [vmem:[#allocation2 + $0xe0] sm:$0xff]
    %v307 = vld [vmem:[#allocation2 + $0xe8] sm:$0xff]
    %v308 = vld [vmem:[#allocation2 + $0xf0] sm:$0xff]
    %v309 = vld [vmem:[#allocation2 + $0xf8] sm:$0xff]
    %v310 = vld [vmem:[#allocation2 + $0x100] sm:$0xff]
    %v311 = vld [vmem:[#allocation2 + $0x108] sm:$0xff]
    %v312 = vld [vmem:[#allocation2 + $0x110] sm:$0xff]
    %v313 = vld [vmem:[#allocation2 + $0x118] sm:$0xff]
    %v314 = vld [vmem:[#allocation2 + $0x120] sm:$0xff]
    %v315 = vld [vmem:[#allocation2 + $0x128] sm:$0xff]
    %v316 = vld [vmem:[#allocation2 + $0x130] sm:$0xff]
    %v317 = vld [vmem:[#allocation2 + $0x138] sm:$0xff]
    %v318 = vld [vmem:[#allocation2 + $0x140] sm:$0xff]
    %v319 = vld [vmem:[#allocation2 + $0x148] sm:$0xff]
    %v320 = vld [vmem:[#allocation2 + $0x150] sm:$0xff]
    %v321 = vld [vmem:[#allocation2 + $0x158] sm:$0xff]
    %v322 = vld [vmem:[#allocation2 + $0x160] sm:$0xff]
    %v323 = vld [vmem:[#allocation2 + $0x168] sm:$0xff]
    %v324 = vld [vmem:[#allocation2 + $0x170] sm:$0xff]
    %v325 = vld [vmem:[#allocation2 + $0x178] sm:$0xff]
    %v326 = vld [vmem:[#allocation2 + $0x180] sm:$0xff]
    %v327 = vld [vmem:[#allocation2 + $0x188] sm:$0xff]
    %v328 = vld [vmem:[#allocation2 + $0x190] sm:$0xff]
    %v329 = vld [vmem:[#allocation2 + $0x198] sm:$0xff]
    %v330 = vld [vmem:[#allocation2 + $0x1a0] sm:$0xff]
    %v331 = vld [vmem:[#allocation2 + $0x1a8] sm:$0xff]
    %v332 = vld [vmem:[#allocation2 + $0x1b0] sm:$0xff]
    %v333 = vld [vmem:[#allocation2 + $0x1b8] sm:$0xff]
    %v334 = vld [vmem:[#allocation2 + $0x1c0] sm:$0xff]
    %v335 = vld [vmem:[#allocation2 + $0x1c8] sm:$0xff]
    %v336 = vld [vmem:[#allocation2 + $0x1d0] sm:$0xff]
    %v337 = vld [vmem:[#allocation2 + $0x1d8] sm:$0xff]
    %v338 = vld [vmem:[#allocation2 + $0x1e0] sm:$0xff]
    %v339 = vld [vmem:[#allocation2 + $0x1e8] sm:$0xff]
    %v340 = vld [vmem:[#allocation2 + $0x1f0] sm:$0xff]
    %v341 = vld [vmem:[#allocation2 + $0x1f8] sm:$0xff]
    %v342 = vld [vmem:[#allocation2 + $0x200] sm:$0xff]
    %v343 = vld [vmem:[#allocation2 + $0x208] sm:$0xff]
    %v344 = vld [vmem:[#allocation2 + $0x210] sm:$0xff]
    %v345 = vld [vmem:[#allocation2 + $0x218] sm:$0xff]
    %v346 = vld [vmem:[#allocation2 + $0x220] sm:$0xff]
    %v347 = vld [vmem:[#allocation2 + $0x228] sm:$0xff]
    %v348 = vld [vmem:[#allocation2 + $0x230] sm:$0xff]
    %v349 = vld [vmem:[#allocation2 + $0x238] sm:$0xff]
    %v350 = vld [vmem:[#allocation2 + $0x240] sm:$0xff]
    %v351 = vld [vmem:[#allocation2 + $0x248] sm:$0xff]
    %v352 = vld [vmem:[#allocation2 + $0x250] sm:$0xff]
    %v353 = vld [vmem:[#allocation2 + $0x258] sm:$0xff]
    %v354 = vld [vmem:[#allocation2 + $0x260] sm:$0xff]
    %v355 = vld [vmem:[#allocation2 + $0x268] sm:$0xff]
    %v356 = vld [vmem:[#allocation2 + $0x270] sm:$0xff]
    %v357 = vld [vmem:[#allocation2 + $0x278] sm:$0xff]
    %v358 = vld [vmem:[#allocation2 + $0x280] sm:$0xff]
    %v359 = vld [vmem:[#allocation2 + $0x288] sm:$0xff]
    %v360 = vld [vmem:[#allocation2 + $0x290] sm:$0xff]
    %v361 = vld [vmem:[#allocation2 + $0x298] sm:$0xff]
    %v362 = vld [vmem:[#allocation2 + $0x2a0] sm:$0xff]
    %v363 = vld [vmem:[#allocation2 + $0x2a8] sm:$0xff]
    %v364 = vld [vmem:[#allocation2 + $0x2b0] sm:$0xff]
    %v365 = vld [vmem:[#allocation2 + $0x2b8] sm:$0xff]
    %v366 = vld [vmem:[#allocation2 + $0x2c0] sm:$0xff]
    %v367 = vld [vmem:[#allocation2 + $0x2c8] sm:$0xff]
    %v368 = vld [vmem:[#allocation2 + $0x2d0] sm:$0xff]
    %v369 = vld [vmem:[#allocation2 + $0x2d8] sm:$0xff]
    %v370 = vld [vmem:[#allocation2 + $0x2e0] sm:$0xff]
    %v371 = vld [vmem:[#allocation2 + $0x2e8] sm:$0xff]
    %v372 = vld [vmem:[#allocation2 + $0x2f0] sm:$0xff]
    %v373 = vld [vmem:[#allocation2 + $0x2f8] sm:$0xff]
    %v374 = vld [vmem:[#allocation2 + $0x300] sm:$0xff]
    %v375 = vld [vmem:[#allocation2 + $0x308] sm:$0xff]
    %v376 = vld [vmem:[#allocation2 + $0x310] sm:$0xff]
    %v377 = vld [vmem:[#allocation2 + $0x318] sm:$0xff]
    %v378 = vld [vmem:[#allocation2 + $0x320] sm:$0xff]
    %v379 = vld [vmem:[#allocation2 + $0x328] sm:$0xff]
    %v380 = vld [vmem:[#allocation2 + $0x330] sm:$0xff]
    %v381 = vld [vmem:[#allocation2 + $0x338] sm:$0xff]
    %v382 = vld [vmem:[#allocation2 + $0x340] sm:$0xff]
    %v383 = vld [vmem:[#allocation2 + $0x348] sm:$0xff]
    %v384 = vld [vmem:[#allocation2 + $0x350] sm:$0xff]
    %v385 = vld [vmem:[#allocation2 + $0x358] sm:$0xff]
    %v386 = vld [vmem:[#allocation2 + $0x360] sm:$0xff]
    %v387 = vld [vmem:[#allocation2 + $0x368] sm:$0xff]
    %v388 = vld [vmem:[#allocation2 + $0x370] sm:$0xff]
    %v389 = vld [vmem:[#allocation2 + $0x378] sm:$0xff]
    %v390 = vld [vmem:[#allocation2 + $0x380] sm:$0xff]
    %v391 = vld [vmem:[#allocation2 + $0x388] sm:$0xff]
    %v392 = vld [vmem:[#allocation2 + $0x390] sm:$0xff]
    %v393 = vld [vmem:[#allocation2 + $0x398] sm:$0xff]
    %v394 = vld [vmem:[#allocation2 + $0x3a0] sm:$0xff]
    %v395 = vld [vmem:[#allocation2 + $0x3a8] sm:$0xff]
    %v396 = vld [vmem:[#allocation2 + $0x3b0] sm:$0xff]
    %v397 = vld [vmem:[#allocation2 + $0x3b8] sm:$0xff]
    %v398 = vld [vmem:[#allocation2 + $0x3c0] sm:$0xff]
    %v399 = vld [vmem:[#allocation2 + $0x3c8] sm:$0xff]
    %v400 = vld [vmem:[#allocation2 + $0x3d0] sm:$0xff]
    %v401 = vld [vmem:[#allocation2 + $0x3d8] sm:$0xff]
    %v402 = vld [vmem:[#allocation2 + $0x3e0] sm:$0xff]
    %v403 = vld [vmem:[#allocation2 + $0x3e8] sm:$0xff]
    %v404 = vld [vmem:[#allocation2 + $0x3f0] sm:$0xff]
    %v405 = vld [vmem:[#allocation2 + $0x3f8] sm:$0xff]
    %v406 = vld [vmem:[#allocation2 + $0x400] sm:$0xff]
    %v407 = vld [vmem:[#allocation2 + $0x408] sm:$0xff]
    %v408 = vld [vmem:[#allocation2 + $0x410] sm:$0xff]
    %v409 = vld [vmem:[#allocation2 + $0x418] sm:$0xff]
    %v410 = vld [vmem:[#allocation2 + $0x420] sm:$0xff]
    %v411 = vld [vmem:[#allocation2 + $0x428] sm:$0xff]
    %v412 = vld [vmem:[#allocation2 + $0x430] sm:$0xff]
    %v413 = vld [vmem:[#allocation2 + $0x438] sm:$0xff]
    %v414 = vld [vmem:[#allocation2 + $0x440] sm:$0xff]
    %v415 = vld [vmem:[#allocation2 + $0x448] sm:$0xff]
    %v416 = vld [vmem:[#allocation2 + $0x450] sm:$0xff]
    %v417 = vld [vmem:[#allocation2 + $0x458] sm:$0xff]
    %v418 = vld [vmem:[#allocation2 + $0x460] sm:$0xff]
    %v419 = vld [vmem:[#allocation2 + $0x468] sm:$0xff]
    %v420 = vld [vmem:[#allocation2 + $0x470] sm:$0xff]
    %v421 = vld [vmem:[#allocation2 + $0x478] sm:$0xff]
    %v422 = vld [vmem:[#allocation2 + $0x480] sm:$0xff]
    %v423 = vld [vmem:[#allocation2 + $0x488] sm:$0xff]
    %v424 = vld [vmem:[#allocation2 + $0x490] sm:$0xff]
    %v425 = vld [vmem:[#allocation2 + $0x498] sm:$0xff]
    %v426 = vld [vmem:[#allocation2 + $0x4a0] sm:$0xff]
    %v427 = vld [vmem:[#allocation2 + $0x4a8] sm:$0xff]
    %v428 = vld [vmem:[#allocation2 + $0x4b0] sm:$0xff]
    %v429 = vld [vmem:[#allocation2 + $0x4b8] sm:$0xff]
    %v430 = vld [vmem:[#allocation2 + $0x4c0] sm:$0xff]
    %v431 = vld [vmem:[#allocation2 + $0x4c8] sm:$0xff]
    %v432 = vld [vmem:[#allocation2 + $0x4d0] sm:$0xff]
    %v433 = vld [vmem:[#allocation2 + $0x4d8] sm:$0xff]
    %v434 = vld [vmem:[#allocation2 + $0x4e0] sm:$0xff]
    %v435 = vld [vmem:[#allocation2 + $0x4e8] sm:$0xff]
    %v436 = vld [vmem:[#allocation2 + $0x4f0] sm:$0xff]
    %v437 = vld [vmem:[#allocation2 + $0x4f8] sm:$0xff]
    %v438 = vld [vmem:[#allocation2 + $0x500] sm:$0xff]
    %v439 = vld [vmem:[#allocation2 + $0x508] sm:$0xff]
    %v440 = vld [vmem:[#allocation2 + $0x510] sm:$0xff]
    %v441 = vld [vmem:[#allocation2 + $0x518] sm:$0xff]
    %v442 = vld [vmem:[#allocation2 + $0x520] sm:$0xff]
    %v443 = vld [vmem:[#allocation2 + $0x528] sm:$0xff]
    %v444 = vld [vmem:[#allocation2 + $0x530] sm:$0xff]
    %v445 = vld [vmem:[#allocation2 + $0x538] sm:$0xff]
    %v446 = vld [vmem:[#allocation2 + $0x540] sm:$0xff]
    %v447 = vld [vmem:[#allocation2 + $0x548] sm:$0xff]
    %v448 = vld [vmem:[#allocation2 + $0x550] sm:$0xff]
    %v449 = vld [vmem:[#allocation2 + $0x558] sm:$0xff]
    %v450 = vld [vmem:[#allocation2 + $0x560] sm:$0xff]
    %v451 = vld [vmem:[#allocation2 + $0x568] sm:$0xff]
    %v452 = vld [vmem:[#allocation2 + $0x570] sm:$0xff]
    %v453 = vld [vmem:[#allocation2 + $0x578] sm:$0xff]
    %v454 = vld [vmem:[#allocation2 + $0x580] sm:$0xff]
    %v455 = vld [vmem:[#allocation2 + $0x588] sm:$0xff]
    %v456 = vld [vmem:[#allocation2 + $0x590] sm:$0xff]
    %v457 = vld [vmem:[#allocation2 + $0x598] sm:$0xff]
    %v458 = vld [vmem:[#allocation2 + $0x5a0] sm:$0xff]
    %v459 = vld [vmem:[#allocation2 + $0x5a8] sm:$0xff]
    %v460 = vld [vmem:[#allocation2 + $0x5b0] sm:$0xff]
    %v461 = vld [vmem:[#allocation2 + $0x5b8] sm:$0xff]
    %v462 = vld [vmem:[#allocation2 + $0x5c0] sm:$0xff]
    %v463 = vld [vmem:[#allocation2 + $0x5c8] sm:$0xff]
    %v464 = vld [vmem:[#allocation2 + $0x5d0] sm:$0xff]
    %v465 = vld [vmem:[#allocation2 + $0x5d8] sm:$0xff]
    %v466 = vld [vmem:[#allocation2 + $0x5e0] sm:$0xff]
    %v467 = vld [vmem:[#allocation2 + $0x5e8] sm:$0xff]
    %v468 = vld [vmem:[#allocation2 + $0x5f0] sm:$0xff]
    %v469 = vld [vmem:[#allocation2 + $0x5f8] sm:$0xff]
    %v470 = vld [vmem:[#allocation2 + $0x600] sm:$0xff]
    %v471 = vld [vmem:[#allocation2 + $0x608] sm:$0xff]
    %v472 = vld [vmem:[#allocation2 + $0x610] sm:$0xff]
    %v473 = vld [vmem:[#allocation2 + $0x618] sm:$0xff]
    %v474 = vld [vmem:[#allocation2 + $0x620] sm:$0xff]
    %v475 = vld [vmem:[#allocation2 + $0x628] sm:$0xff]
    %v476 = vld [vmem:[#allocation2 + $0x630] sm:$0xff]
    %v477 = vld [vmem:[#allocation2 + $0x638] sm:$0xff]
    %v478 = vld [vmem:[#allocation2 + $0x640] sm:$0xff]
    %v479 = vld [vmem:[#allocation2 + $0x648] sm:$0xff]
    %v480 = vld [vmem:[#allocation2 + $0x650] sm:$0xff]
    %v481 = vld [vmem:[#allocation2 + $0x658] sm:$0xff]
    %v482 = vld [vmem:[#allocation2 + $0x660] sm:$0xff]
    %v483 = vld [vmem:[#allocation2 + $0x668] sm:$0xff]
    %v484 = vld [vmem:[#allocation2 + $0x670] sm:$0xff]
    %v485 = vld [vmem:[#allocation2 + $0x678] sm:$0xff]
    %v486 = vld [vmem:[#allocation2 + $0x680] sm:$0xff]
    %v487 = vld [vmem:[#allocation2 + $0x688] sm:$0xff]
    %v488 = vld [vmem:[#allocation2 + $0x690] sm:$0xff]
    %v489 = vld [vmem:[#allocation2 + $0x698] sm:$0xff]
    %v490 = vld [vmem:[#allocation2 + $0x6a0] sm:$0xff]
    %v491 = vld [vmem:[#allocation2 + $0x6a8] sm:$0xff]
    %v492 = vld [vmem:[#allocation2 + $0x6b0] sm:$0xff]
    %v493 = vld [vmem:[#allocation2 + $0x6b8] sm:$0xff]
    %v494 = vld [vmem:[#allocation2 + $0x6c0] sm:$0xff]
    %v495 = vld [vmem:[#allocation2 + $0x6c8] sm:$0xff]
    %v496 = vld [vmem:[#allocation2 + $0x6d0] sm:$0xff]
    %v497 = vld [vmem:[#allocation2 + $0x6d8] sm:$0xff]
    %v498 = vld [vmem:[#allocation2 + $0x6e0] sm:$0xff]
    %v499 = vld [vmem:[#allocation2 + $0x6e8] sm:$0xff]
    %v500 = vld [vmem:[#allocation2 + $0x6f0] sm:$0xff]
    %v501 = vld [vmem:[#allocation2 + $0x6f8] sm:$0xff]
    %v502 = vld [vmem:[#allocation2 + $0x700] sm:$0xff]
    %v503 = vld [vmem:[#allocation2 + $0x708] sm:$0xff]
    %v504 = vld [vmem:[#allocation2 + $0x710] sm:$0xff]
    %v505 = vld [vmem:[#allocation2 + $0x718] sm:$0xff]
    %v506 = vld [vmem:[#allocation2 + $0x720] sm:$0xff]
    %v507 = vld [vmem:[#allocation2 + $0x728] sm:$0xff]
    %v508 = vld [vmem:[#allocation2 + $0x730] sm:$0xff]
    %v509 = vld [vmem:[#allocation2 + $0x738] sm:$0xff]
    %v510 = vld [vmem:[#allocation2 + $0x740] sm:$0xff]
    %v511 = vld [vmem:[#allocation2 + $0x748] sm:$0xff]
    %v512 = vld [vmem:[#allocation2 + $0x750] sm:$0xff]
    %v513 = vld [vmem:[#allocation2 + $0x758] sm:$0xff]
    %v514 = vld [vmem:[#allocation2 + $0x760] sm:$0xff]
    %v515 = vld [vmem:[#allocation2 + $0x768] sm:$0xff]
    %v516 = vld [vmem:[#allocation2 + $0x770] sm:$0xff]
    %v517 = vld [vmem:[#allocation2 + $0x778] sm:$0xff]
    %v518 = vld [vmem:[#allocation2 + $0x780] sm:$0xff]
    %v519 = vld [vmem:[#allocation2 + $0x788] sm:$0xff]
    %v520 = vld [vmem:[#allocation2 + $0x790] sm:$0xff]
    %v521 = vld [vmem:[#allocation2 + $0x798] sm:$0xff]
    %v522 = vld [vmem:[#allocation2 + $0x7a0] sm:$0xff]
    %v523 = vld [vmem:[#allocation2 + $0x7a8] sm:$0xff]
    %v524 = vld [vmem:[#allocation2 + $0x7b0] sm:$0xff]
    %v525 = vld [vmem:[#allocation2 + $0x7b8] sm:$0xff]
    %v526 = vld [vmem:[#allocation2 + $0x7c0] sm:$0xff]
    %v527 = vld [vmem:[#allocation2 + $0x7c8] sm:$0xff]
    %v528 = vld [vmem:[#allocation2 + $0x7d0] sm:$0xff]
    %v529 = vld [vmem:[#allocation2 + $0x7d8] sm:$0xff]
    %v530 = vld [vmem:[#allocation2 + $0x7e0] sm:$0xff]
    %v531 = vld [vmem:[#allocation2 + $0x7e8] sm:$0xff]
    %v532 = vld [vmem:[#allocation2 + $0x7f0] sm:$0xff]
    %v533 = vld [vmem:[#allocation2 + $0x7f8] sm:$0xff]
    %v790 = vunpack.c.l.b16 %v278
    %v791 = vunpack.c.h.b16 %v278
    %v792 = vunpack.c.l.b16 %v279
    %v793 = vunpack.c.h.b16 %v279
    %v794 = vunpack.c.l.b16 %v280
    %v795 = vunpack.c.h.b16 %v280
    %v796 = vunpack.c.l.b16 %v281
    %v797 = vunpack.c.h.b16 %v281
    %v798 = vunpack.c.l.b16 %v282
    %v799 = vunpack.c.h.b16 %v282
    %v800 = vunpack.c.l.b16 %v283
    %v801 = vunpack.c.h.b16 %v283
    %v802 = vunpack.c.l.b16 %v284
    %v803 = vunpack.c.h.b16 %v284
    %v804 = vunpack.c.l.b16 %v285
    %v805 = vunpack.c.h.b16 %v285
    %v806 = vunpack.c.l.b16 %v286
    %v807 = vunpack.c.h.b16 %v286
    %v808 = vunpack.c.l.b16 %v287
    %v809 = vunpack.c.h.b16 %v287
    %v810 = vunpack.c.l.b16 %v288
    %v811 = vunpack.c.h.b16 %v288
    %v812 = vunpack.c.l.b16 %v289
    %v813 = vunpack.c.h.b16 %v289
    %v814 = vunpack.c.l.b16 %v290
    %v815 = vunpack.c.h.b16 %v290
    %v816 = vunpack.c.l.b16 %v291
    %v817 = vunpack.c.h.b16 %v291
    %v818 = vunpack.c.l.b16 %v292
    %v819 = vunpack.c.h.b16 %v292
    %v820 = vunpack.c.l.b16 %v293
    %v821 = vunpack.c.h.b16 %v293
    %v822 = vunpack.c.l.b16 %v294
    %v823 = vunpack.c.h.b16 %v294
    %v824 = vunpack.c.l.b16 %v295
    %v825 = vunpack.c.h.b16 %v295
    %v826 = vunpack.c.l.b16 %v296
    %v827 = vunpack.c.h.b16 %v296
    %v828 = vunpack.c.l.b16 %v297
    %v829 = vunpack.c.h.b16 %v297
    %v830 = vunpack.c.l.b16 %v298
    %v831 = vunpack.c.h.b16 %v298
    %v832 = vunpack.c.l.b16 %v299
    %v833 = vunpack.c.h.b16 %v299
    %v834 = vunpack.c.l.b16 %v300
    %v835 = vunpack.c.h.b16 %v300
    %v836 = vunpack.c.l.b16 %v301
    %v837 = vunpack.c.h.b16 %v301
    %v838 = vunpack.c.l.b16 %v302
    %v839 = vunpack.c.h.b16 %v302
    %v840 = vunpack.c.l.b16 %v303
    %v841 = vunpack.c.h.b16 %v303
    %v842 = vunpack.c.l.b16 %v304
    %v843 = vunpack.c.h.b16 %v304
    %v844 = vunpack.c.l.b16 %v305
    %v845 = vunpack.c.h.b16 %v305
    %v846 = vunpack.c.l.b16 %v306
    %v847 = vunpack.c.h.b16 %v306
    %v848 = vunpack.c.l.b16 %v307
    %v849 = vunpack.c.h.b16 %v307
    %v850 = vunpack.c.l.b16 %v308
    %v851 = vunpack.c.h.b16 %v308
    %v852 = vunpack.c.l.b16 %v309
    %v853 = vunpack.c.h.b16 %v309
    %v854 = vunpack.c.l.b16 %v310
    %v855 = vunpack.c.h.b16 %v310
    %v856 = vunpack.c.l.b16 %v311
    %v857 = vunpack.c.h.b16 %v311
    %v858 = vunpack.c.l.b16 %v312
    %v859 = vunpack.c.h.b16 %v312
    %v860 = vunpack.c.l.b16 %v313
    %v861 = vunpack.c.h.b16 %v313
    %v862 = vunpack.c.l.b16 %v314
    %v863 = vunpack.c.h.b16 %v314
    %v864 = vunpack.c.l.b16 %v315
    %v865 = vunpack.c.h.b16 %v315
    %v866 = vunpack.c.l.b16 %v316
    %v867 = vunpack.c.h.b16 %v316
    %v868 = vunpack.c.l.b16 %v317
    %v869 = vunpack.c.h.b16 %v317
    %v870 = vunpack.c.l.b16 %v318
    %v871 = vunpack.c.h.b16 %v318
    %v872 = vunpack.c.l.b16 %v319
    %v873 = vunpack.c.h.b16 %v319
    %v874 = vunpack.c.l.b16 %v320
    %v875 = vunpack.c.h.b16 %v320
    %v876 = vunpack.c.l.b16 %v321
    %v877 = vunpack.c.h.b16 %v321
    %v878 = vunpack.c.l.b16 %v322
    %v879 = vunpack.c.h.b16 %v322
    %v880 = vunpack.c.l.b16 %v323
    %v881 = vunpack.c.h.b16 %v323
    %v882 = vunpack.c.l.b16 %v324
    %v883 = vunpack.c.h.b16 %v324
    %v884 = vunpack.c.l.b16 %v325
    %v885 = vunpack.c.h.b16 %v325
    %v886 = vunpack.c.l.b16 %v326
    %v887 = vunpack.c.h.b16 %v326
    %v888 = vunpack.c.l.b16 %v327
    %v889 = vunpack.c.h.b16 %v327
    %v890 = vunpack.c.l.b16 %v328
    %v891 = vunpack.c.h.b16 %v328
    %v892 = vunpack.c.l.b16 %v329
    %v893 = vunpack.c.h.b16 %v329
    %v894 = vunpack.c.l.b16 %v330
    %v895 = vunpack.c.h.b16 %v330
    %v896 = vunpack.c.l.b16 %v331
    %v897 = vunpack.c.h.b16 %v331
    %v898 = vunpack.c.l.b16 %v332
    %v899 = vunpack.c.h.b16 %v332
    %v900 = vunpack.c.l.b16 %v333
    %v901 = vunpack.c.h.b16 %v333
    %v902 = vunpack.c.l.b16 %v334
    %v903 = vunpack.c.h.b16 %v334
    %v904 = vunpack.c.l.b16 %v335
    %v905 = vunpack.c.h.b16 %v335
    %v906 = vunpack.c.l.b16 %v336
    %v907 = vunpack.c.h.b16 %v336
    %v908 = vunpack.c.l.b16 %v337
    %v909 = vunpack.c.h.b16 %v337
    %v910 = vunpack.c.l.b16 %v338
    %v911 = vunpack.c.h.b16 %v338
    %v912 = vunpack.c.l.b16 %v339
    %v913 = vunpack.c.h.b16 %v339
    %v914 = vunpack.c.l.b16 %v340
    %v915 = vunpack.c.h.b16 %v340
    %v916 = vunpack.c.l.b16 %v341
    %v917 = vunpack.c.h.b16 %v341
    %v918 = vunpack.c.l.b16 %v342
    %v919 = vunpack.c.h.b16 %v342
    %v920 = vunpack.c.l.b16 %v343
    %v921 = vunpack.c.h.b16 %v343
    %v922 = vunpack.c.l.b16 %v344
    %v923 = vunpack.c.h.b16 %v344
    %v924 = vunpack.c.l.b16 %v345
    %v925 = vunpack.c.h.b16 %v345
    %v926 = vunpack.c.l.b16 %v346
    %v927 = vunpack.c.h.b16 %v346
    %v928 = vunpack.c.l.b16 %v347
    %v929 = vunpack.c.h.b16 %v347
    %v930 = vunpack.c.l.b16 %v348
    %v931 = vunpack.c.h.b16 %v348
    %v932 = vunpack.c.l.b16 %v349
    %v933 = vunpack.c.h.b16 %v349
    %v934 = vunpack.c.l.b16 %v350
    %v935 = vunpack.c.h.b16 %v350
    %v936 = vunpack.c.l.b16 %v351
    %v937 = vunpack.c.h.b16 %v351
    %v938 = vunpack.c.l.b16 %v352
    %v939 = vunpack.c.h.b16 %v352
    %v940 = vunpack.c.l.b16 %v353
    %v941 = vunpack.c.h.b16 %v353
    %v942 = vunpack.c.l.b16 %v354
    %v943 = vunpack.c.h.b16 %v354
    %v944 = vunpack.c.l.b16 %v355
    %v945 = vunpack.c.h.b16 %v355
    %v946 = vunpack.c.l.b16 %v356
    %v947 = vunpack.c.h.b16 %v356
    %v948 = vunpack.c.l.b16 %v357
    %v949 = vunpack.c.h.b16 %v357
    %v950 = vunpack.c.l.b16 %v358
    %v951 = vunpack.c.h.b16 %v358
    %v952 = vunpack.c.l.b16 %v359
    %v953 = vunpack.c.h.b16 %v359
    %v954 = vunpack.c.l.b16 %v360
    %v955 = vunpack.c.h.b16 %v360
    %v956 = vunpack.c.l.b16 %v361
    %v957 = vunpack.c.h.b16 %v361
    %v958 = vunpack.c.l.b16 %v362
    %v959 = vunpack.c.h.b16 %v362
    %v960 = vunpack.c.l.b16 %v363
    %v961 = vunpack.c.h.b16 %v363
    %v962 = vunpack.c.l.b16 %v364
    %v963 = vunpack.c.h.b16 %v364
    %v964 = vunpack.c.l.b16 %v365
    %v965 = vunpack.c.h.b16 %v365
    %v966 = vunpack.c.l.b16 %v366
    %v967 = vunpack.c.h.b16 %v366
    %v968 = vunpack.c.l.b16 %v367
    %v969 = vunpack.c.h.b16 %v367
    %v970 = vunpack.c.l.b16 %v368
    %v971 = vunpack.c.h.b16 %v368
    %v972 = vunpack.c.l.b16 %v369
    %v973 = vunpack.c.h.b16 %v369
    %v974 = vunpack.c.l.b16 %v370
    %v975 = vunpack.c.h.b16 %v370
    %v976 = vunpack.c.l.b16 %v371
    %v977 = vunpack.c.h.b16 %v371
    %v978 = vunpack.c.l.b16 %v372
    %v979 = vunpack.c.h.b16 %v372
    %v980 = vunpack.c.l.b16 %v373
    %v981 = vunpack.c.h.b16 %v373
    %v982 = vunpack.c.l.b16 %v374
    %v983 = vunpack.c.h.b16 %v374
    %v984 = vunpack.c.l.b16 %v375
    %v985 = vunpack.c.h.b16 %v375
    %v986 = vunpack.c.l.b16 %v376
    %v987 = vunpack.c.h.b16 %v376
    %v988 = vunpack.c.l.b16 %v377
    %v989 = vunpack.c.h.b16 %v377
    %v990 = vunpack.c.l.b16 %v378
    %v991 = vunpack.c.h.b16 %v378
    %v992 = vunpack.c.l.b16 %v379
    %v993 = vunpack.c.h.b16 %v379
    %v994 = vunpack.c.l.b16 %v380
    %v995 = vunpack.c.h.b16 %v380
    %v996 = vunpack.c.l.b16 %v381
    %v997 = vunpack.c.h.b16 %v381
    %v998 = vunpack.c.l.b16 %v382
    %v999 = vunpack.c.h.b16 %v382
    %v1000 = vunpack.c.l.b16 %v383
    %v1001 = vunpack.c.h.b16 %v383
    %v1002 = vunpack.c.l.b16 %v384
    %v1003 = vunpack.c.h.b16 %v384
    %v1004 = vunpack.c.l.b16 %v385
    %v1005 = vunpack.c.h.b16 %v385
    %v1006 = vunpack.c.l.b16 %v386
    %v1007 = vunpack.c.h.b16 %v386
    %v1008 = vunpack.c.l.b16 %v387
    %v1009 = vunpack.c.h.b16 %v387
    %v1010 = vunpack.c.l.b16 %v388
    %v1011 = vunpack.c.h.b16 %v388
    %v1012 = vunpack.c.l.b16 %v389
    %v1013 = vunpack.c.h.b16 %v389
    %v1014 = vunpack.c.l.b16 %v390
    %v1015 = vunpack.c.h.b16 %v390
    %v1016 = vunpack.c.l.b16 %v391
    %v1017 = vunpack.c.h.b16 %v391
    %v1018 = vunpack.c.l.b16 %v392
    %v1019 = vunpack.c.h.b16 %v392
    %v1020 = vunpack.c.l.b16 %v393
    %v1021 = vunpack.c.h.b16 %v393
    %v1022 = vunpack.c.l.b16 %v394
    %v1023 = vunpack.c.h.b16 %v394
    %v1024 = vunpack.c.l.b16 %v395
    %v1025 = vunpack.c.h.b16 %v395
    %v1026 = vunpack.c.l.b16 %v396
    %v1027 = vunpack.c.h.b16 %v396
    %v1028 = vunpack.c.l.b16 %v397
    %v1029 = vunpack.c.h.b16 %v397
    %v1030 = vunpack.c.l.b16 %v398
    %v1031 = vunpack.c.h.b16 %v398
    %v1032 = vunpack.c.l.b16 %v399
    %v1033 = vunpack.c.h.b16 %v399
    %v1034 = vunpack.c.l.b16 %v400
    %v1035 = vunpack.c.h.b16 %v400
    %v1036 = vunpack.c.l.b16 %v401
    %v1037 = vunpack.c.h.b16 %v401
    %v1038 = vunpack.c.l.b16 %v402
    %v1039 = vunpack.c.h.b16 %v402
    %v1040 = vunpack.c.l.b16 %v403
    %v1041 = vunpack.c.h.b16 %v403
    %v1042 = vunpack.c.l.b16 %v404
    %v1043 = vunpack.c.h.b16 %v404
    %v1044 = vunpack.c.l.b16 %v405
    %v1045 = vunpack.c.h.b16 %v405
    %v1046 = vunpack.c.l.b16 %v406
    %v1047 = vunpack.c.h.b16 %v406
    %v1048 = vunpack.c.l.b16 %v407
    %v1049 = vunpack.c.h.b16 %v407
    %v1050 = vunpack.c.l.b16 %v408
    %v1051 = vunpack.c.h.b16 %v408
    %v1052 = vunpack.c.l.b16 %v409
    %v1053 = vunpack.c.h.b16 %v409
    %v1054 = vunpack.c.l.b16 %v410
    %v1055 = vunpack.c.h.b16 %v410
    %v1056 = vunpack.c.l.b16 %v411
    %v1057 = vunpack.c.h.b16 %v411
    %v1058 = vunpack.c.l.b16 %v412
    %v1059 = vunpack.c.h.b16 %v412
    %v1060 = vunpack.c.l.b16 %v413
    %v1061 = vunpack.c.h.b16 %v413
    %v1062 = vunpack.c.l.b16 %v414
    %v1063 = vunpack.c.h.b16 %v414
    %v1064 = vunpack.c.l.b16 %v415
    %v1065 = vunpack.c.h.b16 %v415
    %v1066 = vunpack.c.l.b16 %v416
    %v1067 = vunpack.c.h.b16 %v416
    %v1068 = vunpack.c.l.b16 %v417
    %v1069 = vunpack.c.h.b16 %v417
    %v1070 = vunpack.c.l.b16 %v418
    %v1071 = vunpack.c.h.b16 %v418
    %v1072 = vunpack.c.l.b16 %v419
    %v1073 = vunpack.c.h.b16 %v419
    %v1074 = vunpack.c.l.b16 %v420
    %v1075 = vunpack.c.h.b16 %v420
    %v1076 = vunpack.c.l.b16 %v421
    %v1077 = vunpack.c.h.b16 %v421
    %v1078 = vunpack.c.l.b16 %v422
    %v1079 = vunpack.c.h.b16 %v422
    %v1080 = vunpack.c.l.b16 %v423
    %v1081 = vunpack.c.h.b16 %v423
    %v1082 = vunpack.c.l.b16 %v424
    %v1083 = vunpack.c.h.b16 %v424
    %v1084 = vunpack.c.l.b16 %v425
    %v1085 = vunpack.c.h.b16 %v425
    %v1086 = vunpack.c.l.b16 %v426
    %v1087 = vunpack.c.h.b16 %v426
    %v1088 = vunpack.c.l.b16 %v427
    %v1089 = vunpack.c.h.b16 %v427
    %v1090 = vunpack.c.l.b16 %v428
    %v1091 = vunpack.c.h.b16 %v428
    %v1092 = vunpack.c.l.b16 %v429
    %v1093 = vunpack.c.h.b16 %v429
    %v1094 = vunpack.c.l.b16 %v430
    %v1095 = vunpack.c.h.b16 %v430
    %v1096 = vunpack.c.l.b16 %v431
    %v1097 = vunpack.c.h.b16 %v431
    %v1098 = vunpack.c.l.b16 %v432
    %v1099 = vunpack.c.h.b16 %v432
    %v1100 = vunpack.c.l.b16 %v433
    %v1101 = vunpack.c.h.b16 %v433
    %v1102 = vunpack.c.l.b16 %v434
    %v1103 = vunpack.c.h.b16 %v434
    %v1104 = vunpack.c.l.b16 %v435
    %v1105 = vunpack.c.h.b16 %v435
    %v1106 = vunpack.c.l.b16 %v436
    %v1107 = vunpack.c.h.b16 %v436
    %v1108 = vunpack.c.l.b16 %v437
    %v1109 = vunpack.c.h.b16 %v437
    %v1110 = vunpack.c.l.b16 %v438
    %v1111 = vunpack.c.h.b16 %v438
    %v1112 = vunpack.c.l.b16 %v439
    %v1113 = vunpack.c.h.b16 %v439
    %v1114 = vunpack.c.l.b16 %v440
    %v1115 = vunpack.c.h.b16 %v440
    %v1116 = vunpack.c.l.b16 %v441
    %v1117 = vunpack.c.h.b16 %v441
    %v1118 = vunpack.c.l.b16 %v442
    %v1119 = vunpack.c.h.b16 %v442
    %v1120 = vunpack.c.l.b16 %v443
    %v1121 = vunpack.c.h.b16 %v443
    %v1122 = vunpack.c.l.b16 %v444
    %v1123 = vunpack.c.h.b16 %v444
    %v1124 = vunpack.c.l.b16 %v445
    %v1125 = vunpack.c.h.b16 %v445
    %v1126 = vunpack.c.l.b16 %v446
    %v1127 = vunpack.c.h.b16 %v446
    %v1128 = vunpack.c.l.b16 %v447
    %v1129 = vunpack.c.h.b16 %v447
    %v1130 = vunpack.c.l.b16 %v448
    %v1131 = vunpack.c.h.b16 %v448
    %v1132 = vunpack.c.l.b16 %v449
    %v1133 = vunpack.c.h.b16 %v449
    %v1134 = vunpack.c.l.b16 %v450
    %v1135 = vunpack.c.h.b16 %v450
    %v1136 = vunpack.c.l.b16 %v451
    %v1137 = vunpack.c.h.b16 %v451
    %v1138 = vunpack.c.l.b16 %v452
    %v1139 = vunpack.c.h.b16 %v452
    %v1140 = vunpack.c.l.b16 %v453
    %v1141 = vunpack.c.h.b16 %v453
    %v1142 = vunpack.c.l.b16 %v454
    %v1143 = vunpack.c.h.b16 %v454
    %v1144 = vunpack.c.l.b16 %v455
    %v1145 = vunpack.c.h.b16 %v455
    %v1146 = vunpack.c.l.b16 %v456
    %v1147 = vunpack.c.h.b16 %v456
    %v1148 = vunpack.c.l.b16 %v457
    %v1149 = vunpack.c.h.b16 %v457
    %v1150 = vunpack.c.l.b16 %v458
    %v1151 = vunpack.c.h.b16 %v458
    %v1152 = vunpack.c.l.b16 %v459
    %v1153 = vunpack.c.h.b16 %v459
    %v1154 = vunpack.c.l.b16 %v460
    %v1155 = vunpack.c.h.b16 %v460
    %v1156 = vunpack.c.l.b16 %v461
    %v1157 = vunpack.c.h.b16 %v461
    %v1158 = vunpack.c.l.b16 %v462
    %v1159 = vunpack.c.h.b16 %v462
    %v1160 = vunpack.c.l.b16 %v463
    %v1161 = vunpack.c.h.b16 %v463
    %v1162 = vunpack.c.l.b16 %v464
    %v1163 = vunpack.c.h.b16 %v464
    %v1164 = vunpack.c.l.b16 %v465
    %v1165 = vunpack.c.h.b16 %v465
    %v1166 = vunpack.c.l.b16 %v466
    %v1167 = vunpack.c.h.b16 %v466
    %v1168 = vunpack.c.l.b16 %v467
    %v1169 = vunpack.c.h.b16 %v467
    %v1170 = vunpack.c.l.b16 %v468
    %v1171 = vunpack.c.h.b16 %v468
    %v1172 = vunpack.c.l.b16 %v469
    %v1173 = vunpack.c.h.b16 %v469
    %v1174 = vunpack.c.l.b16 %v470
    %v1175 = vunpack.c.h.b16 %v470
    %v1176 = vunpack.c.l.b16 %v471
    %v1177 = vunpack.c.h.b16 %v471
    %v1178 = vunpack.c.l.b16 %v472
    %v1179 = vunpack.c.h.b16 %v472
    %v1180 = vunpack.c.l.b16 %v473
    %v1181 = vunpack.c.h.b16 %v473
    %v1182 = vunpack.c.l.b16 %v474
    %v1183 = vunpack.c.h.b16 %v474
    %v1184 = vunpack.c.l.b16 %v475
    %v1185 = vunpack.c.h.b16 %v475
    %v1186 = vunpack.c.l.b16 %v476
    %v1187 = vunpack.c.h.b16 %v476
    %v1188 = vunpack.c.l.b16 %v477
    %v1189 = vunpack.c.h.b16 %v477
    %v1190 = vunpack.c.l.b16 %v478
    %v1191 = vunpack.c.h.b16 %v478
    %v1192 = vunpack.c.l.b16 %v479
    %v1193 = vunpack.c.h.b16 %v479
    %v1194 = vunpack.c.l.b16 %v480
    %v1195 = vunpack.c.h.b16 %v480
    %v1196 = vunpack.c.l.b16 %v481
    %v1197 = vunpack.c.h.b16 %v481
    %v1198 = vunpack.c.l.b16 %v482
    %v1199 = vunpack.c.h.b16 %v482
    %v1200 = vunpack.c.l.b16 %v483
    %v1201 = vunpack.c.h.b16 %v483
    %v1202 = vunpack.c.l.b16 %v484
    %v1203 = vunpack.c.h.b16 %v484
    %v1204 = vunpack.c.l.b16 %v485
    %v1205 = vunpack.c.h.b16 %v485
    %v1206 = vunpack.c.l.b16 %v486
    %v1207 = vunpack.c.h.b16 %v486
    %v1208 = vunpack.c.l.b16 %v487
    %v1209 = vunpack.c.h.b16 %v487
    %v1210 = vunpack.c.l.b16 %v488
    %v1211 = vunpack.c.h.b16 %v488
    %v1212 = vunpack.c.l.b16 %v489
    %v1213 = vunpack.c.h.b16 %v489
    %v1214 = vunpack.c.l.b16 %v490
    %v1215 = vunpack.c.h.b16 %v490
    %v1216 = vunpack.c.l.b16 %v491
    %v1217 = vunpack.c.h.b16 %v491
    %v1218 = vunpack.c.l.b16 %v492
    %v1219 = vunpack.c.h.b16 %v492
    %v1220 = vunpack.c.l.b16 %v493
    %v1221 = vunpack.c.h.b16 %v493
    %v1222 = vunpack.c.l.b16 %v494
    %v1223 = vunpack.c.h.b16 %v494
    %v1224 = vunpack.c.l.b16 %v495
    %v1225 = vunpack.c.h.b16 %v495
    %v1226 = vunpack.c.l.b16 %v496
    %v1227 = vunpack.c.h.b16 %v496
    %v1228 = vunpack.c.l.b16 %v497
    %v1229 = vunpack.c.h.b16 %v497
    %v1230 = vunpack.c.l.b16 %v498
    %v1231 = vunpack.c.h.b16 %v498
    %v1232 = vunpack.c.l.b16 %v499
    %v1233 = vunpack.c.h.b16 %v499
    %v1234 = vunpack.c.l.b16 %v500
    %v1235 = vunpack.c.h.b16 %v500
    %v1236 = vunpack.c.l.b16 %v501
    %v1237 = vunpack.c.h.b16 %v501
    %v1238 = vunpack.c.l.b16 %v502
    %v1239 = vunpack.c.h.b16 %v502
    %v1240 = vunpack.c.l.b16 %v503
    %v1241 = vunpack.c.h.b16 %v503
    %v1242 = vunpack.c.l.b16 %v504
    %v1243 = vunpack.c.h.b16 %v504
    %v1244 = vunpack.c.l.b16 %v505
    %v1245 = vunpack.c.h.b16 %v505
    %v1246 = vunpack.c.l.b16 %v506
    %v1247 = vunpack.c.h.b16 %v506
    %v1248 = vunpack.c.l.b16 %v507
    %v1249 = vunpack.c.h.b16 %v507
    %v1250 = vunpack.c.l.b16 %v508
    %v1251 = vunpack.c.h.b16 %v508
    %v1252 = vunpack.c.l.b16 %v509
    %v1253 = vunpack.c.h.b16 %v509
    %v1254 = vunpack.c.l.b16 %v510
    %v1255 = vunpack.c.h.b16 %v510
    %v1256 = vunpack.c.l.b16 %v511
    %v1257 = vunpack.c.h.b16 %v511
    %v1258 = vunpack.c.l.b16 %v512
    %v1259 = vunpack.c.h.b16 %v512
    %v1260 = vunpack.c.l.b16 %v513
    %v1261 = vunpack.c.h.b16 %v513
    %v1262 = vunpack.c.l.b16 %v514
    %v1263 = vunpack.c.h.b16 %v514
    %v1264 = vunpack.c.l.b16 %v515
    %v1265 = vunpack.c.h.b16 %v515
    %v1266 = vunpack.c.l.b16 %v516
    %v1267 = vunpack.c.h.b16 %v516
    %v1268 = vunpack.c.l.b16 %v517
    %v1269 = vunpack.c.h.b16 %v517
    %v1270 = vunpack.c.l.b16 %v518
    %v1271 = vunpack.c.h.b16 %v518
    %v1272 = vunpack.c.l.b16 %v519
    %v1273 = vunpack.c.h.b16 %v519
    %v1274 = vunpack.c.l.b16 %v520
    %v1275 = vunpack.c.h.b16 %v520
    %v1276 = vunpack.c.l.b16 %v521
    %v1277 = vunpack.c.h.b16 %v521
    %v1278 = vunpack.c.l.b16 %v522
    %v1279 = vunpack.c.h.b16 %v522
    %v1280 = vunpack.c.l.b16 %v523
    %v1281 = vunpack.c.h.b16 %v523
    %v1282 = vunpack.c.l.b16 %v524
    %v1283 = vunpack.c.h.b16 %v524
    %v1284 = vunpack.c.l.b16 %v525
    %v1285 = vunpack.c.h.b16 %v525
    %v1286 = vunpack.c.l.b16 %v526
    %v1287 = vunpack.c.h.b16 %v526
    %v1288 = vunpack.c.l.b16 %v527
    %v1289 = vunpack.c.h.b16 %v527
    %v1290 = vunpack.c.l.b16 %v528
    %v1291 = vunpack.c.h.b16 %v528
    %v1292 = vunpack.c.l.b16 %v529
    %v1293 = vunpack.c.h.b16 %v529
    %v1294 = vunpack.c.l.b16 %v530
    %v1295 = vunpack.c.h.b16 %v530
    %v1296 = vunpack.c.l.b16 %v531
    %v1297 = vunpack.c.h.b16 %v531
    %v1298 = vunpack.c.l.b16 %v532
    %v1299 = vunpack.c.h.b16 %v532
    %v1300 = vunpack.c.l.b16 %v533
    %v1301 = vunpack.c.h.b16 %v533
    %v1302 = vpack.c.b16 %v806, %v790
    %v1303 = vpack.c.b16 %v807, %v791
    %v1304 = vpack.c.b16 %v808, %v792
    %v1305 = vpack.c.b16 %v809, %v793
    %v1306 = vpack.c.b16 %v810, %v794
    %v1307 = vpack.c.b16 %v811, %v795
    %v1308 = vpack.c.b16 %v812, %v796
    %v1309 = vpack.c.b16 %v813, %v797
    %v1310 = vpack.c.b16 %v814, %v798
    %v1311 = vpack.c.b16 %v815, %v799
    %v1312 = vpack.c.b16 %v816, %v800
    %v1313 = vpack.c.b16 %v817, %v801
    %v1314 = vpack.c.b16 %v818, %v802
    %v1315 = vpack.c.b16 %v819, %v803
    %v1316 = vpack.c.b16 %v820, %v804
    %v1317 = vpack.c.b16 %v821, %v805
    %v1318 = vpack.c.b16 %v838, %v822
    %v1319 = vpack.c.b16 %v839, %v823
    %v1320 = vpack.c.b16 %v840, %v824
    %v1321 = vpack.c.b16 %v841, %v825
    %v1322 = vpack.c.b16 %v842, %v826
    %v1323 = vpack.c.b16 %v843, %v827
    %v1324 = vpack.c.b16 %v844, %v828
    %v1325 = vpack.c.b16 %v845, %v829
    %v1326 = vpack.c.b16 %v846, %v830
    %v1327 = vpack.c.b16 %v847, %v831
    %v1328 = vpack.c.b16 %v848, %v832
    %v1329 = vpack.c.b16 %v849, %v833
    %v1330 = vpack.c.b16 %v850, %v834
    %v1331 = vpack.c.b16 %v851, %v835
    %v1332 = vpack.c.b16 %v852, %v836
    %v1333 = vpack.c.b16 %v853, %v837
    %v1334 = vpack.c.b16 %v870, %v854
    %v1335 = vpack.c.b16 %v871, %v855
    %v1336 = vpack.c.b16 %v872, %v856
    %v1337 = vpack.c.b16 %v873, %v857
    %v1338 = vpack.c.b16 %v874, %v858
    %v1339 = vpack.c.b16 %v875, %v859
    %v1340 = vpack.c.b16 %v876, %v860
    %v1341 = vpack.c.b16 %v877, %v861
    %v1342 = vpack.c.b16 %v878, %v862
    %v1343 = vpack.c.b16 %v879, %v863
    %v1344 = vpack.c.b16 %v880, %v864
    %v1345 = vpack.c.b16 %v881, %v865
    %v1346 = vpack.c.b16 %v882, %v866
    %v1347 = vpack.c.b16 %v883, %v867
    %v1348 = vpack.c.b16 %v884, %v868
    %v1349 = vpack.c.b16 %v885, %v869
    %v1350 = vpack.c.b16 %v902, %v886
    %v1351 = vpack.c.b16 %v903, %v887
    %v1352 = vpack.c.b16 %v904, %v888
    %v1353 = vpack.c.b16 %v905, %v889
    %v1354 = vpack.c.b16 %v906, %v890
    %v1355 = vpack.c.b16 %v907, %v891
    %v1356 = vpack.c.b16 %v908, %v892
    %v1357 = vpack.c.b16 %v909, %v893
    %v1358 = vpack.c.b16 %v910, %v894
    %v1359 = vpack.c.b16 %v911, %v895
    %v1360 = vpack.c.b16 %v912, %v896
    %v1361 = vpack.c.b16 %v913, %v897
    %v1362 = vpack.c.b16 %v914, %v898
    %v1363 = vpack.c.b16 %v915, %v899
    %v1364 = vpack.c.b16 %v916, %v900
    %v1365 = vpack.c.b16 %v917, %v901
    %v1366 = vpack.c.b16 %v934, %v918
    %v1367 = vpack.c.b16 %v935, %v919
    %v1368 = vpack.c.b16 %v936, %v920
    %v1369 = vpack.c.b16 %v937, %v921
    %v1370 = vpack.c.b16 %v938, %v922
    %v1371 = vpack.c.b16 %v939, %v923
    %v1372 = vpack.c.b16 %v940, %v924
    %v1373 = vpack.c.b16 %v941, %v925
    %v1374 = vpack.c.b16 %v942, %v926
    %v1375 = vpack.c.b16 %v943, %v927
    %v1376 = vpack.c.b16 %v944, %v928
    %v1377 = vpack.c.b16 %v945, %v929
    %v1378 = vpack.c.b16 %v946, %v930
    %v1379 = vpack.c.b16 %v947, %v931
    %v1380 = vpack.c.b16 %v948, %v932
    %v1381 = vpack.c.b16 %v949, %v933
    %v1382 = vpack.c.b16 %v966, %v950
    %v1383 = vpack.c.b16 %v967, %v951
    %v1384 = vpack.c.b16 %v968, %v952
    %v1385 = vpack.c.b16 %v969, %v953
    %v1386 = vpack.c.b16 %v970, %v954
    %v1387 = vpack.c.b16 %v971, %v955
    %v1388 = vpack.c.b16 %v972, %v956
    %v1389 = vpack.c.b16 %v973, %v957
    %v1390 = vpack.c.b16 %v974, %v958
    %v1391 = vpack.c.b16 %v975, %v959
    %v1392 = vpack.c.b16 %v976, %v960
    %v1393 = vpack.c.b16 %v977, %v961
    %v1394 = vpack.c.b16 %v978, %v962
    %v1395 = vpack.c.b16 %v979, %v963
    %v1396 = vpack.c.b16 %v980, %v964
    %v1397 = vpack.c.b16 %v981, %v965
    %v1398 = vpack.c.b16 %v998, %v982
    %v1399 = vpack.c.b16 %v999, %v983
    %v1400 = vpack.c.b16 %v1000, %v984
    %v1401 = vpack.c.b16 %v1001, %v985
    %v1402 = vpack.c.b16 %v1002, %v986
    %v1403 = vpack.c.b16 %v1003, %v987
    %v1404 = vpack.c.b16 %v1004, %v988
    %v1405 = vpack.c.b16 %v1005, %v989
    %v1406 = vpack.c.b16 %v1006, %v990
    %v1407 = vpack.c.b16 %v1007, %v991
    %v1408 = vpack.c.b16 %v1008, %v992
    %v1409 = vpack.c.b16 %v1009, %v993
    %v1410 = vpack.c.b16 %v1010, %v994
    %v1411 = vpack.c.b16 %v1011, %v995
    %v1412 = vpack.c.b16 %v1012, %v996
    %v1413 = vpack.c.b16 %v1013, %v997
    %v1414 = vpack.c.b16 %v1030, %v1014
    %v1415 = vpack.c.b16 %v1031, %v1015
    %v1416 = vpack.c.b16 %v1032, %v1016
    %v1417 = vpack.c.b16 %v1033, %v1017
    %v1418 = vpack.c.b16 %v1034, %v1018
    %v1419 = vpack.c.b16 %v1035, %v1019
    %v1420 = vpack.c.b16 %v1036, %v1020
    %v1421 = vpack.c.b16 %v1037, %v1021
    %v1422 = vpack.c.b16 %v1038, %v1022
    %v1423 = vpack.c.b16 %v1039, %v1023
    %v1424 = vpack.c.b16 %v1040, %v1024
    %v1425 = vpack.c.b16 %v1041, %v1025
    %v1426 = vpack.c.b16 %v1042, %v1026
    %v1427 = vpack.c.b16 %v1043, %v1027
    %v1428 = vpack.c.b16 %v1044, %v1028
    %v1429 = vpack.c.b16 %v1045, %v1029
    %v1430 = vpack.c.b16 %v1062, %v1046
    %v1431 = vpack.c.b16 %v1063, %v1047
    %v1432 = vpack.c.b16 %v1064, %v1048
    %v1433 = vpack.c.b16 %v1065, %v1049
    %v1434 = vpack.c.b16 %v1066, %v1050
    %v1435 = vpack.c.b16 %v1067, %v1051
    %v1436 = vpack.c.b16 %v1068, %v1052
    %v1437 = vpack.c.b16 %v1069, %v1053
    %v1438 = vpack.c.b16 %v1070, %v1054
    %v1439 = vpack.c.b16 %v1071, %v1055
    %v1440 = vpack.c.b16 %v1072, %v1056
    %v1441 = vpack.c.b16 %v1073, %v1057
    %v1442 = vpack.c.b16 %v1074, %v1058
    %v1443 = vpack.c.b16 %v1075, %v1059
    %v1444 = vpack.c.b16 %v1076, %v1060
    %v1445 = vpack.c.b16 %v1077, %v1061
    %v1446 = vpack.c.b16 %v1094, %v1078
    %v1447 = vpack.c.b16 %v1095, %v1079
    %v1448 = vpack.c.b16 %v1096, %v1080
    %v1449 = vpack.c.b16 %v1097, %v1081
    %v1450 = vpack.c.b16 %v1098, %v1082
    %v1451 = vpack.c.b16 %v1099, %v1083
    %v1452 = vpack.c.b16 %v1100, %v1084
    %v1453 = vpack.c.b16 %v1101, %v1085
    %v1454 = vpack.c.b16 %v1102, %v1086
    %v1455 = vpack.c.b16 %v1103, %v1087
    %v1456 = vpack.c.b16 %v1104, %v1088
    %v1457 = vpack.c.b16 %v1105, %v1089
    %v1458 = vpack.c.b16 %v1106, %v1090
    %v1459 = vpack.c.b16 %v1107, %v1091
    %v1460 = vpack.c.b16 %v1108, %v1092
    %v1461 = vpack.c.b16 %v1109, %v1093
    %v1462 = vpack.c.b16 %v1126, %v1110
    %v1463 = vpack.c.b16 %v1127, %v1111
    %v1464 = vpack.c.b16 %v1128, %v1112
    %v1465 = vpack.c.b16 %v1129, %v1113
    %v1466 = vpack.c.b16 %v1130, %v1114
    %v1467 = vpack.c.b16 %v1131, %v1115
    %v1468 = vpack.c.b16 %v1132, %v1116
    %v1469 = vpack.c.b16 %v1133, %v1117
    %v1470 = vpack.c.b16 %v1134, %v1118
    %v1471 = vpack.c.b16 %v1135, %v1119
    %v1472 = vpack.c.b16 %v1136, %v1120
    %v1473 = vpack.c.b16 %v1137, %v1121
    %v1474 = vpack.c.b16 %v1138, %v1122
    %v1475 = vpack.c.b16 %v1139, %v1123
    %v1476 = vpack.c.b16 %v1140, %v1124
    %v1477 = vpack.c.b16 %v1141, %v1125
    %v1478 = vpack.c.b16 %v1158, %v1142
    %v1479 = vpack.c.b16 %v1159, %v1143
    %v1480 = vpack.c.b16 %v1160, %v1144
    %v1481 = vpack.c.b16 %v1161, %v1145
    %v1482 = vpack.c.b16 %v1162, %v1146
    %v1483 = vpack.c.b16 %v1163, %v1147
    %v1484 = vpack.c.b16 %v1164, %v1148
    %v1485 = vpack.c.b16 %v1165, %v1149
    %v1486 = vpack.c.b16 %v1166, %v1150
    %v1487 = vpack.c.b16 %v1167, %v1151
    %v1488 = vpack.c.b16 %v1168, %v1152
    %v1489 = vpack.c.b16 %v1169, %v1153
    %v1490 = vpack.c.b16 %v1170, %v1154
    %v1491 = vpack.c.b16 %v1171, %v1155
    %v1492 = vpack.c.b16 %v1172, %v1156
    %v1493 = vpack.c.b16 %v1173, %v1157
    %v1494 = vpack.c.b16 %v1190, %v1174
    %v1495 = vpack.c.b16 %v1191, %v1175
    %v1496 = vpack.c.b16 %v1192, %v1176
    %v1497 = vpack.c.b16 %v1193, %v1177
    %v1498 = vpack.c.b16 %v1194, %v1178
    %v1499 = vpack.c.b16 %v1195, %v1179
    %v1500 = vpack.c.b16 %v1196, %v1180
    %v1501 = vpack.c.b16 %v1197, %v1181
    %v1502 = vpack.c.b16 %v1198, %v1182
    %v1503 = vpack.c.b16 %v1199, %v1183
    %v1504 = vpack.c.b16 %v1200, %v1184
    %v1505 = vpack.c.b16 %v1201, %v1185
    %v1506 = vpack.c.b16 %v1202, %v1186
    %v1507 = vpack.c.b16 %v1203, %v1187
    %v1508 = vpack.c.b16 %v1204, %v1188
    %v1509 = vpack.c.b16 %v1205, %v1189
    %v1510 = vpack.c.b16 %v1222, %v1206
    %v1511 = vpack.c.b16 %v1223, %v1207
    %v1512 = vpack.c.b16 %v1224, %v1208
    %v1513 = vpack.c.b16 %v1225, %v1209
    %v1514 = vpack.c.b16 %v1226, %v1210
    %v1515 = vpack.c.b16 %v1227, %v1211
    %v1516 = vpack.c.b16 %v1228, %v1212
    %v1517 = vpack.c.b16 %v1229, %v1213
    %v1518 = vpack.c.b16 %v1230, %v1214
    %v1519 = vpack.c.b16 %v1231, %v1215
    %v1520 = vpack.c.b16 %v1232, %v1216
    %v1521 = vpack.c.b16 %v1233, %v1217
    %v1522 = vpack.c.b16 %v1234, %v1218
    %v1523 = vpack.c.b16 %v1235, %v1219
    %v1524 = vpack.c.b16 %v1236, %v1220
    %v1525 = vpack.c.b16 %v1237, %v1221
    %v1526 = vpack.c.b16 %v1254, %v1238
    %v1527 = vpack.c.b16 %v1255, %v1239
    %v1528 = vpack.c.b16 %v1256, %v1240
    %v1529 = vpack.c.b16 %v1257, %v1241
    %v1530 = vpack.c.b16 %v1258, %v1242
    %v1531 = vpack.c.b16 %v1259, %v1243
    %v1532 = vpack.c.b16 %v1260, %v1244
    %v1533 = vpack.c.b16 %v1261, %v1245
    %v1534 = vpack.c.b16 %v1262, %v1246
    %v1535 = vpack.c.b16 %v1263, %v1247
    %v1536 = vpack.c.b16 %v1264, %v1248
    %v1537 = vpack.c.b16 %v1265, %v1249
    %v1538 = vpack.c.b16 %v1266, %v1250
    %v1539 = vpack.c.b16 %v1267, %v1251
    %v1540 = vpack.c.b16 %v1268, %v1252
    %v1541 = vpack.c.b16 %v1269, %v1253
    %v1542 = vpack.c.b16 %v1286, %v1270
    %v1543 = vpack.c.b16 %v1287, %v1271
    %v1544 = vpack.c.b16 %v1288, %v1272
    %v1545 = vpack.c.b16 %v1289, %v1273
    %v1546 = vpack.c.b16 %v1290, %v1274
    %v1547 = vpack.c.b16 %v1291, %v1275
    %v1548 = vpack.c.b16 %v1292, %v1276
    %v1549 = vpack.c.b16 %v1293, %v1277
    %v1550 = vpack.c.b16 %v1294, %v1278
    %v1551 = vpack.c.b16 %v1295, %v1279
    %v1552 = vpack.c.b16 %v1296, %v1280
    %v1553 = vpack.c.b16 %v1297, %v1281
    %v1554 = vpack.c.b16 %v1298, %v1282
    %v1555 = vpack.c.b16 %v1299, %v1283
    %v1556 = vpack.c.b16 %v1300, %v1284
    %v1557 = vpack.c.b16 %v1301, %v1285
    %1814 = vmatpush.bf16.msra.mxu0 %v1414
    %1815 = vmatpush.bf16.msra.mxu0 %v1398
    %1816 = vmatpush.bf16.msra.mxu0 %v1382
    %1817 = vmatpush.bf16.msra.mxu0 %v1366
    %1818 = vmatpush.bf16.msra.mxu0 %v1350
    %1819 = vmatpush.bf16.msra.mxu0 %v1334
    %1820 = vmatpush.bf16.msra.mxu0 %v1318
    %1821 = vmatpush.bf16.msra.mxu0 %v1302
    %1822 = vmatmul.bf16.gmra.mxu0 %v276
    %v1823 = vpop.f32.mrf.mxu0
    %v1824 = vadd.f32 0.0, %v1823
    %v1825 = vpop.f32.mrf.mxu0
    %v1826 = vadd.f32 0.0, %v1825
    %1827 = vdwg.mxu0
    %1828 = vmatpush.bf16.msra.mxu0 %v1542
    %1829 = vmatpush.bf16.msra.mxu0 %v1526
    %1830 = vmatpush.bf16.msra.mxu0 %v1510
    %1831 = vmatpush.bf16.msra.mxu0 %v1494
    %1832 = vmatpush.bf16.msra.mxu0 %v1478
    %1833 = vmatpush.bf16.msra.mxu0 %v1462
    %1834 = vmatpush.bf16.msra.mxu0 %v1446
    %1835 = vmatpush.bf16.msra.mxu0 %v1430
    %1836 = vmatmul.bf16.gmra.mxu0 %v277
    %v1837 = vpop.f32.mrf.mxu0
    %v1838 = vadd.f32 %v1824, %v1837
    %v1839 = vpop.f32.mrf.mxu0
    %v1840 = vadd.f32 %v1826, %v1839
    %1841 = vdwg.mxu0
    %1842 = vmatpush.bf16.msra.mxu0 %v1415
    %1843 = vmatpush.bf16.msra.mxu0 %v1399
    %1844 = vmatpush.bf16.msra.mxu0 %v1383
    %1845 = vmatpush.bf16.msra.mxu0 %v1367
    %1846 = vmatpush.bf16.msra.mxu0 %v1351
    %1847 = vmatpush.bf16.msra.mxu0 %v1335
    %1848 = vmatpush.bf16.msra.mxu0 %v1319
    %1849 = vmatpush.bf16.msra.mxu0 %v1303
    %1850 = vmatmul.bf16.gmra.mxu0 %v276
    %v1851 = vpop.f32.mrf.mxu0
    %v1852 = vadd.f32 0.0, %v1851
    %v1853 = vpop.f32.mrf.mxu0
    %v1854 = vadd.f32 0.0, %v1853
    %1855 = vdwg.mxu0
    %1856 = vmatpush.bf16.msra.mxu0 %v1543
    %1857 = vmatpush.bf16.msra.mxu0 %v1527
    %1858 = vmatpush.bf16.msra.mxu0 %v1511
    %1859 = vmatpush.bf16.msra.mxu0 %v1495
    %1860 = vmatpush.bf16.msra.mxu0 %v1479
    %1861 = vmatpush.bf16.msra.mxu0 %v1463
    %1862 = vmatpush.bf16.msra.mxu0 %v1447
    %1863 = vmatpush.bf16.msra.mxu0 %v1431
    %1864 = vmatmul.bf16.gmra.mxu0 %v277
    %v1865 = vpop.f32.mrf.mxu0
    %v1866 = vadd.f32 %v1852, %v1865
    %v1867 = vpop.f32.mrf.mxu0
    %v1868 = vadd.f32 %v1854, %v1867
    %1869 = vdwg.mxu0
    %1870 = vmatpush.bf16.msra.mxu0 %v1416
    %1871 = vmatpush.bf16.msra.mxu0 %v1400
    %1872 = vmatpush.bf16.msra.mxu0 %v1384
    %1873 = vmatpush.bf16.msra.mxu0 %v1368
    %1874 = vmatpush.bf16.msra.mxu0 %v1352
    %1875 = vmatpush.bf16.msra.mxu0 %v1336
    %1876 = vmatpush.bf16.msra.mxu0 %v1320
    %1877 = vmatpush.bf16.msra.mxu0 %v1304
    %1878 = vmatmul.bf16.gmra.mxu0 %v276
    %v1879 = vpop.f32.mrf.mxu0
    %v1880 = vadd.f32 0.0, %v1879
    %v1881 = vpop.f32.mrf.mxu0
    %v1882 = vadd.f32 0.0, %v1881
    %1883 = vdwg.mxu0
    %1884 = vmatpush.bf16.msra.mxu0 %v1544
    %1885 = vmatpush.bf16.msra.mxu0 %v1528
    %1886 = vmatpush.bf16.msra.mxu0 %v1512
    %1887 = vmatpush.bf16.msra.mxu0 %v1496
    %1888 = vmatpush.bf16.msra.mxu0 %v1480
    %1889 = vmatpush.bf16.msra.mxu0 %v1464
    %1890 = vmatpush.bf16.msra.mxu0 %v1448
    %1891 = vmatpush.bf16.msra.mxu0 %v1432
    %1892 = vmatmul.bf16.gmra.mxu0 %v277
    %v1893 = vpop.f32.mrf.mxu0
    %v1894 = vadd.f32 %v1880, %v1893
    %v1895 = vpop.f32.mrf.mxu0
    %v1896 = vadd.f32 %v1882, %v1895
    %1897 = vdwg.mxu0
    %1898 = vmatpush.bf16.msra.mxu0 %v1417
    %1899 = vmatpush.bf16.msra.mxu0 %v1401
    %1900 = vmatpush.bf16.msra.mxu0 %v1385
    %1901 = vmatpush.bf16.msra.mxu0 %v1369
    %1902 = vmatpush.bf16.msra.mxu0 %v1353
    %1903 = vmatpush.bf16.msra.mxu0 %v1337
    %1904 = vmatpush.bf16.msra.mxu0 %v1321
    %1905 = vmatpush.bf16.msra.mxu0 %v1305
    %1906 = vmatmul.bf16.gmra.mxu0 %v276
    %v1907 = vpop.f32.mrf.mxu0
    %v1908 = vadd.f32 0.0, %v1907
    %v1909 = vpop.f32.mrf.mxu0
    %v1910 = vadd.f32 0.0, %v1909
    %1911 = vdwg.mxu0
    %1912 = vmatpush.bf16.msra.mxu0 %v1545
    %1913 = vmatpush.bf16.msra.mxu0 %v1529
    %1914 = vmatpush.bf16.msra.mxu0 %v1513
    %1915 = vmatpush.bf16.msra.mxu0 %v1497
    %1916 = vmatpush.bf16.msra.mxu0 %v1481
    %1917 = vmatpush.bf16.msra.mxu0 %v1465
    %1918 = vmatpush.bf16.msra.mxu0 %v1449
    %1919 = vmatpush.bf16.msra.mxu0 %v1433
    %1920 = vmatmul.bf16.gmra.mxu0 %v277
    %v1921 = vpop.f32.mrf.mxu0
    %v1922 = vadd.f32 %v1908, %v1921
    %v1923 = vpop.f32.mrf.mxu0
    %v1924 = vadd.f32 %v1910, %v1923
    %1925 = vdwg.mxu0
    %1926 = vmatpush.bf16.msra.mxu0 %v1418
    %1927 = vmatpush.bf16.msra.mxu0 %v1402
    %1928 = vmatpush.bf16.msra.mxu0 %v1386
    %1929 = vmatpush.bf16.msra.mxu0 %v1370
    %1930 = vmatpush.bf16.msra.mxu0 %v1354
    %1931 = vmatpush.bf16.msra.mxu0 %v1338
    %1932 = vmatpush.bf16.msra.mxu0 %v1322
    %1933 = vmatpush.bf16.msra.mxu0 %v1306
    %1934 = vmatmul.bf16.gmra.mxu0 %v276
    %v1935 = vpop.f32.mrf.mxu0
    %v1936 = vadd.f32 0.0, %v1935
    %v1937 = vpop.f32.mrf.mxu0
    %v1938 = vadd.f32 0.0, %v1937
    %1939 = vdwg.mxu0
    %1940 = vmatpush.bf16.msra.mxu0 %v1546
    %1941 = vmatpush.bf16.msra.mxu0 %v1530
    %1942 = vmatpush.bf16.msra.mxu0 %v1514
    %1943 = vmatpush.bf16.msra.mxu0 %v1498
    %1944 = vmatpush.bf16.msra.mxu0 %v1482
    %1945 = vmatpush.bf16.msra.mxu0 %v1466
    %1946 = vmatpush.bf16.msra.mxu0 %v1450
    %1947 = vmatpush.bf16.msra.mxu0 %v1434
    %1948 = vmatmul.bf16.gmra.mxu0 %v277
    %v1949 = vpop.f32.mrf.mxu0
    %v1950 = vadd.f32 %v1936, %v1949
    %v1951 = vpop.f32.mrf.mxu0
    %v1952 = vadd.f32 %v1938, %v1951
    %1953 = vdwg.mxu0
    %1954 = vmatpush.bf16.msra.mxu0 %v1419
    %1955 = vmatpush.bf16.msra.mxu0 %v1403
    %1956 = vmatpush.bf16.msra.mxu0 %v1387
    %1957 = vmatpush.bf16.msra.mxu0 %v1371
    %1958 = vmatpush.bf16.msra.mxu0 %v1355
    %1959 = vmatpush.bf16.msra.mxu0 %v1339
    %1960 = vmatpush.bf16.msra.mxu0 %v1323
    %1961 = vmatpush.bf16.msra.mxu0 %v1307
    %1962 = vmatmul.bf16.gmra.mxu0 %v276
    %v1963 = vpop.f32.mrf.mxu0
    %v1964 = vadd.f32 0.0, %v1963
    %v1965 = vpop.f32.mrf.mxu0
    %v1966 = vadd.f32 0.0, %v1965
    %1967 = vdwg.mxu0
    %1968 = vmatpush.bf16.msra.mxu0 %v1547
    %1969 = vmatpush.bf16.msra.mxu0 %v1531
    %1970 = vmatpush.bf16.msra.mxu0 %v1515
    %1971 = vmatpush.bf16.msra.mxu0 %v1499
    %1972 = vmatpush.bf16.msra.mxu0 %v1483
    %1973 = vmatpush.bf16.msra.mxu0 %v1467
    %1974 = vmatpush.bf16.msra.mxu0 %v1451
    %1975 = vmatpush.bf16.msra.mxu0 %v1435
    %1976 = vmatmul.bf16.gmra.mxu0 %v277
    %v1977 = vpop.f32.mrf.mxu0
    %v1978 = vadd.f32 %v1964, %v1977
    %v1979 = vpop.f32.mrf.mxu0
    %v1980 = vadd.f32 %v1966, %v1979
    %1981 = vdwg.mxu0
    %1982 = vmatpush.bf16.msra.mxu0 %v1420
    %1983 = vmatpush.bf16.msra.mxu0 %v1404
    %1984 = vmatpush.bf16.msra.mxu0 %v1388
    %1985 = vmatpush.bf16.msra.mxu0 %v1372
    %1986 = vmatpush.bf16.msra.mxu0 %v1356
    %1987 = vmatpush.bf16.msra.mxu0 %v1340
    %1988 = vmatpush.bf16.msra.mxu0 %v1324
    %1989 = vmatpush.bf16.msra.mxu0 %v1308
    %1990 = vmatmul.bf16.gmra.mxu0 %v276
    %v1991 = vpop.f32.mrf.mxu0
    %v1992 = vadd.f32 0.0, %v1991
    %v1993 = vpop.f32.mrf.mxu0
    %v1994 = vadd.f32 0.0, %v1993
    %1995 = vdwg.mxu0
    %1996 = vmatpush.bf16.msra.mxu0 %v1548
    %1997 = vmatpush.bf16.msra.mxu0 %v1532
    %1998 = vmatpush.bf16.msra.mxu0 %v1516
    %1999 = vmatpush.bf16.msra.mxu0 %v1500
    %2000 = vmatpush.bf16.msra.mxu0 %v1484
    %2001 = vmatpush.bf16.msra.mxu0 %v1468
    %2002 = vmatpush.bf16.msra.mxu0 %v1452
    %2003 = vmatpush.bf16.msra.mxu0 %v1436
    %2004 = vmatmul.bf16.gmra.mxu0 %v277
    %v2005 = vpop.f32.mrf.mxu0
    %v2006 = vadd.f32 %v1992, %v2005
    %v2007 = vpop.f32.mrf.mxu0
    %v2008 = vadd.f32 %v1994, %v2007
    %2009 = vdwg.mxu0
    %2010 = vmatpush.bf16.msra.mxu0 %v1421
    %2011 = vmatpush.bf16.msra.mxu0 %v1405
    %2012 = vmatpush.bf16.msra.mxu0 %v1389
    %2013 = vmatpush.bf16.msra.mxu0 %v1373
    %2014 = vmatpush.bf16.msra.mxu0 %v1357
    %2015 = vmatpush.bf16.msra.mxu0 %v1341
    %2016 = vmatpush.bf16.msra.mxu0 %v1325
    %2017 = vmatpush.bf16.msra.mxu0 %v1309
    %2018 = vmatmul.bf16.gmra.mxu0 %v276
    %v2019 = vpop.f32.mrf.mxu0
    %v2020 = vadd.f32 0.0, %v2019
    %v2021 = vpop.f32.mrf.mxu0
    %v2022 = vadd.f32 0.0, %v2021
    %2023 = vdwg.mxu0
    %2024 = vmatpush.bf16.msra.mxu0 %v1549
    %2025 = vmatpush.bf16.msra.mxu0 %v1533
    %2026 = vmatpush.bf16.msra.mxu0 %v1517
    %2027 = vmatpush.bf16.msra.mxu0 %v1501
    %2028 = vmatpush.bf16.msra.mxu0 %v1485
    %2029 = vmatpush.bf16.msra.mxu0 %v1469
    %2030 = vmatpush.bf16.msra.mxu0 %v1453
    %2031 = vmatpush.bf16.msra.mxu0 %v1437
    %2032 = vmatmul.bf16.gmra.mxu0 %v277
    %v2033 = vpop.f32.mrf.mxu0
    %v2034 = vadd.f32 %v2020, %v2033
    %v2035 = vpop.f32.mrf.mxu0
    %v2036 = vadd.f32 %v2022, %v2035
    %2037 = vdwg.mxu0
    %2038 = vmatpush.bf16.msra.mxu0 %v1422
    %2039 = vmatpush.bf16.msra.mxu0 %v1406
    %2040 = vmatpush.bf16.msra.mxu0 %v1390
    %2041 = vmatpush.bf16.msra.mxu0 %v1374
    %2042 = vmatpush.bf16.msra.mxu0 %v1358
    %2043 = vmatpush.bf16.msra.mxu0 %v1342
    %2044 = vmatpush.bf16.msra.mxu0 %v1326
    %2045 = vmatpush.bf16.msra.mxu0 %v1310
    %2046 = vmatmul.bf16.gmra.mxu0 %v276
    %v2047 = vpop.f32.mrf.mxu0
    %v2048 = vadd.f32 0.0, %v2047
    %v2049 = vpop.f32.mrf.mxu0
    %v2050 = vadd.f32 0.0, %v2049
    %2051 = vdwg.mxu0
    %2052 = vmatpush.bf16.msra.mxu0 %v1550
    %2053 = vmatpush.bf16.msra.mxu0 %v1534
    %2054 = vmatpush.bf16.msra.mxu0 %v1518
    %2055 = vmatpush.bf16.msra.mxu0 %v1502
    %2056 = vmatpush.bf16.msra.mxu0 %v1486
    %2057 = vmatpush.bf16.msra.mxu0 %v1470
    %2058 = vmatpush.bf16.msra.mxu0 %v1454
    %2059 = vmatpush.bf16.msra.mxu0 %v1438
    %2060 = vmatmul.bf16.gmra.mxu0 %v277
    %v2061 = vpop.f32.mrf.mxu0
    %v2062 = vadd.f32 %v2048, %v2061
    %v2063 = vpop.f32.mrf.mxu0
    %v2064 = vadd.f32 %v2050, %v2063
    %2065 = vdwg.mxu0
    %2066 = vmatpush.bf16.msra.mxu0 %v1423
    %2067 = vmatpush.bf16.msra.mxu0 %v1407
    %2068 = vmatpush.bf16.msra.mxu0 %v1391
    %2069 = vmatpush.bf16.msra.mxu0 %v1375
    %2070 = vmatpush.bf16.msra.mxu0 %v1359
    %2071 = vmatpush.bf16.msra.mxu0 %v1343
    %2072 = vmatpush.bf16.msra.mxu0 %v1327
    %2073 = vmatpush.bf16.msra.mxu0 %v1311
    %2074 = vmatmul.bf16.gmra.mxu0 %v276
    %v2075 = vpop.f32.mrf.mxu0
    %v2076 = vadd.f32 0.0, %v2075
    %v2077 = vpop.f32.mrf.mxu0
    %v2078 = vadd.f32 0.0, %v2077
    %2079 = vdwg.mxu0
    %2080 = vmatpush.bf16.msra.mxu0 %v1551
    %2081 = vmatpush.bf16.msra.mxu0 %v1535
    %2082 = vmatpush.bf16.msra.mxu0 %v1519
    %2083 = vmatpush.bf16.msra.mxu0 %v1503
    %2084 = vmatpush.bf16.msra.mxu0 %v1487
    %2085 = vmatpush.bf16.msra.mxu0 %v1471
    %2086 = vmatpush.bf16.msra.mxu0 %v1455
    %2087 = vmatpush.bf16.msra.mxu0 %v1439
    %2088 = vmatmul.bf16.gmra.mxu0 %v277
    %v2089 = vpop.f32.mrf.mxu0
    %v2090 = vadd.f32 %v2076, %v2089
    %v2091 = vpop.f32.mrf.mxu0
    %v2092 = vadd.f32 %v2078, %v2091
    %2093 = vdwg.mxu0
    %2094 = vmatpush.bf16.msra.mxu0 %v1424
    %2095 = vmatpush.bf16.msra.mxu0 %v1408
    %2096 = vmatpush.bf16.msra.mxu0 %v1392
    %2097 = vmatpush.bf16.msra.mxu0 %v1376
    %2098 = vmatpush.bf16.msra.mxu0 %v1360
    %2099 = vmatpush.bf16.msra.mxu0 %v1344
    %2100 = vmatpush.bf16.msra.mxu0 %v1328
    %2101 = vmatpush.bf16.msra.mxu0 %v1312
    %2102 = vmatmul.bf16.gmra.mxu0 %v276
    %v2103 = vpop.f32.mrf.mxu0
    %v2104 = vadd.f32 0.0, %v2103
    %v2105 = vpop.f32.mrf.mxu0
    %v2106 = vadd.f32 0.0, %v2105
    %2107 = vdwg.mxu0
    %2108 = vmatpush.bf16.msra.mxu0 %v1552
    %2109 = vmatpush.bf16.msra.mxu0 %v1536
    %2110 = vmatpush.bf16.msra.mxu0 %v1520
    %2111 = vmatpush.bf16.msra.mxu0 %v1504
    %2112 = vmatpush.bf16.msra.mxu0 %v1488
    %2113 = vmatpush.bf16.msra.mxu0 %v1472
    %2114 = vmatpush.bf16.msra.mxu0 %v1456
    %2115 = vmatpush.bf16.msra.mxu0 %v1440
    %2116 = vmatmul.bf16.gmra.mxu0 %v277
    %v2117 = vpop.f32.mrf.mxu0
    %v2118 = vadd.f32 %v2104, %v2117
    %v2119 = vpop.f32.mrf.mxu0
    %v2120 = vadd.f32 %v2106, %v2119
    %2121 = vdwg.mxu0
    %2122 = vmatpush.bf16.msra.mxu0 %v1425
    %2123 = vmatpush.bf16.msra.mxu0 %v1409
    %2124 = vmatpush.bf16.msra.mxu0 %v1393
    %2125 = vmatpush.bf16.msra.mxu0 %v1377
    %2126 = vmatpush.bf16.msra.mxu0 %v1361
    %2127 = vmatpush.bf16.msra.mxu0 %v1345
    %2128 = vmatpush.bf16.msra.mxu0 %v1329
    %2129 = vmatpush.bf16.msra.mxu0 %v1313
    %2130 = vmatmul.bf16.gmra.mxu0 %v276
    %v2131 = vpop.f32.mrf.mxu0
    %v2132 = vadd.f32 0.0, %v2131
    %v2133 = vpop.f32.mrf.mxu0
    %v2134 = vadd.f32 0.0, %v2133
    %2135 = vdwg.mxu0
    %2136 = vmatpush.bf16.msra.mxu0 %v1553
    %2137 = vmatpush.bf16.msra.mxu0 %v1537
    %2138 = vmatpush.bf16.msra.mxu0 %v1521
    %2139 = vmatpush.bf16.msra.mxu0 %v1505
    %2140 = vmatpush.bf16.msra.mxu0 %v1489
    %2141 = vmatpush.bf16.msra.mxu0 %v1473
    %2142 = vmatpush.bf16.msra.mxu0 %v1457
    %2143 = vmatpush.bf16.msra.mxu0 %v1441
    %2144 = vmatmul.bf16.gmra.mxu0 %v277
    %v2145 = vpop.f32.mrf.mxu0
    %v2146 = vadd.f32 %v2132, %v2145
    %v2147 = vpop.f32.mrf.mxu0
    %v2148 = vadd.f32 %v2134, %v2147
    %2149 = vdwg.mxu0
    %2150 = vmatpush.bf16.msra.mxu0 %v1426
    %2151 = vmatpush.bf16.msra.mxu0 %v1410
    %2152 = vmatpush.bf16.msra.mxu0 %v1394
    %2153 = vmatpush.bf16.msra.mxu0 %v1378
    %2154 = vmatpush.bf16.msra.mxu0 %v1362
    %2155 = vmatpush.bf16.msra.mxu0 %v1346
    %2156 = vmatpush.bf16.msra.mxu0 %v1330
    %2157 = vmatpush.bf16.msra.mxu0 %v1314
    %2158 = vmatmul.bf16.gmra.mxu0 %v276
    %v2159 = vpop.f32.mrf.mxu0
    %v2160 = vadd.f32 0.0, %v2159
    %v2161 = vpop.f32.mrf.mxu0
    %v2162 = vadd.f32 0.0, %v2161
    %2163 = vdwg.mxu0
    %2164 = vmatpush.bf16.msra.mxu0 %v1554
    %2165 = vmatpush.bf16.msra.mxu0 %v1538
    %2166 = vmatpush.bf16.msra.mxu0 %v1522
    %2167 = vmatpush.bf16.msra.mxu0 %v1506
    %2168 = vmatpush.bf16.msra.mxu0 %v1490
    %2169 = vmatpush.bf16.msra.mxu0 %v1474
    %2170 = vmatpush.bf16.msra.mxu0 %v1458
    %2171 = vmatpush.bf16.msra.mxu0 %v1442
    %2172 = vmatmul.bf16.gmra.mxu0 %v277
    %v2173 = vpop.f32.mrf.mxu0
    %v2174 = vadd.f32 %v2160, %v2173
    %v2175 = vpop.f32.mrf.mxu0
    %v2176 = vadd.f32 %v2162, %v2175
    %2177 = vdwg.mxu0
    %2178 = vmatpush.bf16.msra.mxu0 %v1427
    %2179 = vmatpush.bf16.msra.mxu0 %v1411
    %2180 = vmatpush.bf16.msra.mxu0 %v1395
    %2181 = vmatpush.bf16.msra.mxu0 %v1379
    %2182 = vmatpush.bf16.msra.mxu0 %v1363
    %2183 = vmatpush.bf16.msra.mxu0 %v1347
    %2184 = vmatpush.bf16.msra.mxu0 %v1331
    %2185 = vmatpush.bf16.msra.mxu0 %v1315
    %2186 = vmatmul.bf16.gmra.mxu0 %v276
    %v2187 = vpop.f32.mrf.mxu0
    %v2188 = vadd.f32 0.0, %v2187
    %v2189 = vpop.f32.mrf.mxu0
    %v2190 = vadd.f32 0.0, %v2189
    %2191 = vdwg.mxu0
    %2192 = vmatpush.bf16.msra.mxu0 %v1555
    %2193 = vmatpush.bf16.msra.mxu0 %v1539
    %2194 = vmatpush.bf16.msra.mxu0 %v1523
    %2195 = vmatpush.bf16.msra.mxu0 %v1507
    %2196 = vmatpush.bf16.msra.mxu0 %v1491
    %2197 = vmatpush.bf16.msra.mxu0 %v1475
    %2198 = vmatpush.bf16.msra.mxu0 %v1459
    %2199 = vmatpush.bf16.msra.mxu0 %v1443
    %2200 = vmatmul.bf16.gmra.mxu0 %v277
    %v2201 = vpop.f32.mrf.mxu0
    %v2202 = vadd.f32 %v2188, %v2201
    %v2203 = vpop.f32.mrf.mxu0
    %v2204 = vadd.f32 %v2190, %v2203
    %2205 = vdwg.mxu0
    %2206 = vmatpush.bf16.msra.mxu0 %v1428
    %2207 = vmatpush.bf16.msra.mxu0 %v1412
    %2208 = vmatpush.bf16.msra.mxu0 %v1396
    %2209 = vmatpush.bf16.msra.mxu0 %v1380
    %2210 = vmatpush.bf16.msra.mxu0 %v1364
    %2211 = vmatpush.bf16.msra.mxu0 %v1348
    %2212 = vmatpush.bf16.msra.mxu0 %v1332
    %2213 = vmatpush.bf16.msra.mxu0 %v1316
    %2214 = vmatmul.bf16.gmra.mxu0 %v276
    %v2215 = vpop.f32.mrf.mxu0
    %v2216 = vadd.f32 0.0, %v2215
    %v2217 = vpop.f32.mrf.mxu0
    %v2218 = vadd.f32 0.0, %v2217
    %2219 = vdwg.mxu0
    %2220 = vmatpush.bf16.msra.mxu0 %v1556
    %2221 = vmatpush.bf16.msra.mxu0 %v1540
    %2222 = vmatpush.bf16.msra.mxu0 %v1524
    %2223 = vmatpush.bf16.msra.mxu0 %v1508
    %2224 = vmatpush.bf16.msra.mxu0 %v1492
    %2225 = vmatpush.bf16.msra.mxu0 %v1476
    %2226 = vmatpush.bf16.msra.mxu0 %v1460
    %2227 = vmatpush.bf16.msra.mxu0 %v1444
    %2228 = vmatmul.bf16.gmra.mxu0 %v277
    %v2229 = vpop.f32.mrf.mxu0
    %v2230 = vadd.f32 %v2216, %v2229
    %v2231 = vpop.f32.mrf.mxu0
    %v2232 = vadd.f32 %v2218, %v2231
    %2233 = vdwg.mxu0
    %2234 = vmatpush.bf16.msra.mxu0 %v1429
    %2235 = vmatpush.bf16.msra.mxu0 %v1413
    %2236 = vmatpush.bf16.msra.mxu0 %v1397
    %2237 = vmatpush.bf16.msra.mxu0 %v1381
    %2238 = vmatpush.bf16.msra.mxu0 %v1365
    %2239 = vmatpush.bf16.msra.mxu0 %v1349
    %2240 = vmatpush.bf16.msra.mxu0 %v1333
    %2241 = vmatpush.bf16.msra.mxu0 %v1317
    %2242 = vmatmul.bf16.gmra.mxu0 %v276
    %v2243 = vpop.f32.mrf.mxu0
    %v2244 = vadd.f32 0.0, %v2243
    %v2245 = vpop.f32.mrf.mxu0
    %v2246 = vadd.f32 0.0, %v2245
    %2247 = vdwg.mxu0
    %2248 = vmatpush.bf16.msra.mxu0 %v1557
    %2249 = vmatpush.bf16.msra.mxu0 %v1541
    %2250 = vmatpush.bf16.msra.mxu0 %v1525
    %2251 = vmatpush.bf16.msra.mxu0 %v1509
    %2252 = vmatpush.bf16.msra.mxu0 %v1493
    %2253 = vmatpush.bf16.msra.mxu0 %v1477
    %2254 = vmatpush.bf16.msra.mxu0 %v1461
    %2255 = vmatpush.bf16.msra.mxu0 %v1445
    %2256 = vmatmul.bf16.gmra.mxu0 %v277
    %v2257 = vpop.f32.mrf.mxu0
    %v2258 = vadd.f32 %v2244, %v2257
    %v2259 = vpop.f32.mrf.mxu0
    %v2260 = vadd.f32 %v2246, %v2259
    %2261 = vdwg.mxu0
    %v2262 = vld [vmem:[#allocation4] sm:$0xff]
    %v2263 = vld [vmem:[#allocation4 + $0x8] sm:$0xff]
    %v2264 = vld [vmem:[#allocation4 + $0x10] sm:$0xff]
    %v2265 = vld [vmem:[#allocation4 + $0x18] sm:$0xff]
    %v2266 = vld [vmem:[#allocation4 + $0x20] sm:$0xff]
    %v2267 = vld [vmem:[#allocation4 + $0x28] sm:$0xff]
    %v2268 = vld [vmem:[#allocation4 + $0x30] sm:$0xff]
    %v2269 = vld [vmem:[#allocation4 + $0x38] sm:$0xff]
    %v2270 = vld [vmem:[#allocation4 + $0x40] sm:$0xff]
    %v2271 = vld [vmem:[#allocation4 + $0x48] sm:$0xff]
    %v2272 = vld [vmem:[#allocation4 + $0x50] sm:$0xff]
    %v2273 = vld [vmem:[#allocation4 + $0x58] sm:$0xff]
    %v2274 = vld [vmem:[#allocation4 + $0x60] sm:$0xff]
    %v2275 = vld [vmem:[#allocation4 + $0x68] sm:$0xff]
    %v2276 = vld [vmem:[#allocation4 + $0x70] sm:$0xff]
    %v2277 = vld [vmem:[#allocation4 + $0x78] sm:$0xff]
    %v2278 = vld [vmem:[#allocation4 + $0x80] sm:$0xff]
    %v2279 = vld [vmem:[#allocation4 + $0x88] sm:$0xff]
    %v2280 = vld [vmem:[#allocation4 + $0x90] sm:$0xff]
    %v2281 = vld [vmem:[#allocation4 + $0x98] sm:$0xff]
    %v2282 = vld [vmem:[#allocation4 + $0xa0] sm:$0xff]
    %v2283 = vld [vmem:[#allocation4 + $0xa8] sm:$0xff]
    %v2284 = vld [vmem:[#allocation4 + $0xb0] sm:$0xff]
    %v2285 = vld [vmem:[#allocation4 + $0xb8] sm:$0xff]
    %v2286 = vld [vmem:[#allocation4 + $0xc0] sm:$0xff]
    %v2287 = vld [vmem:[#allocation4 + $0xc8] sm:$0xff]
    %v2288 = vld [vmem:[#allocation4 + $0xd0] sm:$0xff]
    %v2289 = vld [vmem:[#allocation4 + $0xd8] sm:$0xff]
    %v2290 = vld [vmem:[#allocation4 + $0xe0] sm:$0xff]
    %v2291 = vld [vmem:[#allocation4 + $0xe8] sm:$0xff]
    %v2292 = vld [vmem:[#allocation4 + $0xf0] sm:$0xff]
    %v2293 = vld [vmem:[#allocation4 + $0xf8] sm:$0xff]
    %v2294 = vld [vmem:[#allocation4 + $0x100] sm:$0xff]
    %v2295 = vld [vmem:[#allocation4 + $0x108] sm:$0xff]
    %v2296 = vld [vmem:[#allocation4 + $0x110] sm:$0xff]
    %v2297 = vld [vmem:[#allocation4 + $0x118] sm:$0xff]
    %v2298 = vld [vmem:[#allocation4 + $0x120] sm:$0xff]
    %v2299 = vld [vmem:[#allocation4 + $0x128] sm:$0xff]
    %v2300 = vld [vmem:[#allocation4 + $0x130] sm:$0xff]
    %v2301 = vld [vmem:[#allocation4 + $0x138] sm:$0xff]
    %v2302 = vld [vmem:[#allocation4 + $0x140] sm:$0xff]
    %v2303 = vld [vmem:[#allocation4 + $0x148] sm:$0xff]
    %v2304 = vld [vmem:[#allocation4 + $0x150] sm:$0xff]
    %v2305 = vld [vmem:[#allocation4 + $0x158] sm:$0xff]
    %v2306 = vld [vmem:[#allocation4 + $0x160] sm:$0xff]
    %v2307 = vld [vmem:[#allocation4 + $0x168] sm:$0xff]
    %v2308 = vld [vmem:[#allocation4 + $0x170] sm:$0xff]
    %v2309 = vld [vmem:[#allocation4 + $0x178] sm:$0xff]
    %v2310 = vld [vmem:[#allocation4 + $0x180] sm:$0xff]
    %v2311 = vld [vmem:[#allocation4 + $0x188] sm:$0xff]
    %v2312 = vld [vmem:[#allocation4 + $0x190] sm:$0xff]
    %v2313 = vld [vmem:[#allocation4 + $0x198] sm:$0xff]
    %v2314 = vld [vmem:[#allocation4 + $0x1a0] sm:$0xff]
    %v2315 = vld [vmem:[#allocation4 + $0x1a8] sm:$0xff]
    %v2316 = vld [vmem:[#allocation4 + $0x1b0] sm:$0xff]
    %v2317 = vld [vmem:[#allocation4 + $0x1b8] sm:$0xff]
    %v2318 = vld [vmem:[#allocation4 + $0x1c0] sm:$0xff]
    %v2319 = vld [vmem:[#allocation4 + $0x1c8] sm:$0xff]
    %v2320 = vld [vmem:[#allocation4 + $0x1d0] sm:$0xff]
    %v2321 = vld [vmem:[#allocation4 + $0x1d8] sm:$0xff]
    %v2322 = vld [vmem:[#allocation4 + $0x1e0] sm:$0xff]
    %v2323 = vld [vmem:[#allocation4 + $0x1e8] sm:$0xff]
    %v2324 = vld [vmem:[#allocation4 + $0x1f0] sm:$0xff]
    %v2325 = vld [vmem:[#allocation4 + $0x1f8] sm:$0xff]
    %v2326 = vld [vmem:[#allocation4 + $0x200] sm:$0xff]
    %v2327 = vld [vmem:[#allocation4 + $0x208] sm:$0xff]
    %v2328 = vld [vmem:[#allocation4 + $0x210] sm:$0xff]
    %v2329 = vld [vmem:[#allocation4 + $0x218] sm:$0xff]
    %v2330 = vld [vmem:[#allocation4 + $0x220] sm:$0xff]
    %v2331 = vld [vmem:[#allocation4 + $0x228] sm:$0xff]
    %v2332 = vld [vmem:[#allocation4 + $0x230] sm:$0xff]
    %v2333 = vld [vmem:[#allocation4 + $0x238] sm:$0xff]
    %v2334 = vld [vmem:[#allocation4 + $0x240] sm:$0xff]
    %v2335 = vld [vmem:[#allocation4 + $0x248] sm:$0xff]
    %v2336 = vld [vmem:[#allocation4 + $0x250] sm:$0xff]
    %v2337 = vld [vmem:[#allocation4 + $0x258] sm:$0xff]
    %v2338 = vld [vmem:[#allocation4 + $0x260] sm:$0xff]
    %v2339 = vld [vmem:[#allocation4 + $0x268] sm:$0xff]
    %v2340 = vld [vmem:[#allocation4 + $0x270] sm:$0xff]
    %v2341 = vld [vmem:[#allocation4 + $0x278] sm:$0xff]
    %v2342 = vld [vmem:[#allocation4 + $0x280] sm:$0xff]
    %v2343 = vld [vmem:[#allocation4 + $0x288] sm:$0xff]
    %v2344 = vld [vmem:[#allocation4 + $0x290] sm:$0xff]
    %v2345 = vld [vmem:[#allocation4 + $0x298] sm:$0xff]
    %v2346 = vld [vmem:[#allocation4 + $0x2a0] sm:$0xff]
    %v2347 = vld [vmem:[#allocation4 + $0x2a8] sm:$0xff]
    %v2348 = vld [vmem:[#allocation4 + $0x2b0] sm:$0xff]
    %v2349 = vld [vmem:[#allocation4 + $0x2b8] sm:$0xff]
    %v2350 = vld [vmem:[#allocation4 + $0x2c0] sm:$0xff]
    %v2351 = vld [vmem:[#allocation4 + $0x2c8] sm:$0xff]
    %v2352 = vld [vmem:[#allocation4 + $0x2d0] sm:$0xff]
    %v2353 = vld [vmem:[#allocation4 + $0x2d8] sm:$0xff]
    %v2354 = vld [vmem:[#allocation4 + $0x2e0] sm:$0xff]
    %v2355 = vld [vmem:[#allocation4 + $0x2e8] sm:$0xff]
    %v2356 = vld [vmem:[#allocation4 + $0x2f0] sm:$0xff]
    %v2357 = vld [vmem:[#allocation4 + $0x2f8] sm:$0xff]
    %v2358 = vld [vmem:[#allocation4 + $0x300] sm:$0xff]
    %v2359 = vld [vmem:[#allocation4 + $0x308] sm:$0xff]
    %v2360 = vld [vmem:[#allocation4 + $0x310] sm:$0xff]
    %v2361 = vld [vmem:[#allocation4 + $0x318] sm:$0xff]
    %v2362 = vld [vmem:[#allocation4 + $0x320] sm:$0xff]
    %v2363 = vld [vmem:[#allocation4 + $0x328] sm:$0xff]
    %v2364 = vld [vmem:[#allocation4 + $0x330] sm:$0xff]
    %v2365 = vld [vmem:[#allocation4 + $0x338] sm:$0xff]
    %v2366 = vld [vmem:[#allocation4 + $0x340] sm:$0xff]
    %v2367 = vld [vmem:[#allocation4 + $0x348] sm:$0xff]
    %v2368 = vld [vmem:[#allocation4 + $0x350] sm:$0xff]
    %v2369 = vld [vmem:[#allocation4 + $0x358] sm:$0xff]
    %v2370 = vld [vmem:[#allocation4 + $0x360] sm:$0xff]
    %v2371 = vld [vmem:[#allocation4 + $0x368] sm:$0xff]
    %v2372 = vld [vmem:[#allocation4 + $0x370] sm:$0xff]
    %v2373 = vld [vmem:[#allocation4 + $0x378] sm:$0xff]
    %v2374 = vld [vmem:[#allocation4 + $0x380] sm:$0xff]
    %v2375 = vld [vmem:[#allocation4 + $0x388] sm:$0xff]
    %v2376 = vld [vmem:[#allocation4 + $0x390] sm:$0xff]
    %v2377 = vld [vmem:[#allocation4 + $0x398] sm:$0xff]
    %v2378 = vld [vmem:[#allocation4 + $0x3a0] sm:$0xff]
    %v2379 = vld [vmem:[#allocation4 + $0x3a8] sm:$0xff]
    %v2380 = vld [vmem:[#allocation4 + $0x3b0] sm:$0xff]
    %v2381 = vld [vmem:[#allocation4 + $0x3b8] sm:$0xff]
    %v2382 = vld [vmem:[#allocation4 + $0x3c0] sm:$0xff]
    %v2383 = vld [vmem:[#allocation4 + $0x3c8] sm:$0xff]
    %v2384 = vld [vmem:[#allocation4 + $0x3d0] sm:$0xff]
    %v2385 = vld [vmem:[#allocation4 + $0x3d8] sm:$0xff]
    %v2386 = vld [vmem:[#allocation4 + $0x3e0] sm:$0xff]
    %v2387 = vld [vmem:[#allocation4 + $0x3e8] sm:$0xff]
    %v2388 = vld [vmem:[#allocation4 + $0x3f0] sm:$0xff]
    %v2389 = vld [vmem:[#allocation4 + $0x3f8] sm:$0xff]
    %v2390 = vld [vmem:[#allocation4 + $0x400] sm:$0xff]
    %v2391 = vld [vmem:[#allocation4 + $0x408] sm:$0xff]
    %v2392 = vld [vmem:[#allocation4 + $0x410] sm:$0xff]
    %v2393 = vld [vmem:[#allocation4 + $0x418] sm:$0xff]
    %v2394 = vld [vmem:[#allocation4 + $0x420] sm:$0xff]
    %v2395 = vld [vmem:[#allocation4 + $0x428] sm:$0xff]
    %v2396 = vld [vmem:[#allocation4 + $0x430] sm:$0xff]
    %v2397 = vld [vmem:[#allocation4 + $0x438] sm:$0xff]
    %v2398 = vld [vmem:[#allocation4 + $0x440] sm:$0xff]
    %v2399 = vld [vmem:[#allocation4 + $0x448] sm:$0xff]
    %v2400 = vld [vmem:[#allocation4 + $0x450] sm:$0xff]
    %v2401 = vld [vmem:[#allocation4 + $0x458] sm:$0xff]
    %v2402 = vld [vmem:[#allocation4 + $0x460] sm:$0xff]
    %v2403 = vld [vmem:[#allocation4 + $0x468] sm:$0xff]
    %v2404 = vld [vmem:[#allocation4 + $0x470] sm:$0xff]
    %v2405 = vld [vmem:[#allocation4 + $0x478] sm:$0xff]
    %v2406 = vld [vmem:[#allocation4 + $0x480] sm:$0xff]
    %v2407 = vld [vmem:[#allocation4 + $0x488] sm:$0xff]
    %v2408 = vld [vmem:[#allocation4 + $0x490] sm:$0xff]
    %v2409 = vld [vmem:[#allocation4 + $0x498] sm:$0xff]
    %v2410 = vld [vmem:[#allocation4 + $0x4a0] sm:$0xff]
    %v2411 = vld [vmem:[#allocation4 + $0x4a8] sm:$0xff]
    %v2412 = vld [vmem:[#allocation4 + $0x4b0] sm:$0xff]
    %v2413 = vld [vmem:[#allocation4 + $0x4b8] sm:$0xff]
    %v2414 = vld [vmem:[#allocation4 + $0x4c0] sm:$0xff]
    %v2415 = vld [vmem:[#allocation4 + $0x4c8] sm:$0xff]
    %v2416 = vld [vmem:[#allocation4 + $0x4d0] sm:$0xff]
    %v2417 = vld [vmem:[#allocation4 + $0x4d8] sm:$0xff]
    %v2418 = vld [vmem:[#allocation4 + $0x4e0] sm:$0xff]
    %v2419 = vld [vmem:[#allocation4 + $0x4e8] sm:$0xff]
    %v2420 = vld [vmem:[#allocation4 + $0x4f0] sm:$0xff]
    %v2421 = vld [vmem:[#allocation4 + $0x4f8] sm:$0xff]
    %v2422 = vld [vmem:[#allocation4 + $0x500] sm:$0xff]
    %v2423 = vld [vmem:[#allocation4 + $0x508] sm:$0xff]
    %v2424 = vld [vmem:[#allocation4 + $0x510] sm:$0xff]
    %v2425 = vld [vmem:[#allocation4 + $0x518] sm:$0xff]
    %v2426 = vld [vmem:[#allocation4 + $0x520] sm:$0xff]
    %v2427 = vld [vmem:[#allocation4 + $0x528] sm:$0xff]
    %v2428 = vld [vmem:[#allocation4 + $0x530] sm:$0xff]
    %v2429 = vld [vmem:[#allocation4 + $0x538] sm:$0xff]
    %v2430 = vld [vmem:[#allocation4 + $0x540] sm:$0xff]
    %v2431 = vld [vmem:[#allocation4 + $0x548] sm:$0xff]
    %v2432 = vld [vmem:[#allocation4 + $0x550] sm:$0xff]
    %v2433 = vld [vmem:[#allocation4 + $0x558] sm:$0xff]
    %v2434 = vld [vmem:[#allocation4 + $0x560] sm:$0xff]
    %v2435 = vld [vmem:[#allocation4 + $0x568] sm:$0xff]
    %v2436 = vld [vmem:[#allocation4 + $0x570] sm:$0xff]
    %v2437 = vld [vmem:[#allocation4 + $0x578] sm:$0xff]
    %v2438 = vld [vmem:[#allocation4 + $0x580] sm:$0xff]
    %v2439 = vld [vmem:[#allocation4 + $0x588] sm:$0xff]
    %v2440 = vld [vmem:[#allocation4 + $0x590] sm:$0xff]
    %v2441 = vld [vmem:[#allocation4 + $0x598] sm:$0xff]
    %v2442 = vld [vmem:[#allocation4 + $0x5a0] sm:$0xff]
    %v2443 = vld [vmem:[#allocation4 + $0x5a8] sm:$0xff]
    %v2444 = vld [vmem:[#allocation4 + $0x5b0] sm:$0xff]
    %v2445 = vld [vmem:[#allocation4 + $0x5b8] sm:$0xff]
    %v2446 = vld [vmem:[#allocation4 + $0x5c0] sm:$0xff]
    %v2447 = vld [vmem:[#allocation4 + $0x5c8] sm:$0xff]
    %v2448 = vld [vmem:[#allocation4 + $0x5d0] sm:$0xff]
    %v2449 = vld [vmem:[#allocation4 + $0x5d8] sm:$0xff]
    %v2450 = vld [vmem:[#allocation4 + $0x5e0] sm:$0xff]
    %v2451 = vld [vmem:[#allocation4 + $0x5e8] sm:$0xff]
    %v2452 = vld [vmem:[#allocation4 + $0x5f0] sm:$0xff]
    %v2453 = vld [vmem:[#allocation4 + $0x5f8] sm:$0xff]
    %v2454 = vld [vmem:[#allocation4 + $0x600] sm:$0xff]
    %v2455 = vld [vmem:[#allocation4 + $0x608] sm:$0xff]
    %v2456 = vld [vmem:[#allocation4 + $0x610] sm:$0xff]
    %v2457 = vld [vmem:[#allocation4 + $0x618] sm:$0xff]
    %v2458 = vld [vmem:[#allocation4 + $0x620] sm:$0xff]
    %v2459 = vld [vmem:[#allocation4 + $0x628] sm:$0xff]
    %v2460 = vld [vmem:[#allocation4 + $0x630] sm:$0xff]
    %v2461 = vld [vmem:[#allocation4 + $0x638] sm:$0xff]
    %v2462 = vld [vmem:[#allocation4 + $0x640] sm:$0xff]
    %v2463 = vld [vmem:[#allocation4 + $0x648] sm:$0xff]
    %v2464 = vld [vmem:[#allocation4 + $0x650] sm:$0xff]
    %v2465 = vld [vmem:[#allocation4 + $0x658] sm:$0xff]
    %v2466 = vld [vmem:[#allocation4 + $0x660] sm:$0xff]
    %v2467 = vld [vmem:[#allocation4 + $0x668] sm:$0xff]
    %v2468 = vld [vmem:[#allocation4 + $0x670] sm:$0xff]
    %v2469 = vld [vmem:[#allocation4 + $0x678] sm:$0xff]
    %v2470 = vld [vmem:[#allocation4 + $0x680] sm:$0xff]
    %v2471 = vld [vmem:[#allocation4 + $0x688] sm:$0xff]
    %v2472 = vld [vmem:[#allocation4 + $0x690] sm:$0xff]
    %v2473 = vld [vmem:[#allocation4 + $0x698] sm:$0xff]
    %v2474 = vld [vmem:[#allocation4 + $0x6a0] sm:$0xff]
    %v2475 = vld [vmem:[#allocation4 + $0x6a8] sm:$0xff]
    %v2476 = vld [vmem:[#allocation4 + $0x6b0] sm:$0xff]
    %v2477 = vld [vmem:[#allocation4 + $0x6b8] sm:$0xff]
    %v2478 = vld [vmem:[#allocation4 + $0x6c0] sm:$0xff]
    %v2479 = vld [vmem:[#allocation4 + $0x6c8] sm:$0xff]
    %v2480 = vld [vmem:[#allocation4 + $0x6d0] sm:$0xff]
    %v2481 = vld [vmem:[#allocation4 + $0x6d8] sm:$0xff]
    %v2482 = vld [vmem:[#allocation4 + $0x6e0] sm:$0xff]
    %v2483 = vld [vmem:[#allocation4 + $0x6e8] sm:$0xff]
    %v2484 = vld [vmem:[#allocation4 + $0x6f0] sm:$0xff]
    %v2485 = vld [vmem:[#allocation4 + $0x6f8] sm:$0xff]
    %v2486 = vld [vmem:[#allocation4 + $0x700] sm:$0xff]
    %v2487 = vld [vmem:[#allocation4 + $0x708] sm:$0xff]
    %v2488 = vld [vmem:[#allocation4 + $0x710] sm:$0xff]
    %v2489 = vld [vmem:[#allocation4 + $0x718] sm:$0xff]
    %v2490 = vld [vmem:[#allocation4 + $0x720] sm:$0xff]
    %v2491 = vld [vmem:[#allocation4 + $0x728] sm:$0xff]
    %v2492 = vld [vmem:[#allocation4 + $0x730] sm:$0xff]
    %v2493 = vld [vmem:[#allocation4 + $0x738] sm:$0xff]
    %v2494 = vld [vmem:[#allocation4 + $0x740] sm:$0xff]
    %v2495 = vld [vmem:[#allocation4 + $0x748] sm:$0xff]
    %v2496 = vld [vmem:[#allocation4 + $0x750] sm:$0xff]
    %v2497 = vld [vmem:[#allocation4 + $0x758] sm:$0xff]
    %v2498 = vld [vmem:[#allocation4 + $0x760] sm:$0xff]
    %v2499 = vld [vmem:[#allocation4 + $0x768] sm:$0xff]
    %v2500 = vld [vmem:[#allocation4 + $0x770] sm:$0xff]
    %v2501 = vld [vmem:[#allocation4 + $0x778] sm:$0xff]
    %v2502 = vld [vmem:[#allocation4 + $0x780] sm:$0xff]
    %v2503 = vld [vmem:[#allocation4 + $0x788] sm:$0xff]
    %v2504 = vld [vmem:[#allocation4 + $0x790] sm:$0xff]
    %v2505 = vld [vmem:[#allocation4 + $0x798] sm:$0xff]
    %v2506 = vld [vmem:[#allocation4 + $0x7a0] sm:$0xff]
    %v2507 = vld [vmem:[#allocation4 + $0x7a8] sm:$0xff]
    %v2508 = vld [vmem:[#allocation4 + $0x7b0] sm:$0xff]
    %v2509 = vld [vmem:[#allocation4 + $0x7b8] sm:$0xff]
    %v2510 = vld [vmem:[#allocation4 + $0x7c0] sm:$0xff]
    %v2511 = vld [vmem:[#allocation4 + $0x7c8] sm:$0xff]
    %v2512 = vld [vmem:[#allocation4 + $0x7d0] sm:$0xff]
    %v2513 = vld [vmem:[#allocation4 + $0x7d8] sm:$0xff]
    %v2514 = vld [vmem:[#allocation4 + $0x7e0] sm:$0xff]
    %v2515 = vld [vmem:[#allocation4 + $0x7e8] sm:$0xff]
    %v2516 = vld [vmem:[#allocation4 + $0x7f0] sm:$0xff]
    %v2517 = vld [vmem:[#allocation4 + $0x7f8] sm:$0xff]
    %v2774 = vunpack.c.l.b16 %v2262
    %v2775 = vunpack.c.h.b16 %v2262
    %v2776 = vunpack.c.l.b16 %v2263
    %v2777 = vunpack.c.h.b16 %v2263
    %v2778 = vunpack.c.l.b16 %v2264
    %v2779 = vunpack.c.h.b16 %v2264
    %v2780 = vunpack.c.l.b16 %v2265
    %v2781 = vunpack.c.h.b16 %v2265
    %v2782 = vunpack.c.l.b16 %v2266
    %v2783 = vunpack.c.h.b16 %v2266
    %v2784 = vunpack.c.l.b16 %v2267
    %v2785 = vunpack.c.h.b16 %v2267
    %v2786 = vunpack.c.l.b16 %v2268
    %v2787 = vunpack.c.h.b16 %v2268
    %v2788 = vunpack.c.l.b16 %v2269
    %v2789 = vunpack.c.h.b16 %v2269
    %v2790 = vunpack.c.l.b16 %v2270
    %v2791 = vunpack.c.h.b16 %v2270
    %v2792 = vunpack.c.l.b16 %v2271
    %v2793 = vunpack.c.h.b16 %v2271
    %v2794 = vunpack.c.l.b16 %v2272
    %v2795 = vunpack.c.h.b16 %v2272
    %v2796 = vunpack.c.l.b16 %v2273
    %v2797 = vunpack.c.h.b16 %v2273
    %v2798 = vunpack.c.l.b16 %v2274
    %v2799 = vunpack.c.h.b16 %v2274
    %v2800 = vunpack.c.l.b16 %v2275
    %v2801 = vunpack.c.h.b16 %v2275
    %v2802 = vunpack.c.l.b16 %v2276
    %v2803 = vunpack.c.h.b16 %v2276
    %v2804 = vunpack.c.l.b16 %v2277
    %v2805 = vunpack.c.h.b16 %v2277
    %v2806 = vunpack.c.l.b16 %v2278
    %v2807 = vunpack.c.h.b16 %v2278
    %v2808 = vunpack.c.l.b16 %v2279
    %v2809 = vunpack.c.h.b16 %v2279
    %v2810 = vunpack.c.l.b16 %v2280
    %v2811 = vunpack.c.h.b16 %v2280
    %v2812 = vunpack.c.l.b16 %v2281
    %v2813 = vunpack.c.h.b16 %v2281
    %v2814 = vunpack.c.l.b16 %v2282
    %v2815 = vunpack.c.h.b16 %v2282
    %v2816 = vunpack.c.l.b16 %v2283
    %v2817 = vunpack.c.h.b16 %v2283
    %v2818 = vunpack.c.l.b16 %v2284
    %v2819 = vunpack.c.h.b16 %v2284
    %v2820 = vunpack.c.l.b16 %v2285
    %v2821 = vunpack.c.h.b16 %v2285
    %v2822 = vunpack.c.l.b16 %v2286
    %v2823 = vunpack.c.h.b16 %v2286
    %v2824 = vunpack.c.l.b16 %v2287
    %v2825 = vunpack.c.h.b16 %v2287
    %v2826 = vunpack.c.l.b16 %v2288
    %v2827 = vunpack.c.h.b16 %v2288
    %v2828 = vunpack.c.l.b16 %v2289
    %v2829 = vunpack.c.h.b16 %v2289
    %v2830 = vunpack.c.l.b16 %v2290
    %v2831 = vunpack.c.h.b16 %v2290
    %v2832 = vunpack.c.l.b16 %v2291
    %v2833 = vunpack.c.h.b16 %v2291
    %v2834 = vunpack.c.l.b16 %v2292
    %v2835 = vunpack.c.h.b16 %v2292
    %v2836 = vunpack.c.l.b16 %v2293
    %v2837 = vunpack.c.h.b16 %v2293
    %v2838 = vunpack.c.l.b16 %v2294
    %v2839 = vunpack.c.h.b16 %v2294
    %v2840 = vunpack.c.l.b16 %v2295
    %v2841 = vunpack.c.h.b16 %v2295
    %v2842 = vunpack.c.l.b16 %v2296
    %v2843 = vunpack.c.h.b16 %v2296
    %v2844 = vunpack.c.l.b16 %v2297
    %v2845 = vunpack.c.h.b16 %v2297
    %v2846 = vunpack.c.l.b16 %v2298
    %v2847 = vunpack.c.h.b16 %v2298
    %v2848 = vunpack.c.l.b16 %v2299
    %v2849 = vunpack.c.h.b16 %v2299
    %v2850 = vunpack.c.l.b16 %v2300
    %v2851 = vunpack.c.h.b16 %v2300
    %v2852 = vunpack.c.l.b16 %v2301
    %v2853 = vunpack.c.h.b16 %v2301
    %v2854 = vunpack.c.l.b16 %v2302
    %v2855 = vunpack.c.h.b16 %v2302
    %v2856 = vunpack.c.l.b16 %v2303
    %v2857 = vunpack.c.h.b16 %v2303
    %v2858 = vunpack.c.l.b16 %v2304
    %v2859 = vunpack.c.h.b16 %v2304
    %v2860 = vunpack.c.l.b16 %v2305
    %v2861 = vunpack.c.h.b16 %v2305
    %v2862 = vunpack.c.l.b16 %v2306
    %v2863 = vunpack.c.h.b16 %v2306
    %v2864 = vunpack.c.l.b16 %v2307
    %v2865 = vunpack.c.h.b16 %v2307
    %v2866 = vunpack.c.l.b16 %v2308
    %v2867 = vunpack.c.h.b16 %v2308
    %v2868 = vunpack.c.l.b16 %v2309
    %v2869 = vunpack.c.h.b16 %v2309
    %v2870 = vunpack.c.l.b16 %v2310
    %v2871 = vunpack.c.h.b16 %v2310
    %v2872 = vunpack.c.l.b16 %v2311
    %v2873 = vunpack.c.h.b16 %v2311
    %v2874 = vunpack.c.l.b16 %v2312
    %v2875 = vunpack.c.h.b16 %v2312
    %v2876 = vunpack.c.l.b16 %v2313
    %v2877 = vunpack.c.h.b16 %v2313
    %v2878 = vunpack.c.l.b16 %v2314
    %v2879 = vunpack.c.h.b16 %v2314
    %v2880 = vunpack.c.l.b16 %v2315
    %v2881 = vunpack.c.h.b16 %v2315
    %v2882 = vunpack.c.l.b16 %v2316
    %v2883 = vunpack.c.h.b16 %v2316
    %v2884 = vunpack.c.l.b16 %v2317
    %v2885 = vunpack.c.h.b16 %v2317
    %v2886 = vunpack.c.l.b16 %v2318
    %v2887 = vunpack.c.h.b16 %v2318
    %v2888 = vunpack.c.l.b16 %v2319
    %v2889 = vunpack.c.h.b16 %v2319
    %v2890 = vunpack.c.l.b16 %v2320
    %v2891 = vunpack.c.h.b16 %v2320
    %v2892 = vunpack.c.l.b16 %v2321
    %v2893 = vunpack.c.h.b16 %v2321
    %v2894 = vunpack.c.l.b16 %v2322
    %v2895 = vunpack.c.h.b16 %v2322
    %v2896 = vunpack.c.l.b16 %v2323
    %v2897 = vunpack.c.h.b16 %v2323
    %v2898 = vunpack.c.l.b16 %v2324
    %v2899 = vunpack.c.h.b16 %v2324
    %v2900 = vunpack.c.l.b16 %v2325
    %v2901 = vunpack.c.h.b16 %v2325
    %v2902 = vunpack.c.l.b16 %v2326
    %v2903 = vunpack.c.h.b16 %v2326
    %v2904 = vunpack.c.l.b16 %v2327
    %v2905 = vunpack.c.h.b16 %v2327
    %v2906 = vunpack.c.l.b16 %v2328
    %v2907 = vunpack.c.h.b16 %v2328
    %v2908 = vunpack.c.l.b16 %v2329
    %v2909 = vunpack.c.h.b16 %v2329
    %v2910 = vunpack.c.l.b16 %v2330
    %v2911 = vunpack.c.h.b16 %v2330
    %v2912 = vunpack.c.l.b16 %v2331
    %v2913 = vunpack.c.h.b16 %v2331
    %v2914 = vunpack.c.l.b16 %v2332
    %v2915 = vunpack.c.h.b16 %v2332
    %v2916 = vunpack.c.l.b16 %v2333
    %v2917 = vunpack.c.h.b16 %v2333
    %v2918 = vunpack.c.l.b16 %v2334
    %v2919 = vunpack.c.h.b16 %v2334
    %v2920 = vunpack.c.l.b16 %v2335
    %v2921 = vunpack.c.h.b16 %v2335
    %v2922 = vunpack.c.l.b16 %v2336
    %v2923 = vunpack.c.h.b16 %v2336
    %v2924 = vunpack.c.l.b16 %v2337
    %v2925 = vunpack.c.h.b16 %v2337
    %v2926 = vunpack.c.l.b16 %v2338
    %v2927 = vunpack.c.h.b16 %v2338
    %v2928 = vunpack.c.l.b16 %v2339
    %v2929 = vunpack.c.h.b16 %v2339
    %v2930 = vunpack.c.l.b16 %v2340
    %v2931 = vunpack.c.h.b16 %v2340
    %v2932 = vunpack.c.l.b16 %v2341
    %v2933 = vunpack.c.h.b16 %v2341
    %v2934 = vunpack.c.l.b16 %v2342
    %v2935 = vunpack.c.h.b16 %v2342
    %v2936 = vunpack.c.l.b16 %v2343
    %v2937 = vunpack.c.h.b16 %v2343
    %v2938 = vunpack.c.l.b16 %v2344
    %v2939 = vunpack.c.h.b16 %v2344
    %v2940 = vunpack.c.l.b16 %v2345
    %v2941 = vunpack.c.h.b16 %v2345
    %v2942 = vunpack.c.l.b16 %v2346
    %v2943 = vunpack.c.h.b16 %v2346
    %v2944 = vunpack.c.l.b16 %v2347
    %v2945 = vunpack.c.h.b16 %v2347
    %v2946 = vunpack.c.l.b16 %v2348
    %v2947 = vunpack.c.h.b16 %v2348
    %v2948 = vunpack.c.l.b16 %v2349
    %v2949 = vunpack.c.h.b16 %v2349
    %v2950 = vunpack.c.l.b16 %v2350
    %v2951 = vunpack.c.h.b16 %v2350
    %v2952 = vunpack.c.l.b16 %v2351
    %v2953 = vunpack.c.h.b16 %v2351
    %v2954 = vunpack.c.l.b16 %v2352
    %v2955 = vunpack.c.h.b16 %v2352
    %v2956 = vunpack.c.l.b16 %v2353
    %v2957 = vunpack.c.h.b16 %v2353
    %v2958 = vunpack.c.l.b16 %v2354
    %v2959 = vunpack.c.h.b16 %v2354
    %v2960 = vunpack.c.l.b16 %v2355
    %v2961 = vunpack.c.h.b16 %v2355
    %v2962 = vunpack.c.l.b16 %v2356
    %v2963 = vunpack.c.h.b16 %v2356
    %v2964 = vunpack.c.l.b16 %v2357
    %v2965 = vunpack.c.h.b16 %v2357
    %v2966 = vunpack.c.l.b16 %v2358
    %v2967 = vunpack.c.h.b16 %v2358
    %v2968 = vunpack.c.l.b16 %v2359
    %v2969 = vunpack.c.h.b16 %v2359
    %v2970 = vunpack.c.l.b16 %v2360
    %v2971 = vunpack.c.h.b16 %v2360
    %v2972 = vunpack.c.l.b16 %v2361
    %v2973 = vunpack.c.h.b16 %v2361
    %v2974 = vunpack.c.l.b16 %v2362
    %v2975 = vunpack.c.h.b16 %v2362
    %v2976 = vunpack.c.l.b16 %v2363
    %v2977 = vunpack.c.h.b16 %v2363
    %v2978 = vunpack.c.l.b16 %v2364
    %v2979 = vunpack.c.h.b16 %v2364
    %v2980 = vunpack.c.l.b16 %v2365
    %v2981 = vunpack.c.h.b16 %v2365
    %v2982 = vunpack.c.l.b16 %v2366
    %v2983 = vunpack.c.h.b16 %v2366
    %v2984 = vunpack.c.l.b16 %v2367
    %v2985 = vunpack.c.h.b16 %v2367
    %v2986 = vunpack.c.l.b16 %v2368
    %v2987 = vunpack.c.h.b16 %v2368
    %v2988 = vunpack.c.l.b16 %v2369
    %v2989 = vunpack.c.h.b16 %v2369
    %v2990 = vunpack.c.l.b16 %v2370
    %v2991 = vunpack.c.h.b16 %v2370
    %v2992 = vunpack.c.l.b16 %v2371
    %v2993 = vunpack.c.h.b16 %v2371
    %v2994 = vunpack.c.l.b16 %v2372
    %v2995 = vunpack.c.h.b16 %v2372
    %v2996 = vunpack.c.l.b16 %v2373
    %v2997 = vunpack.c.h.b16 %v2373
    %v2998 = vunpack.c.l.b16 %v2374
    %v2999 = vunpack.c.h.b16 %v2374
    %v3000 = vunpack.c.l.b16 %v2375
    %v3001 = vunpack.c.h.b16 %v2375
    %v3002 = vunpack.c.l.b16 %v2376
    %v3003 = vunpack.c.h.b16 %v2376
    %v3004 = vunpack.c.l.b16 %v2377
    %v3005 = vunpack.c.h.b16 %v2377
    %v3006 = vunpack.c.l.b16 %v2378
    %v3007 = vunpack.c.h.b16 %v2378
    %v3008 = vunpack.c.l.b16 %v2379
    %v3009 = vunpack.c.h.b16 %v2379
    %v3010 = vunpack.c.l.b16 %v2380
    %v3011 = vunpack.c.h.b16 %v2380
    %v3012 = vunpack.c.l.b16 %v2381
    %v3013 = vunpack.c.h.b16 %v2381
    %v3014 = vunpack.c.l.b16 %v2382
    %v3015 = vunpack.c.h.b16 %v2382
    %v3016 = vunpack.c.l.b16 %v2383
    %v3017 = vunpack.c.h.b16 %v2383
    %v3018 = vunpack.c.l.b16 %v2384
    %v3019 = vunpack.c.h.b16 %v2384
    %v3020 = vunpack.c.l.b16 %v2385
    %v3021 = vunpack.c.h.b16 %v2385
    %v3022 = vunpack.c.l.b16 %v2386
    %v3023 = vunpack.c.h.b16 %v2386
    %v3024 = vunpack.c.l.b16 %v2387
    %v3025 = vunpack.c.h.b16 %v2387
    %v3026 = vunpack.c.l.b16 %v2388
    %v3027 = vunpack.c.h.b16 %v2388
    %v3028 = vunpack.c.l.b16 %v2389
    %v3029 = vunpack.c.h.b16 %v2389
    %v3030 = vunpack.c.l.b16 %v2390
    %v3031 = vunpack.c.h.b16 %v2390
    %v3032 = vunpack.c.l.b16 %v2391
    %v3033 = vunpack.c.h.b16 %v2391
    %v3034 = vunpack.c.l.b16 %v2392
    %v3035 = vunpack.c.h.b16 %v2392
    %v3036 = vunpack.c.l.b16 %v2393
    %v3037 = vunpack.c.h.b16 %v2393
    %v3038 = vunpack.c.l.b16 %v2394
    %v3039 = vunpack.c.h.b16 %v2394
    %v3040 = vunpack.c.l.b16 %v2395
    %v3041 = vunpack.c.h.b16 %v2395
    %v3042 = vunpack.c.l.b16 %v2396
    %v3043 = vunpack.c.h.b16 %v2396
    %v3044 = vunpack.c.l.b16 %v2397
    %v3045 = vunpack.c.h.b16 %v2397
    %v3046 = vunpack.c.l.b16 %v2398
    %v3047 = vunpack.c.h.b16 %v2398
    %v3048 = vunpack.c.l.b16 %v2399
    %v3049 = vunpack.c.h.b16 %v2399
    %v3050 = vunpack.c.l.b16 %v2400
    %v3051 = vunpack.c.h.b16 %v2400
    %v3052 = vunpack.c.l.b16 %v2401
    %v3053 = vunpack.c.h.b16 %v2401
    %v3054 = vunpack.c.l.b16 %v2402
    %v3055 = vunpack.c.h.b16 %v2402
    %v3056 = vunpack.c.l.b16 %v2403
    %v3057 = vunpack.c.h.b16 %v2403
    %v3058 = vunpack.c.l.b16 %v2404
    %v3059 = vunpack.c.h.b16 %v2404
    %v3060 = vunpack.c.l.b16 %v2405
    %v3061 = vunpack.c.h.b16 %v2405
    %v3062 = vunpack.c.l.b16 %v2406
    %v3063 = vunpack.c.h.b16 %v2406
    %v3064 = vunpack.c.l.b16 %v2407
    %v3065 = vunpack.c.h.b16 %v2407
    %v3066 = vunpack.c.l.b16 %v2408
    %v3067 = vunpack.c.h.b16 %v2408
    %v3068 = vunpack.c.l.b16 %v2409
    %v3069 = vunpack.c.h.b16 %v2409
    %v3070 = vunpack.c.l.b16 %v2410
    %v3071 = vunpack.c.h.b16 %v2410
    %v3072 = vunpack.c.l.b16 %v2411
    %v3073 = vunpack.c.h.b16 %v2411
    %v3074 = vunpack.c.l.b16 %v2412
    %v3075 = vunpack.c.h.b16 %v2412
    %v3076 = vunpack.c.l.b16 %v2413
    %v3077 = vunpack.c.h.b16 %v2413
    %v3078 = vunpack.c.l.b16 %v2414
    %v3079 = vunpack.c.h.b16 %v2414
    %v3080 = vunpack.c.l.b16 %v2415
    %v3081 = vunpack.c.h.b16 %v2415
    %v3082 = vunpack.c.l.b16 %v2416
    %v3083 = vunpack.c.h.b16 %v2416
    %v3084 = vunpack.c.l.b16 %v2417
    %v3085 = vunpack.c.h.b16 %v2417
    %v3086 = vunpack.c.l.b16 %v2418
    %v3087 = vunpack.c.h.b16 %v2418
    %v3088 = vunpack.c.l.b16 %v2419
    %v3089 = vunpack.c.h.b16 %v2419
    %v3090 = vunpack.c.l.b16 %v2420
    %v3091 = vunpack.c.h.b16 %v2420
    %v3092 = vunpack.c.l.b16 %v2421
    %v3093 = vunpack.c.h.b16 %v2421
    %v3094 = vunpack.c.l.b16 %v2422
    %v3095 = vunpack.c.h.b16 %v2422
    %v3096 = vunpack.c.l.b16 %v2423
    %v3097 = vunpack.c.h.b16 %v2423
    %v3098 = vunpack.c.l.b16 %v2424
    %v3099 = vunpack.c.h.b16 %v2424
    %v3100 = vunpack.c.l.b16 %v2425
    %v3101 = vunpack.c.h.b16 %v2425
    %v3102 = vunpack.c.l.b16 %v2426
    %v3103 = vunpack.c.h.b16 %v2426
    %v3104 = vunpack.c.l.b16 %v2427
    %v3105 = vunpack.c.h.b16 %v2427
    %v3106 = vunpack.c.l.b16 %v2428
    %v3107 = vunpack.c.h.b16 %v2428
    %v3108 = vunpack.c.l.b16 %v2429
    %v3109 = vunpack.c.h.b16 %v2429
    %v3110 = vunpack.c.l.b16 %v2430
    %v3111 = vunpack.c.h.b16 %v2430
    %v3112 = vunpack.c.l.b16 %v2431
    %v3113 = vunpack.c.h.b16 %v2431
    %v3114 = vunpack.c.l.b16 %v2432
    %v3115 = vunpack.c.h.b16 %v2432
    %v3116 = vunpack.c.l.b16 %v2433
    %v3117 = vunpack.c.h.b16 %v2433
    %v3118 = vunpack.c.l.b16 %v2434
    %v3119 = vunpack.c.h.b16 %v2434
    %v3120 = vunpack.c.l.b16 %v2435
    %v3121 = vunpack.c.h.b16 %v2435
    %v3122 = vunpack.c.l.b16 %v2436
    %v3123 = vunpack.c.h.b16 %v2436
    %v3124 = vunpack.c.l.b16 %v2437
    %v3125 = vunpack.c.h.b16 %v2437
    %v3126 = vunpack.c.l.b16 %v2438
    %v3127 = vunpack.c.h.b16 %v2438
    %v3128 = vunpack.c.l.b16 %v2439
    %v3129 = vunpack.c.h.b16 %v2439
    %v3130 = vunpack.c.l.b16 %v2440
    %v3131 = vunpack.c.h.b16 %v2440
    %v3132 = vunpack.c.l.b16 %v2441
    %v3133 = vunpack.c.h.b16 %v2441
    %v3134 = vunpack.c.l.b16 %v2442
    %v3135 = vunpack.c.h.b16 %v2442
    %v3136 = vunpack.c.l.b16 %v2443
    %v3137 = vunpack.c.h.b16 %v2443
    %v3138 = vunpack.c.l.b16 %v2444
    %v3139 = vunpack.c.h.b16 %v2444
    %v3140 = vunpack.c.l.b16 %v2445
    %v3141 = vunpack.c.h.b16 %v2445
    %v3142 = vunpack.c.l.b16 %v2446
    %v3143 = vunpack.c.h.b16 %v2446
    %v3144 = vunpack.c.l.b16 %v2447
    %v3145 = vunpack.c.h.b16 %v2447
    %v3146 = vunpack.c.l.b16 %v2448
    %v3147 = vunpack.c.h.b16 %v2448
    %v3148 = vunpack.c.l.b16 %v2449
    %v3149 = vunpack.c.h.b16 %v2449
    %v3150 = vunpack.c.l.b16 %v2450
    %v3151 = vunpack.c.h.b16 %v2450
    %v3152 = vunpack.c.l.b16 %v2451
    %v3153 = vunpack.c.h.b16 %v2451
    %v3154 = vunpack.c.l.b16 %v2452
    %v3155 = vunpack.c.h.b16 %v2452
    %v3156 = vunpack.c.l.b16 %v2453
    %v3157 = vunpack.c.h.b16 %v2453
    %v3158 = vunpack.c.l.b16 %v2454
    %v3159 = vunpack.c.h.b16 %v2454
    %v3160 = vunpack.c.l.b16 %v2455
    %v3161 = vunpack.c.h.b16 %v2455
    %v3162 = vunpack.c.l.b16 %v2456
    %v3163 = vunpack.c.h.b16 %v2456
    %v3164 = vunpack.c.l.b16 %v2457
    %v3165 = vunpack.c.h.b16 %v2457
    %v3166 = vunpack.c.l.b16 %v2458
    %v3167 = vunpack.c.h.b16 %v2458
    %v3168 = vunpack.c.l.b16 %v2459
    %v3169 = vunpack.c.h.b16 %v2459
    %v3170 = vunpack.c.l.b16 %v2460
    %v3171 = vunpack.c.h.b16 %v2460
    %v3172 = vunpack.c.l.b16 %v2461
    %v3173 = vunpack.c.h.b16 %v2461
    %v3174 = vunpack.c.l.b16 %v2462
    %v3175 = vunpack.c.h.b16 %v2462
    %v3176 = vunpack.c.l.b16 %v2463
    %v3177 = vunpack.c.h.b16 %v2463
    %v3178 = vunpack.c.l.b16 %v2464
    %v3179 = vunpack.c.h.b16 %v2464
    %v3180 = vunpack.c.l.b16 %v2465
    %v3181 = vunpack.c.h.b16 %v2465
    %v3182 = vunpack.c.l.b16 %v2466
    %v3183 = vunpack.c.h.b16 %v2466
    %v3184 = vunpack.c.l.b16 %v2467
    %v3185 = vunpack.c.h.b16 %v2467
    %v3186 = vunpack.c.l.b16 %v2468
    %v3187 = vunpack.c.h.b16 %v2468
    %v3188 = vunpack.c.l.b16 %v2469
    %v3189 = vunpack.c.h.b16 %v2469
    %v3190 = vunpack.c.l.b16 %v2470
    %v3191 = vunpack.c.h.b16 %v2470
    %v3192 = vunpack.c.l.b16 %v2471
    %v3193 = vunpack.c.h.b16 %v2471
    %v3194 = vunpack.c.l.b16 %v2472
    %v3195 = vunpack.c.h.b16 %v2472
    %v3196 = vunpack.c.l.b16 %v2473
    %v3197 = vunpack.c.h.b16 %v2473
    %v3198 = vunpack.c.l.b16 %v2474
    %v3199 = vunpack.c.h.b16 %v2474
    %v3200 = vunpack.c.l.b16 %v2475
    %v3201 = vunpack.c.h.b16 %v2475
    %v3202 = vunpack.c.l.b16 %v2476
    %v3203 = vunpack.c.h.b16 %v2476
    %v3204 = vunpack.c.l.b16 %v2477
    %v3205 = vunpack.c.h.b16 %v2477
    %v3206 = vunpack.c.l.b16 %v2478
    %v3207 = vunpack.c.h.b16 %v2478
    %v3208 = vunpack.c.l.b16 %v2479
    %v3209 = vunpack.c.h.b16 %v2479
    %v3210 = vunpack.c.l.b16 %v2480
    %v3211 = vunpack.c.h.b16 %v2480
    %v3212 = vunpack.c.l.b16 %v2481
    %v3213 = vunpack.c.h.b16 %v2481
    %v3214 = vunpack.c.l.b16 %v2482
    %v3215 = vunpack.c.h.b16 %v2482
    %v3216 = vunpack.c.l.b16 %v2483
    %v3217 = vunpack.c.h.b16 %v2483
    %v3218 = vunpack.c.l.b16 %v2484
    %v3219 = vunpack.c.h.b16 %v2484
    %v3220 = vunpack.c.l.b16 %v2485
    %v3221 = vunpack.c.h.b16 %v2485
    %v3222 = vunpack.c.l.b16 %v2486
    %v3223 = vunpack.c.h.b16 %v2486
    %v3224 = vunpack.c.l.b16 %v2487
    %v3225 = vunpack.c.h.b16 %v2487
    %v3226 = vunpack.c.l.b16 %v2488
    %v3227 = vunpack.c.h.b16 %v2488
    %v3228 = vunpack.c.l.b16 %v2489
    %v3229 = vunpack.c.h.b16 %v2489
    %v3230 = vunpack.c.l.b16 %v2490
    %v3231 = vunpack.c.h.b16 %v2490
    %v3232 = vunpack.c.l.b16 %v2491
    %v3233 = vunpack.c.h.b16 %v2491
    %v3234 = vunpack.c.l.b16 %v2492
    %v3235 = vunpack.c.h.b16 %v2492
    %v3236 = vunpack.c.l.b16 %v2493
    %v3237 = vunpack.c.h.b16 %v2493
    %v3238 = vunpack.c.l.b16 %v2494
    %v3239 = vunpack.c.h.b16 %v2494
    %v3240 = vunpack.c.l.b16 %v2495
    %v3241 = vunpack.c.h.b16 %v2495
    %v3242 = vunpack.c.l.b16 %v2496
    %v3243 = vunpack.c.h.b16 %v2496
    %v3244 = vunpack.c.l.b16 %v2497
    %v3245 = vunpack.c.h.b16 %v2497
    %v3246 = vunpack.c.l.b16 %v2498
    %v3247 = vunpack.c.h.b16 %v2498
    %v3248 = vunpack.c.l.b16 %v2499
    %v3249 = vunpack.c.h.b16 %v2499
    %v3250 = vunpack.c.l.b16 %v2500
    %v3251 = vunpack.c.h.b16 %v2500
    %v3252 = vunpack.c.l.b16 %v2501
    %v3253 = vunpack.c.h.b16 %v2501
    %v3254 = vunpack.c.l.b16 %v2502
    %v3255 = vunpack.c.h.b16 %v2502
    %v3256 = vunpack.c.l.b16 %v2503
    %v3257 = vunpack.c.h.b16 %v2503
    %v3258 = vunpack.c.l.b16 %v2504
    %v3259 = vunpack.c.h.b16 %v2504
    %v3260 = vunpack.c.l.b16 %v2505
    %v3261 = vunpack.c.h.b16 %v2505
    %v3262 = vunpack.c.l.b16 %v2506
    %v3263 = vunpack.c.h.b16 %v2506
    %v3264 = vunpack.c.l.b16 %v2507
    %v3265 = vunpack.c.h.b16 %v2507
    %v3266 = vunpack.c.l.b16 %v2508
    %v3267 = vunpack.c.h.b16 %v2508
    %v3268 = vunpack.c.l.b16 %v2509
    %v3269 = vunpack.c.h.b16 %v2509
    %v3270 = vunpack.c.l.b16 %v2510
    %v3271 = vunpack.c.h.b16 %v2510
    %v3272 = vunpack.c.l.b16 %v2511
    %v3273 = vunpack.c.h.b16 %v2511
    %v3274 = vunpack.c.l.b16 %v2512
    %v3275 = vunpack.c.h.b16 %v2512
    %v3276 = vunpack.c.l.b16 %v2513
    %v3277 = vunpack.c.h.b16 %v2513
    %v3278 = vunpack.c.l.b16 %v2514
    %v3279 = vunpack.c.h.b16 %v2514
    %v3280 = vunpack.c.l.b16 %v2515
    %v3281 = vunpack.c.h.b16 %v2515
    %v3282 = vunpack.c.l.b16 %v2516
    %v3283 = vunpack.c.h.b16 %v2516
    %v3284 = vunpack.c.l.b16 %v2517
    %v3285 = vunpack.c.h.b16 %v2517
    %v3286 = vpack.c.b16 %v2790, %v2774
    %v3287 = vpack.c.b16 %v2791, %v2775
    %v3288 = vpack.c.b16 %v2792, %v2776
    %v3289 = vpack.c.b16 %v2793, %v2777
    %v3290 = vpack.c.b16 %v2794, %v2778
    %v3291 = vpack.c.b16 %v2795, %v2779
    %v3292 = vpack.c.b16 %v2796, %v2780
    %v3293 = vpack.c.b16 %v2797, %v2781
    %v3294 = vpack.c.b16 %v2798, %v2782
    %v3295 = vpack.c.b16 %v2799, %v2783
    %v3296 = vpack.c.b16 %v2800, %v2784
    %v3297 = vpack.c.b16 %v2801, %v2785
    %v3298 = vpack.c.b16 %v2802, %v2786
    %v3299 = vpack.c.b16 %v2803, %v2787
    %v3300 = vpack.c.b16 %v2804, %v2788
    %v3301 = vpack.c.b16 %v2805, %v2789
    %v3302 = vpack.c.b16 %v2822, %v2806
    %v3303 = vpack.c.b16 %v2823, %v2807
    %v3304 = vpack.c.b16 %v2824, %v2808
    %v3305 = vpack.c.b16 %v2825, %v2809
    %v3306 = vpack.c.b16 %v2826, %v2810
    %v3307 = vpack.c.b16 %v2827, %v2811
    %v3308 = vpack.c.b16 %v2828, %v2812
    %v3309 = vpack.c.b16 %v2829, %v2813
    %v3310 = vpack.c.b16 %v2830, %v2814
    %v3311 = vpack.c.b16 %v2831, %v2815
    %v3312 = vpack.c.b16 %v2832, %v2816
    %v3313 = vpack.c.b16 %v2833, %v2817
    %v3314 = vpack.c.b16 %v2834, %v2818
    %v3315 = vpack.c.b16 %v2835, %v2819
    %v3316 = vpack.c.b16 %v2836, %v2820
    %v3317 = vpack.c.b16 %v2837, %v2821
    %v3318 = vpack.c.b16 %v2854, %v2838
    %v3319 = vpack.c.b16 %v2855, %v2839
    %v3320 = vpack.c.b16 %v2856, %v2840
    %v3321 = vpack.c.b16 %v2857, %v2841
    %v3322 = vpack.c.b16 %v2858, %v2842
    %v3323 = vpack.c.b16 %v2859, %v2843
    %v3324 = vpack.c.b16 %v2860, %v2844
    %v3325 = vpack.c.b16 %v2861, %v2845
    %v3326 = vpack.c.b16 %v2862, %v2846
    %v3327 = vpack.c.b16 %v2863, %v2847
    %v3328 = vpack.c.b16 %v2864, %v2848
    %v3329 = vpack.c.b16 %v2865, %v2849
    %v3330 = vpack.c.b16 %v2866, %v2850
    %v3331 = vpack.c.b16 %v2867, %v2851
    %v3332 = vpack.c.b16 %v2868, %v2852
    %v3333 = vpack.c.b16 %v2869, %v2853
    %v3334 = vpack.c.b16 %v2886, %v2870
    %v3335 = vpack.c.b16 %v2887, %v2871
    %v3336 = vpack.c.b16 %v2888, %v2872
    %v3337 = vpack.c.b16 %v2889, %v2873
    %v3338 = vpack.c.b16 %v2890, %v2874
    %v3339 = vpack.c.b16 %v2891, %v2875
    %v3340 = vpack.c.b16 %v2892, %v2876
    %v3341 = vpack.c.b16 %v2893, %v2877
    %v3342 = vpack.c.b16 %v2894, %v2878
    %v3343 = vpack.c.b16 %v2895, %v2879
    %v3344 = vpack.c.b16 %v2896, %v2880
    %v3345 = vpack.c.b16 %v2897, %v2881
    %v3346 = vpack.c.b16 %v2898, %v2882
    %v3347 = vpack.c.b16 %v2899, %v2883
    %v3348 = vpack.c.b16 %v2900, %v2884
    %v3349 = vpack.c.b16 %v2901, %v2885
    %v3350 = vpack.c.b16 %v2918, %v2902
    %v3351 = vpack.c.b16 %v2919, %v2903
    %v3352 = vpack.c.b16 %v2920, %v2904
    %v3353 = vpack.c.b16 %v2921, %v2905
    %v3354 = vpack.c.b16 %v2922, %v2906
    %v3355 = vpack.c.b16 %v2923, %v2907
    %v3356 = vpack.c.b16 %v2924, %v2908
    %v3357 = vpack.c.b16 %v2925, %v2909
    %v3358 = vpack.c.b16 %v2926, %v2910
    %v3359 = vpack.c.b16 %v2927, %v2911
    %v3360 = vpack.c.b16 %v2928, %v2912
    %v3361 = vpack.c.b16 %v2929, %v2913
    %v3362 = vpack.c.b16 %v2930, %v2914
    %v3363 = vpack.c.b16 %v2931, %v2915
    %v3364 = vpack.c.b16 %v2932, %v2916
    %v3365 = vpack.c.b16 %v2933, %v2917
    %v3366 = vpack.c.b16 %v2950, %v2934
    %v3367 = vpack.c.b16 %v2951, %v2935
    %v3368 = vpack.c.b16 %v2952, %v2936
    %v3369 = vpack.c.b16 %v2953, %v2937
    %v3370 = vpack.c.b16 %v2954, %v2938
    %v3371 = vpack.c.b16 %v2955, %v2939
    %v3372 = vpack.c.b16 %v2956, %v2940
    %v3373 = vpack.c.b16 %v2957, %v2941
    %v3374 = vpack.c.b16 %v2958, %v2942
    %v3375 = vpack.c.b16 %v2959, %v2943
    %v3376 = vpack.c.b16 %v2960, %v2944
    %v3377 = vpack.c.b16 %v2961, %v2945
    %v3378 = vpack.c.b16 %v2962, %v2946
    %v3379 = vpack.c.b16 %v2963, %v2947
    %v3380 = vpack.c.b16 %v2964, %v2948
    %v3381 = vpack.c.b16 %v2965, %v2949
    %v3382 = vpack.c.b16 %v2982, %v2966
    %v3383 = vpack.c.b16 %v2983, %v2967
    %v3384 = vpack.c.b16 %v2984, %v2968
    %v3385 = vpack.c.b16 %v2985, %v2969
    %v3386 = vpack.c.b16 %v2986, %v2970
    %v3387 = vpack.c.b16 %v2987, %v2971
    %v3388 = vpack.c.b16 %v2988, %v2972
    %v3389 = vpack.c.b16 %v2989, %v2973
    %v3390 = vpack.c.b16 %v2990, %v2974
    %v3391 = vpack.c.b16 %v2991, %v2975
    %v3392 = vpack.c.b16 %v2992, %v2976
    %v3393 = vpack.c.b16 %v2993, %v2977
    %v3394 = vpack.c.b16 %v2994, %v2978
    %v3395 = vpack.c.b16 %v2995, %v2979
    %v3396 = vpack.c.b16 %v2996, %v2980
    %v3397 = vpack.c.b16 %v2997, %v2981
    %v3398 = vpack.c.b16 %v3014, %v2998
    %v3399 = vpack.c.b16 %v3015, %v2999
    %v3400 = vpack.c.b16 %v3016, %v3000
    %v3401 = vpack.c.b16 %v3017, %v3001
    %v3402 = vpack.c.b16 %v3018, %v3002
    %v3403 = vpack.c.b16 %v3019, %v3003
    %v3404 = vpack.c.b16 %v3020, %v3004
    %v3405 = vpack.c.b16 %v3021, %v3005
    %v3406 = vpack.c.b16 %v3022, %v3006
    %v3407 = vpack.c.b16 %v3023, %v3007
    %v3408 = vpack.c.b16 %v3024, %v3008
    %v3409 = vpack.c.b16 %v3025, %v3009
    %v3410 = vpack.c.b16 %v3026, %v3010
    %v3411 = vpack.c.b16 %v3027, %v3011
    %v3412 = vpack.c.b16 %v3028, %v3012
    %v3413 = vpack.c.b16 %v3029, %v3013
    %v3414 = vpack.c.b16 %v3046, %v3030
    %v3415 = vpack.c.b16 %v3047, %v3031
    %v3416 = vpack.c.b16 %v3048, %v3032
    %v3417 = vpack.c.b16 %v3049, %v3033
    %v3418 = vpack.c.b16 %v3050, %v3034
    %v3419 = vpack.c.b16 %v3051, %v3035
    %v3420 = vpack.c.b16 %v3052, %v3036
    %v3421 = vpack.c.b16 %v3053, %v3037
    %v3422 = vpack.c.b16 %v3054, %v3038
    %v3423 = vpack.c.b16 %v3055, %v3039
    %v3424 = vpack.c.b16 %v3056, %v3040
    %v3425 = vpack.c.b16 %v3057, %v3041
    %v3426 = vpack.c.b16 %v3058, %v3042
    %v3427 = vpack.c.b16 %v3059, %v3043
    %v3428 = vpack.c.b16 %v3060, %v3044
    %v3429 = vpack.c.b16 %v3061, %v3045
    %v3430 = vpack.c.b16 %v3078, %v3062
    %v3431 = vpack.c.b16 %v3079, %v3063
    %v3432 = vpack.c.b16 %v3080, %v3064
    %v3433 = vpack.c.b16 %v3081, %v3065
    %v3434 = vpack.c.b16 %v3082, %v3066
    %v3435 = vpack.c.b16 %v3083, %v3067
    %v3436 = vpack.c.b16 %v3084, %v3068
    %v3437 = vpack.c.b16 %v3085, %v3069
    %v3438 = vpack.c.b16 %v3086, %v3070
    %v3439 = vpack.c.b16 %v3087, %v3071
    %v3440 = vpack.c.b16 %v3088, %v3072
    %v3441 = vpack.c.b16 %v3089, %v3073
    %v3442 = vpack.c.b16 %v3090, %v3074
    %v3443 = vpack.c.b16 %v3091, %v3075
    %v3444 = vpack.c.b16 %v3092, %v3076
    %v3445 = vpack.c.b16 %v3093, %v3077
    %v3446 = vpack.c.b16 %v3110, %v3094
    %v3447 = vpack.c.b16 %v3111, %v3095
    %v3448 = vpack.c.b16 %v3112, %v3096
    %v3449 = vpack.c.b16 %v3113, %v3097
    %v3450 = vpack.c.b16 %v3114, %v3098
    %v3451 = vpack.c.b16 %v3115, %v3099
    %v3452 = vpack.c.b16 %v3116, %v3100
    %v3453 = vpack.c.b16 %v3117, %v3101
    %v3454 = vpack.c.b16 %v3118, %v3102
    %v3455 = vpack.c.b16 %v3119, %v3103
    %v3456 = vpack.c.b16 %v3120, %v3104
    %v3457 = vpack.c.b16 %v3121, %v3105
    %v3458 = vpack.c.b16 %v3122, %v3106
    %v3459 = vpack.c.b16 %v3123, %v3107
    %v3460 = vpack.c.b16 %v3124, %v3108
    %v3461 = vpack.c.b16 %v3125, %v3109
    %v3462 = vpack.c.b16 %v3142, %v3126
    %v3463 = vpack.c.b16 %v3143, %v3127
    %v3464 = vpack.c.b16 %v3144, %v3128
    %v3465 = vpack.c.b16 %v3145, %v3129
    %v3466 = vpack.c.b16 %v3146, %v3130
    %v3467 = vpack.c.b16 %v3147, %v3131
    %v3468 = vpack.c.b16 %v3148, %v3132
    %v3469 = vpack.c.b16 %v3149, %v3133
    %v3470 = vpack.c.b16 %v3150, %v3134
    %v3471 = vpack.c.b16 %v3151, %v3135
    %v3472 = vpack.c.b16 %v3152, %v3136
    %v3473 = vpack.c.b16 %v3153, %v3137
    %v3474 = vpack.c.b16 %v3154, %v3138
    %v3475 = vpack.c.b16 %v3155, %v3139
    %v3476 = vpack.c.b16 %v3156, %v3140
    %v3477 = vpack.c.b16 %v3157, %v3141
    %v3478 = vpack.c.b16 %v3174, %v3158
    %v3479 = vpack.c.b16 %v3175, %v3159
    %v3480 = vpack.c.b16 %v3176, %v3160
    %v3481 = vpack.c.b16 %v3177, %v3161
    %v3482 = vpack.c.b16 %v3178, %v3162
    %v3483 = vpack.c.b16 %v3179, %v3163
    %v3484 = vpack.c.b16 %v3180, %v3164
    %v3485 = vpack.c.b16 %v3181, %v3165
    %v3486 = vpack.c.b16 %v3182, %v3166
    %v3487 = vpack.c.b16 %v3183, %v3167
    %v3488 = vpack.c.b16 %v3184, %v3168
    %v3489 = vpack.c.b16 %v3185, %v3169
    %v3490 = vpack.c.b16 %v3186, %v3170
    %v3491 = vpack.c.b16 %v3187, %v3171
    %v3492 = vpack.c.b16 %v3188, %v3172
    %v3493 = vpack.c.b16 %v3189, %v3173
    %v3494 = vpack.c.b16 %v3206, %v3190
    %v3495 = vpack.c.b16 %v3207, %v3191
    %v3496 = vpack.c.b16 %v3208, %v3192
    %v3497 = vpack.c.b16 %v3209, %v3193
    %v3498 = vpack.c.b16 %v3210, %v3194
    %v3499 = vpack.c.b16 %v3211, %v3195
    %v3500 = vpack.c.b16 %v3212, %v3196
    %v3501 = vpack.c.b16 %v3213, %v3197
    %v3502 = vpack.c.b16 %v3214, %v3198
    %v3503 = vpack.c.b16 %v3215, %v3199
    %v3504 = vpack.c.b16 %v3216, %v3200
    %v3505 = vpack.c.b16 %v3217, %v3201
    %v3506 = vpack.c.b16 %v3218, %v3202
    %v3507 = vpack.c.b16 %v3219, %v3203
    %v3508 = vpack.c.b16 %v3220, %v3204
    %v3509 = vpack.c.b16 %v3221, %v3205
    %v3510 = vpack.c.b16 %v3238, %v3222
    %v3511 = vpack.c.b16 %v3239, %v3223
    %v3512 = vpack.c.b16 %v3240, %v3224
    %v3513 = vpack.c.b16 %v3241, %v3225
    %v3514 = vpack.c.b16 %v3242, %v3226
    %v3515 = vpack.c.b16 %v3243, %v3227
    %v3516 = vpack.c.b16 %v3244, %v3228
    %v3517 = vpack.c.b16 %v3245, %v3229
    %v3518 = vpack.c.b16 %v3246, %v3230
    %v3519 = vpack.c.b16 %v3247, %v3231
    %v3520 = vpack.c.b16 %v3248, %v3232
    %v3521 = vpack.c.b16 %v3249, %v3233
    %v3522 = vpack.c.b16 %v3250, %v3234
    %v3523 = vpack.c.b16 %v3251, %v3235
    %v3524 = vpack.c.b16 %v3252, %v3236
    %v3525 = vpack.c.b16 %v3253, %v3237
    %v3526 = vpack.c.b16 %v3270, %v3254
    %v3527 = vpack.c.b16 %v3271, %v3255
    %v3528 = vpack.c.b16 %v3272, %v3256
    %v3529 = vpack.c.b16 %v3273, %v3257
    %v3530 = vpack.c.b16 %v3274, %v3258
    %v3531 = vpack.c.b16 %v3275, %v3259
    %v3532 = vpack.c.b16 %v3276, %v3260
    %v3533 = vpack.c.b16 %v3277, %v3261
    %v3534 = vpack.c.b16 %v3278, %v3262
    %v3535 = vpack.c.b16 %v3279, %v3263
    %v3536 = vpack.c.b16 %v3280, %v3264
    %v3537 = vpack.c.b16 %v3281, %v3265
    %v3538 = vpack.c.b16 %v3282, %v3266
    %v3539 = vpack.c.b16 %v3283, %v3267
    %v3540 = vpack.c.b16 %v3284, %v3268
    %v3541 = vpack.c.b16 %v3285, %v3269
    %3798 = vmatpush.bf16.msra.mxu0 %v3398
    %3799 = vmatpush.bf16.msra.mxu0 %v3382
    %3800 = vmatpush.bf16.msra.mxu0 %v3366
    %3801 = vmatpush.bf16.msra.mxu0 %v3350
    %3802 = vmatpush.bf16.msra.mxu0 %v3334
    %3803 = vmatpush.bf16.msra.mxu0 %v3318
    %3804 = vmatpush.bf16.msra.mxu0 %v3302
    %3805 = vmatpush.bf16.msra.mxu0 %v3286
    %3806 = vmatmul.bf16.gmra.mxu0 %v276
    %v3807 = vpop.f32.mrf.mxu0
    %v3808 = vadd.f32 0.0, %v3807
    %v3809 = vpop.f32.mrf.mxu0
    %v3810 = vadd.f32 0.0, %v3809
    %3811 = vdwg.mxu0
    %3812 = vmatpush.bf16.msra.mxu0 %v3526
    %3813 = vmatpush.bf16.msra.mxu0 %v3510
    %3814 = vmatpush.bf16.msra.mxu0 %v3494
    %3815 = vmatpush.bf16.msra.mxu0 %v3478
    %3816 = vmatpush.bf16.msra.mxu0 %v3462
    %3817 = vmatpush.bf16.msra.mxu0 %v3446
    %3818 = vmatpush.bf16.msra.mxu0 %v3430
    %3819 = vmatpush.bf16.msra.mxu0 %v3414
    %3820 = vmatmul.bf16.gmra.mxu0 %v277
    %v3821 = vpop.f32.mrf.mxu0
    %v3822 = vadd.f32 %v3808, %v3821
    %v3823 = vpop.f32.mrf.mxu0
    %v3824 = vadd.f32 %v3810, %v3823
    %3825 = vdwg.mxu0
    %3826 = vmatpush.bf16.msra.mxu0 %v3399
    %3827 = vmatpush.bf16.msra.mxu0 %v3383
    %3828 = vmatpush.bf16.msra.mxu0 %v3367
    %3829 = vmatpush.bf16.msra.mxu0 %v3351
    %3830 = vmatpush.bf16.msra.mxu0 %v3335
    %3831 = vmatpush.bf16.msra.mxu0 %v3319
    %3832 = vmatpush.bf16.msra.mxu0 %v3303
    %3833 = vmatpush.bf16.msra.mxu0 %v3287
    %3834 = vmatmul.bf16.gmra.mxu0 %v276
    %v3835 = vpop.f32.mrf.mxu0
    %v3836 = vadd.f32 0.0, %v3835
    %v3837 = vpop.f32.mrf.mxu0
    %v3838 = vadd.f32 0.0, %v3837
    %3839 = vdwg.mxu0
    %3840 = vmatpush.bf16.msra.mxu0 %v3527
    %3841 = vmatpush.bf16.msra.mxu0 %v3511
    %3842 = vmatpush.bf16.msra.mxu0 %v3495
    %3843 = vmatpush.bf16.msra.mxu0 %v3479
    %3844 = vmatpush.bf16.msra.mxu0 %v3463
    %3845 = vmatpush.bf16.msra.mxu0 %v3447
    %3846 = vmatpush.bf16.msra.mxu0 %v3431
    %3847 = vmatpush.bf16.msra.mxu0 %v3415
    %3848 = vmatmul.bf16.gmra.mxu0 %v277
    %v3849 = vpop.f32.mrf.mxu0
    %v3850 = vadd.f32 %v3836, %v3849
    %v3851 = vpop.f32.mrf.mxu0
    %v3852 = vadd.f32 %v3838, %v3851
    %3853 = vdwg.mxu0
    %3854 = vmatpush.bf16.msra.mxu0 %v3400
    %3855 = vmatpush.bf16.msra.mxu0 %v3384
    %3856 = vmatpush.bf16.msra.mxu0 %v3368
    %3857 = vmatpush.bf16.msra.mxu0 %v3352
    %3858 = vmatpush.bf16.msra.mxu0 %v3336
    %3859 = vmatpush.bf16.msra.mxu0 %v3320
    %3860 = vmatpush.bf16.msra.mxu0 %v3304
    %3861 = vmatpush.bf16.msra.mxu0 %v3288
    %3862 = vmatmul.bf16.gmra.mxu0 %v276
    %v3863 = vpop.f32.mrf.mxu0
    %v3864 = vadd.f32 0.0, %v3863
    %v3865 = vpop.f32.mrf.mxu0
    %v3866 = vadd.f32 0.0, %v3865
    %3867 = vdwg.mxu0
    %3868 = vmatpush.bf16.msra.mxu0 %v3528
    %3869 = vmatpush.bf16.msra.mxu0 %v3512
    %3870 = vmatpush.bf16.msra.mxu0 %v3496
    %3871 = vmatpush.bf16.msra.mxu0 %v3480
    %3872 = vmatpush.bf16.msra.mxu0 %v3464
    %3873 = vmatpush.bf16.msra.mxu0 %v3448
    %3874 = vmatpush.bf16.msra.mxu0 %v3432
    %3875 = vmatpush.bf16.msra.mxu0 %v3416
    %3876 = vmatmul.bf16.gmra.mxu0 %v277
    %v3877 = vpop.f32.mrf.mxu0
    %v3878 = vadd.f32 %v3864, %v3877
    %v3879 = vpop.f32.mrf.mxu0
    %v3880 = vadd.f32 %v3866, %v3879
    %3881 = vdwg.mxu0
    %3882 = vmatpush.bf16.msra.mxu0 %v3401
    %3883 = vmatpush.bf16.msra.mxu0 %v3385
    %3884 = vmatpush.bf16.msra.mxu0 %v3369
    %3885 = vmatpush.bf16.msra.mxu0 %v3353
    %3886 = vmatpush.bf16.msra.mxu0 %v3337
    %3887 = vmatpush.bf16.msra.mxu0 %v3321
    %3888 = vmatpush.bf16.msra.mxu0 %v3305
    %3889 = vmatpush.bf16.msra.mxu0 %v3289
    %3890 = vmatmul.bf16.gmra.mxu0 %v276
    %v3891 = vpop.f32.mrf.mxu0
    %v3892 = vadd.f32 0.0, %v3891
    %v3893 = vpop.f32.mrf.mxu0
    %v3894 = vadd.f32 0.0, %v3893
    %3895 = vdwg.mxu0
    %3896 = vmatpush.bf16.msra.mxu0 %v3529
    %3897 = vmatpush.bf16.msra.mxu0 %v3513
    %3898 = vmatpush.bf16.msra.mxu0 %v3497
    %3899 = vmatpush.bf16.msra.mxu0 %v3481
    %3900 = vmatpush.bf16.msra.mxu0 %v3465
    %3901 = vmatpush.bf16.msra.mxu0 %v3449
    %3902 = vmatpush.bf16.msra.mxu0 %v3433
    %3903 = vmatpush.bf16.msra.mxu0 %v3417
    %3904 = vmatmul.bf16.gmra.mxu0 %v277
    %v3905 = vpop.f32.mrf.mxu0
    %v3906 = vadd.f32 %v3892, %v3905
    %v3907 = vpop.f32.mrf.mxu0
    %v3908 = vadd.f32 %v3894, %v3907
    %3909 = vdwg.mxu0
    %3910 = vmatpush.bf16.msra.mxu0 %v3402
    %3911 = vmatpush.bf16.msra.mxu0 %v3386
    %3912 = vmatpush.bf16.msra.mxu0 %v3370
    %3913 = vmatpush.bf16.msra.mxu0 %v3354
    %3914 = vmatpush.bf16.msra.mxu0 %v3338
    %3915 = vmatpush.bf16.msra.mxu0 %v3322
    %3916 = vmatpush.bf16.msra.mxu0 %v3306
    %3917 = vmatpush.bf16.msra.mxu0 %v3290
    %3918 = vmatmul.bf16.gmra.mxu0 %v276
    %v3919 = vpop.f32.mrf.mxu0
    %v3920 = vadd.f32 0.0, %v3919
    %v3921 = vpop.f32.mrf.mxu0
    %v3922 = vadd.f32 0.0, %v3921
    %3923 = vdwg.mxu0
    %3924 = vmatpush.bf16.msra.mxu0 %v3530
    %3925 = vmatpush.bf16.msra.mxu0 %v3514
    %3926 = vmatpush.bf16.msra.mxu0 %v3498
    %3927 = vmatpush.bf16.msra.mxu0 %v3482
    %3928 = vmatpush.bf16.msra.mxu0 %v3466
    %3929 = vmatpush.bf16.msra.mxu0 %v3450
    %3930 = vmatpush.bf16.msra.mxu0 %v3434
    %3931 = vmatpush.bf16.msra.mxu0 %v3418
    %3932 = vmatmul.bf16.gmra.mxu0 %v277
    %v3933 = vpop.f32.mrf.mxu0
    %v3934 = vadd.f32 %v3920, %v3933
    %v3935 = vpop.f32.mrf.mxu0
    %v3936 = vadd.f32 %v3922, %v3935
    %3937 = vdwg.mxu0
    %3938 = vmatpush.bf16.msra.mxu0 %v3403
    %3939 = vmatpush.bf16.msra.mxu0 %v3387
    %3940 = vmatpush.bf16.msra.mxu0 %v3371
    %3941 = vmatpush.bf16.msra.mxu0 %v3355
    %3942 = vmatpush.bf16.msra.mxu0 %v3339
    %3943 = vmatpush.bf16.msra.mxu0 %v3323
    %3944 = vmatpush.bf16.msra.mxu0 %v3307
    %3945 = vmatpush.bf16.msra.mxu0 %v3291
    %3946 = vmatmul.bf16.gmra.mxu0 %v276
    %v3947 = vpop.f32.mrf.mxu0
    %v3948 = vadd.f32 0.0, %v3947
    %v3949 = vpop.f32.mrf.mxu0
    %v3950 = vadd.f32 0.0, %v3949
    %3951 = vdwg.mxu0
    %3952 = vmatpush.bf16.msra.mxu0 %v3531
    %3953 = vmatpush.bf16.msra.mxu0 %v3515
    %3954 = vmatpush.bf16.msra.mxu0 %v3499
    %3955 = vmatpush.bf16.msra.mxu0 %v3483
    %3956 = vmatpush.bf16.msra.mxu0 %v3467
    %3957 = vmatpush.bf16.msra.mxu0 %v3451
    %3958 = vmatpush.bf16.msra.mxu0 %v3435
    %3959 = vmatpush.bf16.msra.mxu0 %v3419
    %3960 = vmatmul.bf16.gmra.mxu0 %v277
    %v3961 = vpop.f32.mrf.mxu0
    %v3962 = vadd.f32 %v3948, %v3961
    %v3963 = vpop.f32.mrf.mxu0
    %v3964 = vadd.f32 %v3950, %v3963
    %3965 = vdwg.mxu0
    %3966 = vmatpush.bf16.msra.mxu0 %v3404
    %3967 = vmatpush.bf16.msra.mxu0 %v3388
    %3968 = vmatpush.bf16.msra.mxu0 %v3372
    %3969 = vmatpush.bf16.msra.mxu0 %v3356
    %3970 = vmatpush.bf16.msra.mxu0 %v3340
    %3971 = vmatpush.bf16.msra.mxu0 %v3324
    %3972 = vmatpush.bf16.msra.mxu0 %v3308
    %3973 = vmatpush.bf16.msra.mxu0 %v3292
    %3974 = vmatmul.bf16.gmra.mxu0 %v276
    %v3975 = vpop.f32.mrf.mxu0
    %v3976 = vadd.f32 0.0, %v3975
    %v3977 = vpop.f32.mrf.mxu0
    %v3978 = vadd.f32 0.0, %v3977
    %3979 = vdwg.mxu0
    %3980 = vmatpush.bf16.msra.mxu0 %v3532
    %3981 = vmatpush.bf16.msra.mxu0 %v3516
    %3982 = vmatpush.bf16.msra.mxu0 %v3500
    %3983 = vmatpush.bf16.msra.mxu0 %v3484
    %3984 = vmatpush.bf16.msra.mxu0 %v3468
    %3985 = vmatpush.bf16.msra.mxu0 %v3452
    %3986 = vmatpush.bf16.msra.mxu0 %v3436
    %3987 = vmatpush.bf16.msra.mxu0 %v3420
    %3988 = vmatmul.bf16.gmra.mxu0 %v277
    %v3989 = vpop.f32.mrf.mxu0
    %v3990 = vadd.f32 %v3976, %v3989
    %v3991 = vpop.f32.mrf.mxu0
    %v3992 = vadd.f32 %v3978, %v3991
    %3993 = vdwg.mxu0
    %3994 = vmatpush.bf16.msra.mxu0 %v3405
    %3995 = vmatpush.bf16.msra.mxu0 %v3389
    %3996 = vmatpush.bf16.msra.mxu0 %v3373
    %3997 = vmatpush.bf16.msra.mxu0 %v3357
    %3998 = vmatpush.bf16.msra.mxu0 %v3341
    %3999 = vmatpush.bf16.msra.mxu0 %v3325
    %4000 = vmatpush.bf16.msra.mxu0 %v3309
    %4001 = vmatpush.bf16.msra.mxu0 %v3293
    %4002 = vmatmul.bf16.gmra.mxu0 %v276
    %v4003 = vpop.f32.mrf.mxu0
    %v4004 = vadd.f32 0.0, %v4003
    %v4005 = vpop.f32.mrf.mxu0
    %v4006 = vadd.f32 0.0, %v4005
    %4007 = vdwg.mxu0
    %4008 = vmatpush.bf16.msra.mxu0 %v3533
    %4009 = vmatpush.bf16.msra.mxu0 %v3517
    %4010 = vmatpush.bf16.msra.mxu0 %v3501
    %4011 = vmatpush.bf16.msra.mxu0 %v3485
    %4012 = vmatpush.bf16.msra.mxu0 %v3469
    %4013 = vmatpush.bf16.msra.mxu0 %v3453
    %4014 = vmatpush.bf16.msra.mxu0 %v3437
    %4015 = vmatpush.bf16.msra.mxu0 %v3421
    %4016 = vmatmul.bf16.gmra.mxu0 %v277
    %v4017 = vpop.f32.mrf.mxu0
    %v4018 = vadd.f32 %v4004, %v4017
    %v4019 = vpop.f32.mrf.mxu0
    %v4020 = vadd.f32 %v4006, %v4019
    %4021 = vdwg.mxu0
    %4022 = vmatpush.bf16.msra.mxu0 %v3406
    %4023 = vmatpush.bf16.msra.mxu0 %v3390
    %4024 = vmatpush.bf16.msra.mxu0 %v3374
    %4025 = vmatpush.bf16.msra.mxu0 %v3358
    %4026 = vmatpush.bf16.msra.mxu0 %v3342
    %4027 = vmatpush.bf16.msra.mxu0 %v3326
    %4028 = vmatpush.bf16.msra.mxu0 %v3310
    %4029 = vmatpush.bf16.msra.mxu0 %v3294
    %4030 = vmatmul.bf16.gmra.mxu0 %v276
    %v4031 = vpop.f32.mrf.mxu0
    %v4032 = vadd.f32 0.0, %v4031
    %v4033 = vpop.f32.mrf.mxu0
    %v4034 = vadd.f32 0.0, %v4033
    %4035 = vdwg.mxu0
    %4036 = vmatpush.bf16.msra.mxu0 %v3534
    %4037 = vmatpush.bf16.msra.mxu0 %v3518
    %4038 = vmatpush.bf16.msra.mxu0 %v3502
    %4039 = vmatpush.bf16.msra.mxu0 %v3486
    %4040 = vmatpush.bf16.msra.mxu0 %v3470
    %4041 = vmatpush.bf16.msra.mxu0 %v3454
    %4042 = vmatpush.bf16.msra.mxu0 %v3438
    %4043 = vmatpush.bf16.msra.mxu0 %v3422
    %4044 = vmatmul.bf16.gmra.mxu0 %v277
    %v4045 = vpop.f32.mrf.mxu0
    %v4046 = vadd.f32 %v4032, %v4045
    %v4047 = vpop.f32.mrf.mxu0
    %v4048 = vadd.f32 %v4034, %v4047
    %4049 = vdwg.mxu0
    %4050 = vmatpush.bf16.msra.mxu0 %v3407
    %4051 = vmatpush.bf16.msra.mxu0 %v3391
    %4052 = vmatpush.bf16.msra.mxu0 %v3375
    %4053 = vmatpush.bf16.msra.mxu0 %v3359
    %4054 = vmatpush.bf16.msra.mxu0 %v3343
    %4055 = vmatpush.bf16.msra.mxu0 %v3327
    %4056 = vmatpush.bf16.msra.mxu0 %v3311
    %4057 = vmatpush.bf16.msra.mxu0 %v3295
    %4058 = vmatmul.bf16.gmra.mxu0 %v276
    %v4059 = vpop.f32.mrf.mxu0
    %v4060 = vadd.f32 0.0, %v4059
    %v4061 = vpop.f32.mrf.mxu0
    %v4062 = vadd.f32 0.0, %v4061
    %4063 = vdwg.mxu0
    %4064 = vmatpush.bf16.msra.mxu0 %v3535
    %4065 = vmatpush.bf16.msra.mxu0 %v3519
    %4066 = vmatpush.bf16.msra.mxu0 %v3503
    %4067 = vmatpush.bf16.msra.mxu0 %v3487
    %4068 = vmatpush.bf16.msra.mxu0 %v3471
    %4069 = vmatpush.bf16.msra.mxu0 %v3455
    %4070 = vmatpush.bf16.msra.mxu0 %v3439
    %4071 = vmatpush.bf16.msra.mxu0 %v3423
    %4072 = vmatmul.bf16.gmra.mxu0 %v277
    %v4073 = vpop.f32.mrf.mxu0
    %v4074 = vadd.f32 %v4060, %v4073
    %v4075 = vpop.f32.mrf.mxu0
    %v4076 = vadd.f32 %v4062, %v4075
    %4077 = vdwg.mxu0
    %4078 = vmatpush.bf16.msra.mxu0 %v3408
    %4079 = vmatpush.bf16.msra.mxu0 %v3392
    %4080 = vmatpush.bf16.msra.mxu0 %v3376
    %4081 = vmatpush.bf16.msra.mxu0 %v3360
    %4082 = vmatpush.bf16.msra.mxu0 %v3344
    %4083 = vmatpush.bf16.msra.mxu0 %v3328
    %4084 = vmatpush.bf16.msra.mxu0 %v3312
    %4085 = vmatpush.bf16.msra.mxu0 %v3296
    %4086 = vmatmul.bf16.gmra.mxu0 %v276
    %v4087 = vpop.f32.mrf.mxu0
    %v4088 = vadd.f32 0.0, %v4087
    %v4089 = vpop.f32.mrf.mxu0
    %v4090 = vadd.f32 0.0, %v4089
    %4091 = vdwg.mxu0
    %4092 = vmatpush.bf16.msra.mxu0 %v3536
    %4093 = vmatpush.bf16.msra.mxu0 %v3520
    %4094 = vmatpush.bf16.msra.mxu0 %v3504
    %4095 = vmatpush.bf16.msra.mxu0 %v3488
    %4096 = vmatpush.bf16.msra.mxu0 %v3472
    %4097 = vmatpush.bf16.msra.mxu0 %v3456
    %4098 = vmatpush.bf16.msra.mxu0 %v3440
    %4099 = vmatpush.bf16.msra.mxu0 %v3424
    %4100 = vmatmul.bf16.gmra.mxu0 %v277
    %v4101 = vpop.f32.mrf.mxu0
    %v4102 = vadd.f32 %v4088, %v4101
    %v4103 = vpop.f32.mrf.mxu0
    %v4104 = vadd.f32 %v4090, %v4103
    %4105 = vdwg.mxu0
    %4106 = vmatpush.bf16.msra.mxu0 %v3409
    %4107 = vmatpush.bf16.msra.mxu0 %v3393
    %4108 = vmatpush.bf16.msra.mxu0 %v3377
    %4109 = vmatpush.bf16.msra.mxu0 %v3361
    %4110 = vmatpush.bf16.msra.mxu0 %v3345
    %4111 = vmatpush.bf16.msra.mxu0 %v3329
    %4112 = vmatpush.bf16.msra.mxu0 %v3313
    %4113 = vmatpush.bf16.msra.mxu0 %v3297
    %4114 = vmatmul.bf16.gmra.mxu0 %v276
    %v4115 = vpop.f32.mrf.mxu0
    %v4116 = vadd.f32 0.0, %v4115
    %v4117 = vpop.f32.mrf.mxu0
    %v4118 = vadd.f32 0.0, %v4117
    %4119 = vdwg.mxu0
    %4120 = vmatpush.bf16.msra.mxu0 %v3537
    %4121 = vmatpush.bf16.msra.mxu0 %v3521
    %4122 = vmatpush.bf16.msra.mxu0 %v3505
    %4123 = vmatpush.bf16.msra.mxu0 %v3489
    %4124 = vmatpush.bf16.msra.mxu0 %v3473
    %4125 = vmatpush.bf16.msra.mxu0 %v3457
    %4126 = vmatpush.bf16.msra.mxu0 %v3441
    %4127 = vmatpush.bf16.msra.mxu0 %v3425
    %4128 = vmatmul.bf16.gmra.mxu0 %v277
    %v4129 = vpop.f32.mrf.mxu0
    %v4130 = vadd.f32 %v4116, %v4129
    %v4131 = vpop.f32.mrf.mxu0
    %v4132 = vadd.f32 %v4118, %v4131
    %4133 = vdwg.mxu0
    %4134 = vmatpush.bf16.msra.mxu0 %v3410
    %4135 = vmatpush.bf16.msra.mxu0 %v3394
    %4136 = vmatpush.bf16.msra.mxu0 %v3378
    %4137 = vmatpush.bf16.msra.mxu0 %v3362
    %4138 = vmatpush.bf16.msra.mxu0 %v3346
    %4139 = vmatpush.bf16.msra.mxu0 %v3330
    %4140 = vmatpush.bf16.msra.mxu0 %v3314
    %4141 = vmatpush.bf16.msra.mxu0 %v3298
    %4142 = vmatmul.bf16.gmra.mxu0 %v276
    %v4143 = vpop.f32.mrf.mxu0
    %v4144 = vadd.f32 0.0, %v4143
    %v4145 = vpop.f32.mrf.mxu0
    %v4146 = vadd.f32 0.0, %v4145
    %4147 = vdwg.mxu0
    %4148 = vmatpush.bf16.msra.mxu0 %v3538
    %4149 = vmatpush.bf16.msra.mxu0 %v3522
    %4150 = vmatpush.bf16.msra.mxu0 %v3506
    %4151 = vmatpush.bf16.msra.mxu0 %v3490
    %4152 = vmatpush.bf16.msra.mxu0 %v3474
    %4153 = vmatpush.bf16.msra.mxu0 %v3458
    %4154 = vmatpush.bf16.msra.mxu0 %v3442
    %4155 = vmatpush.bf16.msra.mxu0 %v3426
    %4156 = vmatmul.bf16.gmra.mxu0 %v277
    %v4157 = vpop.f32.mrf.mxu0
    %v4158 = vadd.f32 %v4144, %v4157
    %v4159 = vpop.f32.mrf.mxu0
    %v4160 = vadd.f32 %v4146, %v4159
    %4161 = vdwg.mxu0
    %4162 = vmatpush.bf16.msra.mxu0 %v3411
    %4163 = vmatpush.bf16.msra.mxu0 %v3395
    %4164 = vmatpush.bf16.msra.mxu0 %v3379
    %4165 = vmatpush.bf16.msra.mxu0 %v3363
    %4166 = vmatpush.bf16.msra.mxu0 %v3347
    %4167 = vmatpush.bf16.msra.mxu0 %v3331
    %4168 = vmatpush.bf16.msra.mxu0 %v3315
    %4169 = vmatpush.bf16.msra.mxu0 %v3299
    %4170 = vmatmul.bf16.gmra.mxu0 %v276
    %v4171 = vpop.f32.mrf.mxu0
    %v4172 = vadd.f32 0.0, %v4171
    %v4173 = vpop.f32.mrf.mxu0
    %v4174 = vadd.f32 0.0, %v4173
    %4175 = vdwg.mxu0
    %4176 = vmatpush.bf16.msra.mxu0 %v3539
    %4177 = vmatpush.bf16.msra.mxu0 %v3523
    %4178 = vmatpush.bf16.msra.mxu0 %v3507
    %4179 = vmatpush.bf16.msra.mxu0 %v3491
    %4180 = vmatpush.bf16.msra.mxu0 %v3475
    %4181 = vmatpush.bf16.msra.mxu0 %v3459
    %4182 = vmatpush.bf16.msra.mxu0 %v3443
    %4183 = vmatpush.bf16.msra.mxu0 %v3427
    %4184 = vmatmul.bf16.gmra.mxu0 %v277
    %v4185 = vpop.f32.mrf.mxu0
    %v4186 = vadd.f32 %v4172, %v4185
    %v4187 = vpop.f32.mrf.mxu0
    %v4188 = vadd.f32 %v4174, %v4187
    %4189 = vdwg.mxu0
    %4190 = vmatpush.bf16.msra.mxu0 %v3412
    %4191 = vmatpush.bf16.msra.mxu0 %v3396
    %4192 = vmatpush.bf16.msra.mxu0 %v3380
    %4193 = vmatpush.bf16.msra.mxu0 %v3364
    %4194 = vmatpush.bf16.msra.mxu0 %v3348
    %4195 = vmatpush.bf16.msra.mxu0 %v3332
    %4196 = vmatpush.bf16.msra.mxu0 %v3316
    %4197 = vmatpush.bf16.msra.mxu0 %v3300
    %4198 = vmatmul.bf16.gmra.mxu0 %v276
    %v4199 = vpop.f32.mrf.mxu0
    %v4200 = vadd.f32 0.0, %v4199
    %v4201 = vpop.f32.mrf.mxu0
    %v4202 = vadd.f32 0.0, %v4201
    %4203 = vdwg.mxu0
    %4204 = vmatpush.bf16.msra.mxu0 %v3540
    %4205 = vmatpush.bf16.msra.mxu0 %v3524
    %4206 = vmatpush.bf16.msra.mxu0 %v3508
    %4207 = vmatpush.bf16.msra.mxu0 %v3492
    %4208 = vmatpush.bf16.msra.mxu0 %v3476
    %4209 = vmatpush.bf16.msra.mxu0 %v3460
    %4210 = vmatpush.bf16.msra.mxu0 %v3444
    %4211 = vmatpush.bf16.msra.mxu0 %v3428
    %4212 = vmatmul.bf16.gmra.mxu0 %v277
    %v4213 = vpop.f32.mrf.mxu0
    %v4214 = vadd.f32 %v4200, %v4213
    %v4215 = vpop.f32.mrf.mxu0
    %v4216 = vadd.f32 %v4202, %v4215
    %4217 = vdwg.mxu0
    %4218 = vmatpush.bf16.msra.mxu0 %v3413
    %4219 = vmatpush.bf16.msra.mxu0 %v3397
    %4220 = vmatpush.bf16.msra.mxu0 %v3381
    %4221 = vmatpush.bf16.msra.mxu0 %v3365
    %4222 = vmatpush.bf16.msra.mxu0 %v3349
    %4223 = vmatpush.bf16.msra.mxu0 %v3333
    %4224 = vmatpush.bf16.msra.mxu0 %v3317
    %4225 = vmatpush.bf16.msra.mxu0 %v3301
    %4226 = vmatmul.bf16.gmra.mxu0 %v276
    %v4227 = vpop.f32.mrf.mxu0
    %v4228 = vadd.f32 0.0, %v4227
    %v4229 = vpop.f32.mrf.mxu0
    %v4230 = vadd.f32 0.0, %v4229
    %4231 = vdwg.mxu0
    %4232 = vmatpush.bf16.msra.mxu0 %v3541
    %4233 = vmatpush.bf16.msra.mxu0 %v3525
    %4234 = vmatpush.bf16.msra.mxu0 %v3509
    %4235 = vmatpush.bf16.msra.mxu0 %v3493
    %4236 = vmatpush.bf16.msra.mxu0 %v3477
    %4237 = vmatpush.bf16.msra.mxu0 %v3461
    %4238 = vmatpush.bf16.msra.mxu0 %v3445
    %4239 = vmatpush.bf16.msra.mxu0 %v3429
    %4240 = vmatmul.bf16.gmra.mxu0 %v277
    %v4241 = vpop.f32.mrf.mxu0
    %v4242 = vadd.f32 %v4228, %v4241
    %v4243 = vpop.f32.mrf.mxu0
    %v4244 = vadd.f32 %v4230, %v4243
    %4245 = vdwg.mxu0
    %v4246 = vmul.f32 %v1838, %v3822
    %v4247 = vmul.f32 %v1866, %v3850
    %v4248 = vmul.f32 %v1894, %v3878
    %v4249 = vmul.f32 %v1922, %v3906
    %v4250 = vmul.f32 %v1950, %v3934
    %v4251 = vmul.f32 %v1978, %v3962
    %v4252 = vmul.f32 %v2006, %v3990
    %v4253 = vmul.f32 %v2034, %v4018
    %v4254 = vmul.f32 %v2062, %v4046
    %v4255 = vmul.f32 %v2090, %v4074
    %v4256 = vmul.f32 %v2118, %v4102
    %v4257 = vmul.f32 %v2146, %v4130
    %v4258 = vmul.f32 %v2174, %v4158
    %v4259 = vmul.f32 %v2202, %v4186
    %v4260 = vmul.f32 %v2230, %v4214
    %v4261 = vmul.f32 %v2258, %v4242
    %v4262 = vmul.f32 %v1840, %v3824
    %v4263 = vmul.f32 %v1868, %v3852
    %v4264 = vmul.f32 %v1896, %v3880
    %v4265 = vmul.f32 %v1924, %v3908
    %v4266 = vmul.f32 %v1952, %v3936
    %v4267 = vmul.f32 %v1980, %v3964
    %v4268 = vmul.f32 %v2008, %v3992
    %v4269 = vmul.f32 %v2036, %v4020
    %v4270 = vmul.f32 %v2064, %v4048
    %v4271 = vmul.f32 %v2092, %v4076
    %v4272 = vmul.f32 %v2120, %v4104
    %v4273 = vmul.f32 %v2148, %v4132
    %v4274 = vmul.f32 %v2176, %v4160
    %v4275 = vmul.f32 %v2204, %v4188
    %v4276 = vmul.f32 %v2232, %v4216
    %v4277 = vmul.f32 %v2260, %v4244
    %v4278 = vadd.f32 %v4246, %v4247
    %v4279 = vadd.f32 %v4262, %v4263
    %v4280 = vadd.f32 %v4278, %v4248
    %v4281 = vadd.f32 %v4279, %v4264
    %v4282 = vadd.f32 %v4280, %v4249
    %v4283 = vadd.f32 %v4281, %v4265
    %v4284 = vadd.f32 %v4282, %v4250
    %v4285 = vadd.f32 %v4283, %v4266
    %v4286 = vadd.f32 %v4284, %v4251
    %v4287 = vadd.f32 %v4285, %v4267
    %v4288 = vadd.f32 %v4286, %v4252
    %v4289 = vadd.f32 %v4287, %v4268
    %v4290 = vadd.f32 %v4288, %v4253
    %v4291 = vadd.f32 %v4289, %v4269
    %v4292 = vadd.f32 %v4290, %v4254
    %v4293 = vadd.f32 %v4291, %v4270
    %v4294 = vadd.f32 %v4292, %v4255
    %v4295 = vadd.f32 %v4293, %v4271
    %v4296 = vadd.f32 %v4294, %v4256
    %v4297 = vadd.f32 %v4295, %v4272
    %v4298 = vadd.f32 %v4296, %v4257
    %v4299 = vadd.f32 %v4297, %v4273
    %v4300 = vadd.f32 %v4298, %v4258
    %v4301 = vadd.f32 %v4299, %v4274
    %v4302 = vadd.f32 %v4300, %v4259
    %v4303 = vadd.f32 %v4301, %v4275
    %v4304 = vadd.f32 %v4302, %v4260
    %v4305 = vadd.f32 %v4303, %v4276
    %v4306 = vadd.f32 %v4304, %v4261
    %v4307 = vadd.f32 %v4305, %v4277
    %v4308 = vpack.c.bf16 %v4307, %v4306
    %v4309 = vld [vmem:[%s6] sm:$0xf]
    %v4310 = vld [vmem:[%s6 + $0x4] sm:$0xf]
    %v4311 = vld [vmem:[%s6 + $0x8] sm:$0xf]
    %v4312 = vld [vmem:[%s6 + $0xc] sm:$0xf]
    %v4313 = vld [vmem:[%s6 + $0x10] sm:$0xf]
    %v4314 = vld [vmem:[%s6 + $0x14] sm:$0xf]
    %v4315 = vld [vmem:[%s6 + $0x18] sm:$0xf]
    %v4316 = vld [vmem:[%s6 + $0x1c] sm:$0xf]
    %v4317 = vld [vmem:[%s6 + $0x20] sm:$0xf]
    %v4318 = vld [vmem:[%s6 + $0x24] sm:$0xf]
    %v4319 = vld [vmem:[%s6 + $0x28] sm:$0xf]
    %v4320 = vld [vmem:[%s6 + $0x2c] sm:$0xf]
    %v4321 = vld [vmem:[%s6 + $0x30] sm:$0xf]
    %v4322 = vld [vmem:[%s6 + $0x34] sm:$0xf]
    %v4323 = vld [vmem:[%s6 + $0x38] sm:$0xf]
    %v4324 = vld [vmem:[%s6 + $0x3c] sm:$0xf]
    %v4341 = vunpack.c.l.b16 %v4309
    %v4342 = vunpack.c.l.b16 %v4310
    %v4343 = vunpack.c.l.b16 %v4311
    %v4344 = vunpack.c.l.b16 %v4312
    %v4345 = vunpack.c.l.b16 %v4313
    %v4346 = vunpack.c.l.b16 %v4314
    %v4347 = vunpack.c.l.b16 %v4315
    %v4348 = vunpack.c.l.b16 %v4316
    %v4349 = vunpack.c.l.b16 %v4317
    %v4350 = vunpack.c.l.b16 %v4318
    %v4351 = vunpack.c.l.b16 %v4319
    %v4352 = vunpack.c.l.b16 %v4320
    %v4353 = vunpack.c.l.b16 %v4321
    %v4354 = vunpack.c.l.b16 %v4322
    %v4355 = vunpack.c.l.b16 %v4323
    %v4356 = vunpack.c.l.b16 %v4324
    %v4357 = vpack.c.b16 %v4342, %v4341
    %v4358 = vpack.c.b16 %v4344, %v4343
    %v4359 = vpack.c.b16 %v4346, %v4345
    %v4360 = vpack.c.b16 %v4348, %v4347
    %v4361 = vpack.c.b16 %v4350, %v4349
    %v4362 = vpack.c.b16 %v4352, %v4351
    %v4363 = vpack.c.b16 %v4354, %v4353
    %v4364 = vpack.c.b16 %v4356, %v4355
    %4373 = vmatpush.bf16.msra.mxu0 %v4364
    %4374 = vmatpush.bf16.msra.mxu0 %v4363
    %4375 = vmatpush.bf16.msra.mxu0 %v4362
    %4376 = vmatpush.bf16.msra.mxu0 %v4361
    %4377 = vmatpush.bf16.msra.mxu0 %v4360
    %4378 = vmatpush.bf16.msra.mxu0 %v4359
    %4379 = vmatpush.bf16.msra.mxu0 %v4358
    %4380 = vmatpush.bf16.msra.mxu0 %v4357
    %4381 = vmatmul.bf16.gmra.mxu0 %v4308
    %v4382 = vpop.f32.mrf.mxu0
    %v4383 = vadd.f32 0.0, %v4382
    %v4384 = vpop.f32.mrf.mxu0
    %v4385 = vadd.f32 0.0, %v4384
    %4386 = vdwg.mxu0
    %v4387 = vmul.f32 %v4383, %v4383
    %v4388 = vmul.f32 %v4385, %v4385
    %v4389 = vmul.f32 %v4383, %v4387
    %v4390 = vmul.f32 %v4385, %v4388
    %v4391 = vmul.f32 %v4389, 0.044715
    %v4392 = vmul.f32 %v4390, 0.044715
    %v4393 = vadd.f32 %v4383, %v4391
    %v4394 = vadd.f32 %v4385, %v4392
    %v4395 = vmul.f32 %v4393, 0.7978846
    %v4396 = vmul.f32 %v4394, 0.7978846
    %v4397 = vtanh.pop %v4395
    %v4398 = vtanh.pop %v4396
    %v4399 = vadd.f32 %v4397, 1.0
    %v4400 = vadd.f32 %v4398, 1.0
    %v4401 = vmul.f32 %v4399, 0.5
    %v4402 = vmul.f32 %v4400, 0.5
    %v4403 = vmul.f32 %v4383, %v4401
    %v4404 = vmul.f32 %v4385, %v4402
    %v4405 = vmul.f32 %v4306, %v4403
    %v4406 = vmul.f32 %v4307, %v4404
    %v4407 = vpack.c.bf16 %v4406, %v4405
    %v4408 = vmul.f32 %v272, %v272
    %v4409 = vmul.f32 %v274, %v274
    %v4410 = vmul.f32 %v272, %v4408
    %v4411 = vmul.f32 %v274, %v4409
    %v4412 = vmul.f32 %v4410, 0.044715
    %v4413 = vmul.f32 %v4411, 0.044715
    %v4414 = vadd.f32 %v272, %v4412
    %v4415 = vadd.f32 %v274, %v4413
    %v4416 = vmul.f32 %v4414, 0.7978846
    %v4417 = vmul.f32 %v4415, 0.7978846
    %v4418 = vtanh.pop %v4416
    %v4419 = vtanh.pop %v4417
    %v4420 = vadd.f32 %v4418, 1.0
    %v4421 = vadd.f32 %v4419, 1.0
    %v4422 = vmul.f32 %v4420, 0.5
    %v4423 = vmul.f32 %v4421, 0.5
    %v4424 = vmul.f32 %v272, %v4422
    %v4425 = vmul.f32 %v274, %v4423
    %v4426 = vpack.c.bf16 %v4425, %v4424
    %v4427 = vld [vmem:[%s7] sm:$0xf]
    %v4428 = vld [vmem:[%s7 + $0x4] sm:$0xf]
    %v4429 = vld [vmem:[%s7 + $0x8] sm:$0xf]
    %v4430 = vld [vmem:[%s7 + $0xc] sm:$0xf]
    %v4431 = vld [vmem:[%s7 + $0x10] sm:$0xf]
    %v4432 = vld [vmem:[%s7 + $0x14] sm:$0xf]
    %v4433 = vld [vmem:[%s7 + $0x18] sm:$0xf]
    %v4434 = vld [vmem:[%s7 + $0x1c] sm:$0xf]
    %v4435 = vld [vmem:[%s7 + $0x20] sm:$0xf]
    %v4436 = vld [vmem:[%s7 + $0x24] sm:$0xf]
    %v4437 = vld [vmem:[%s7 + $0x28] sm:$0xf]
    %v4438 = vld [vmem:[%s7 + $0x2c] sm:$0xf]
    %v4439 = vld [vmem:[%s7 + $0x30] sm:$0xf]
    %v4440 = vld [vmem:[%s7 + $0x34] sm:$0xf]
    %v4441 = vld [vmem:[%s7 + $0x38] sm:$0xf]
    %v4442 = vld [vmem:[%s7 + $0x3c] sm:$0xf]
    %v4443 = vld [vmem:[%s8] sm:$0xf]
    %v4444 = vld [vmem:[%s8 + $0x4] sm:$0xf]
    %v4445 = vld [vmem:[%s8 + $0x8] sm:$0xf]
    %v4446 = vld [vmem:[%s8 + $0xc] sm:$0xf]
    %v4447 = vld [vmem:[%s8 + $0x10] sm:$0xf]
    %v4448 = vld [vmem:[%s8 + $0x14] sm:$0xf]
    %v4449 = vld [vmem:[%s8 + $0x18] sm:$0xf]
    %v4450 = vld [vmem:[%s8 + $0x1c] sm:$0xf]
    %v4451 = vld [vmem:[%s8 + $0x20] sm:$0xf]
    %v4452 = vld [vmem:[%s8 + $0x24] sm:$0xf]
    %v4453 = vld [vmem:[%s8 + $0x28] sm:$0xf]
    %v4454 = vld [vmem:[%s8 + $0x2c] sm:$0xf]
    %v4455 = vld [vmem:[%s8 + $0x30] sm:$0xf]
    %v4456 = vld [vmem:[%s8 + $0x34] sm:$0xf]
    %v4457 = vld [vmem:[%s8 + $0x38] sm:$0xf]
    %v4458 = vld [vmem:[%s8 + $0x3c] sm:$0xf]
    %v4475 = vunpack.c.l.b16 %v4443
    %v4476 = vunpack.c.l.b16 %v4444
    %v4477 = vunpack.c.l.b16 %v4445
    %v4478 = vunpack.c.l.b16 %v4446
    %v4479 = vunpack.c.l.b16 %v4447
    %v4480 = vunpack.c.l.b16 %v4448
    %v4481 = vunpack.c.l.b16 %v4449
    %v4482 = vunpack.c.l.b16 %v4450
    %v4483 = vunpack.c.l.b16 %v4451
    %v4484 = vunpack.c.l.b16 %v4452
    %v4485 = vunpack.c.l.b16 %v4453
    %v4486 = vunpack.c.l.b16 %v4454
    %v4487 = vunpack.c.l.b16 %v4455
    %v4488 = vunpack.c.l.b16 %v4456
    %v4489 = vunpack.c.l.b16 %v4457
    %v4490 = vunpack.c.l.b16 %v4458
    %v4491 = vpack.c.b16 %v4476, %v4475
    %v4492 = vpack.c.b16 %v4478, %v4477
    %v4493 = vpack.c.b16 %v4480, %v4479
    %v4494 = vpack.c.b16 %v4482, %v4481
    %v4495 = vpack.c.b16 %v4484, %v4483
    %v4496 = vpack.c.b16 %v4486, %v4485
    %v4497 = vpack.c.b16 %v4488, %v4487
    %v4498 = vpack.c.b16 %v4490, %v4489
    %4507 = vmatpush.bf16.msra.mxu0 %v4498
    %4508 = vmatpush.bf16.msra.mxu0 %v4497
    %4509 = vmatpush.bf16.msra.mxu0 %v4496
    %4510 = vmatpush.bf16.msra.mxu0 %v4495
    %4511 = vmatpush.bf16.msra.mxu0 %v4494
    %4512 = vmatpush.bf16.msra.mxu0 %v4493
    %4513 = vmatpush.bf16.msra.mxu0 %v4492
    %4514 = vmatpush.bf16.msra.mxu0 %v4491
    %4515 = vmatmul.bf16.gmra.mxu0 %v4426
    %v4516 = vpop.f32.mrf.mxu0
    %v4517 = vadd.f32 0.0, %v4516
    %v4518 = vpop.f32.mrf.mxu0
    %v4519 = vadd.f32 0.0, %v4518
    %4520 = vdwg.mxu0
    %v4537 = vunpack.c.l.b16 %v4427
    %v4538 = vunpack.c.l.b16 %v4428
    %v4539 = vunpack.c.l.b16 %v4429
    %v4540 = vunpack.c.l.b16 %v4430
    %v4541 = vunpack.c.l.b16 %v4431
    %v4542 = vunpack.c.l.b16 %v4432
    %v4543 = vunpack.c.l.b16 %v4433
    %v4544 = vunpack.c.l.b16 %v4434
    %v4545 = vunpack.c.l.b16 %v4435
    %v4546 = vunpack.c.l.b16 %v4436
    %v4547 = vunpack.c.l.b16 %v4437
    %v4548 = vunpack.c.l.b16 %v4438
    %v4549 = vunpack.c.l.b16 %v4439
    %v4550 = vunpack.c.l.b16 %v4440
    %v4551 = vunpack.c.l.b16 %v4441
    %v4552 = vunpack.c.l.b16 %v4442
    %v4553 = vpack.c.b16 %v4538, %v4537
    %v4554 = vpack.c.b16 %v4540, %v4539
    %v4555 = vpack.c.b16 %v4542, %v4541
    %v4556 = vpack.c.b16 %v4544, %v4543
    %v4557 = vpack.c.b16 %v4546, %v4545
    %v4558 = vpack.c.b16 %v4548, %v4547
    %v4559 = vpack.c.b16 %v4550, %v4549
    %v4560 = vpack.c.b16 %v4552, %v4551
    %4569 = vmatpush.bf16.msra.mxu0 %v4560
    %4570 = vmatpush.bf16.msra.mxu0 %v4559
    %4571 = vmatpush.bf16.msra.mxu0 %v4558
    %4572 = vmatpush.bf16.msra.mxu0 %v4557
    %4573 = vmatpush.bf16.msra.mxu0 %v4556
    %4574 = vmatpush.bf16.msra.mxu0 %v4555
    %4575 = vmatpush.bf16.msra.mxu0 %v4554
    %4576 = vmatpush.bf16.msra.mxu0 %v4553
    %4577 = vmatmul.bf16.gmra.mxu0 %v4407
    %v4578 = vpop.f32.mrf.mxu0
    %v4579 = vadd.f32 %v4517, %v4578
    %v4580 = vpop.f32.mrf.mxu0
    %v4581 = vadd.f32 %v4519, %v4580
    %4582 = vdwg.mxu0
    %v4583 = vld [vmem:[%s9] sm:$0x1]
    %v4585 = vperm.slane %v4583, 0
    %v4587 = vadd.f32 %v4579, %v4585
    %v4588 = vadd.f32 %v4581, %v4585
    %v4589 = vadd.f32 %v67, %v4587
    %v4590 = vadd.f32 %v68, %v4588
    %4591 = vst [vmem:[%s10] sm:$0xff] %v4589
    %4592 = vst [vmem:[%s10 + $0x8] sm:$0xff] %v4590
    // Predicated region
    $region50: #{_lambda_.14} parent=1 // pred_check
      _
    $region51: #{_lambda_.14} parent=1 // pred_check_branch
      %4594 = sbr.rel (0) target = $region53
    $region52: #{_lambda_.14} parent=1 // pred_region
      _
    $region53: #{_lambda_.14} parent=1 // pred_fallthru
      _
    // Predicated region
    $region54: #{_lambda_.14} parent=1 // pred_check
      _
    $region55: #{_lambda_.14} parent=1 // pred_check_branch
      %4596 = sbr.rel (0) target = $region57
    $region56: #{_lambda_.14} parent=1 // pred_region
      _
    $region57: #{_lambda_.14} parent=1 // pred_fallthru
      _
    %4597 = vsyncpa [#allocation3], 1
    %4598 = vsyncpa [#allocation5], 1

</llo_original>
